<compile_context>
chip_gen: v6e
topology: v6e:2x2x1
jax: 0.10.0
libtpu: 0.0.40
codegen_flags: <defaults>
</compile_context>

<pallas_src>
import functools

import jax
import jax.numpy as jnp
import numpy as np
from jax import lax
from jax.experimental import pallas as pl
from jax.experimental.pallas import tpu as pltpu

EPS = 1e-3  # BatchNorm1d eps used by MaskedBatchNorm1d


def _round_up(x, m):
    return ((x + m - 1) // m) * m


# --------------------------------------------------------------------------------------
# Fused kernel: whole Quartznet block for one (batch, time-tile) grid step
# --------------------------------------------------------------------------------------
def _fused_block_kernel(x_hbm, w1_ref, wrest_ref, bias_ref, out_ref,
                        xbuf, hbuf, sem, *, K, R, T_tile, pad, H, T_total):
    """
    x_hbm    : (B, T_pad + 2H, Cin) bf16 in HBM (pl.ANY) - halo windows DMA'd manually
    w1_ref   : (K*Cin, 2*Cout) bf16  layer-0 weight (BN scale folded) with the residual 1x1 conv
               packed into tap k0=pad as columns [Cout:2*Cout]
    wrest_ref: (max(R-1,1), K*Cout, Cout) bf16  layers 1..R-1 (BN scale folded); dummy if R == 1
    bias_ref : (R, 1, Cout) f32  folded BN biases; bias[R-1] also contains the residual BN bias
    out_ref  : (T_tile, Cout)    output tile
    xbuf     : VMEM (2, W, Cin) bf16 double-buffered input window,  W = T_tile + 2H
    hbuf     : VMEM (W, Cout) bf16 staged intermediate activation
    sem      : DMA semaphores (2,)
    """
    Cout = out_ref.shape[-1]
    W = T_tile + 2 * H
    b = pl.program_id(0)
    t = pl.program_id(1)
    t0 = t * T_tile
    slot = t % 2

    def window_copy(bi, ti, s):
        start = pl.multiple_of(ti * T_tile, 8)   # T_tile is a multiple of 8
        return pltpu.make_async_copy(x_hbm.at[bi, pl.ds(start, W), :],
                                     xbuf.at[s], sem.at[s])

    # Manual double-buffered halo-window DMA (overlapping windows are not expressible as a
    # Blocked BlockSpec; a wrapper-side gather would cost an extra HBM pass over the input).
    @pl.when(t == 0)
    def _prime():                      # first tile of this batch row
        window_copy(b, t, slot).start()

    window_copy(b, t, slot).wait()

    @pl.when(t + 1 < pl.num_programs(1))
    def _prefetch():                   # overlap next window's DMA with this tile's compute
        window_copy(b, t + 1, 1 - slot).start()

    # ---- repeat chain: [conv(k=K,'same') -> BN -> ReLU] x (R-1) -> conv -> BN ----
    xw = xbuf[slot]                                            # (W, Cin) bf16, single read
    L = W - (K - 1)
    im2col = jnp.concatenate([xw[k:k + L, :] for k in range(K)], axis=1)   # (L, K*Cin)
    # One matmul produces layer 0 AND the residual pre-activation (extra weight columns).
    y0 = jnp.dot(im2col, w1_ref[...], preferred_element_type=jnp.float32)  # (L, 2*Cout)

    r_off = H - pad                                            # rows aligned to abs times [t0, t0+T_tile)
    res = y0[r_off:r_off + T_tile, Cout:2 * Cout]              # residual branch (BN scale folded)
    y = y0[:, :Cout] + bias_ref[0]                             # conv0 + folded BN bias

    if R > 1:
        rows = lax.broadcasted_iota(jnp.int32, (L, 1), 0)      # hoisted out of the layer loop
    for i in range(R - 1):                                     # static unroll, R is small
        # ReLU, then re-zero rows whose absolute time is outside [0, T): reproduces each unfused
        # layer's own zero padding at the sequence boundaries despite the fusion.
        t_abs = rows[:L] + (t0 - H + (i + 1) * pad)
        y = jnp.where((t_abs >= 0) & (t_abs < T_total), jnp.maximum(y, 0.0), 0.0)
        hbuf[0:L, :] = y.astype(jnp.bfloat16)                  # stage activation in a VMEM ref
        L = L - (K - 1)
        im2col = jnp.concatenate([hbuf[k:k + L, :] for k in range(K)], axis=1)  # (L, K*Cout)
        y = jnp.dot(im2col, wrest_ref[i],
                    preferred_element_type=jnp.float32) + bias_ref[i + 1]

    off = H - R * pad
    # mout: ReLU (Dropout p=0 -> identity); bias_ref[R-1] already includes the residual BN bias.
    out_ref[...] = jnp.maximum(y[off:off + T_tile, :] + res, 0.0).astype(out_ref.dtype)


# --------------------------------------------------------------------------------------
# Parameter preparation (done once, outside the per-step forward)
# --------------------------------------------------------------------------------------
def _fold_bn(gamma, beta, mean, var):
    scale = gamma / jnp.sqrt(var + EPS)
    bias = beta - mean * scale
    return scale.astype(jnp.float32), bias.astype(jnp.float32)


def prepare_params(params):
    """Fold eval-mode BN scales into the conv weights, flatten tap-major for im2col, pack the 1x1
    residual conv into the first layer's weight, and merge all biases. Done once."""
    conv_w = params["conv_w"]
    R = len(conv_w)
    Cout, Cin, K = conv_w[0].shape
    pad = K // 2

    folded = [_fold_bn(*bn) for bn in params["bn"]]
    sres, bres = _fold_bn(*params["res_bn"])

    # Layer 0: (K, Cin, Cout) with BN scale folded, flattened tap-major -> (K*Cin, Cout).
    w0 = jnp.transpose(conv_w[0], (2, 1, 0)).astype(jnp.float32) * folded[0][0][None, None, :]
    w0 = w0.reshape(K * Cin, Cout)
    # Residual 1x1 conv (with its BN scale folded) packed into tap k0 = pad as extra columns.
    wres = jnp.transpose(params["res_w"][:, :, 0], (1, 0)).astype(jnp.float32) * sres[None, :]
    wres_cols = jnp.zeros((K * Cin, Cout), jnp.float32)
    wres_cols = wres_cols.at[pad * Cin:(pad + 1) * Cin, :].set(wres)
    w1 = jnp.concatenate([w0, wres_cols], axis=1).astype(jnp.bfloat16)      # (K*Cin, 2*Cout)

    if R > 1:
        wrest = jnp.stack(
            [(jnp.transpose(conv_w[i], (2, 1, 0)).astype(jnp.float32)
              * folded[i][0][None, None, :]).reshape(K * Cout, Cout) for i in range(1, R)],
            axis=0).astype(jnp.bfloat16)                                    # (R-1, K*Cout, Cout)
    else:
        wrest = jnp.zeros((1, 8, Cout), jnp.bfloat16)                       # tiny dummy, never read

    biases = [folded[i][1] for i in range(R)]
    biases[-1] = biases[-1] + bres          # residual BN bias merged into the final epilogue add
    bias = jnp.stack([jnp.reshape(v, (1, Cout)) for v in biases], axis=0)   # (R, 1, Cout) f32

    return dict(w1=w1, wrest=wrest, bias=bias)


# --------------------------------------------------------------------------------------
# Forward wrapper
# --------------------------------------------------------------------------------------
def quartznet_block_forward(x_bct, prep, *, pad, t_tile=512, out_dtype=jnp.float32):
    """x_bct: (batch, features, time) like the PyTorch module.  Returns (batch, out_ch, time)."""
    B, Cin, T = x_bct.shape
    R = prep["bias"].shape[0]
    Cout = prep["bias"].shape[-1]
    assert prep["w1"].shape[0] % Cin == 0
    K = prep["w1"].shape[0] // Cin
    assert prep["w1"].shape == (K * Cin, 2 * Cout)
    assert K % 2 == 1 and pad == K // 2, "only stride=1, dilation=1, 'same' padding supported"

    t_tile = max(8, (int(t_tile) // 8) * 8)
    if t_tile > T:
        t_tile = _round_up(T, 8)
    T_pad = _round_up(T, t_tile)        # pad ragged T up to a tile multiple (outputs sliced off)
    NT = T_pad // t_tile
    H = _round_up(R * pad, 8)           # per-side halo covering the whole chain, sublane aligned
    W = t_tile + 2 * H

    # Channels-last + a single zero pad that stands in for every layer's 'same' padding.
    x_btc = jnp.transpose(x_bct, (0, 2, 1)).astype(jnp.bfloat16)
    xpad = jnp.pad(x_btc, ((0, 0), (H, T_pad - T + H), (0, 0)))     # (B, T_pad + 2H, Cin)

    kernel = functools.partial(_fused_block_kernel, K=K, R=R, T_tile=t_tile, pad=pad,
                               H=H, T_total=T)

    flops = 2 * B * T_pad * K * (Cin * 2 * Cout + (R - 1) * Cout * Cout)
    bytes_accessed = int(xpad.size * 2 + prep["w1"].size * 2 + prep["wrest"].size * 2
                         + prep["bias"].size * 4
                         + B * T_pad * Cout * jnp.dtype(out_dtype).itemsize)

    out_btc = pl.pallas_call(
        kernel,
        grid=(B, NT),
        in_specs=[
            pl.BlockSpec(memory_space=pl.ANY),                        # raw HBM, manual window DMA
            pl.BlockSpec(prep["w1"].shape, lambda b, t: (0, 0)),
            pl.BlockSpec(prep["wrest"].shape, lambda b, t: (0, 0, 0)),
            pl.BlockSpec(prep["bias"].shape, lambda b, t: (0, 0, 0)),
        ],
        out_specs=pl.BlockSpec((None, t_tile, Cout), lambda b, t: (b, t, 0)),
        out_shape=jax.ShapeDtypeStruct((B, T_pad, Cout), out_dtype),
        scratch_shapes=[
            pltpu.VMEM((2, W, Cin), jnp.bfloat16),     # double-buffered halo'ed input window
            pltpu.VMEM((W, Cout), jnp.bfloat16),       # staged intermediate activation
            pltpu.SemaphoreType.DMA((2,)),
        ],
        compiler_params=pltpu.CompilerParams(
            dimension_semantics=("parallel", "arbitrary")),   # default VMEM limit: few-MiB footprint
        cost_estimate=pl.CostEstimate(flops=flops, transcendentals=0,
                                      bytes_accessed=bytes_accessed),
    )(xpad, prep["w1"], prep["wrest"], prep["bias"])

    out_btc = out_btc[:, :T, :]
    # TODO(synk): when chaining Quartznet blocks, return bf16 channels-last and skip this transpose.
    return jnp.transpose(out_btc, (0, 2, 1))


# --------------------------------------------------------------------------------------
# Pure-JAX f32 reference (matches PyTorch eval-mode semantics)
# --------------------------------------------------------------------------------------
def ref_forward(x_bct, params, *, pad):
    def bn_apply(h, gamma, beta, mean, var):
        return (h - mean[None, :, None]) / jnp.sqrt(var[None, :, None] + EPS) \
            * gamma[None, :, None] + beta[None, :, None]

    def conv(h, w, p):
        return lax.conv_general_dilated(h, w, (1,), [(p, p)],
                                        dimension_numbers=("NCH", "OIH", "NCH"))

    h = x_bct
    n = len(params["conv_w"])
    for i in range(n):
        h = conv(h, params["conv_w"][i], pad)
        h = bn_apply(h, *params["bn"][i])
        if i < n - 1:
            h = jnp.maximum(h, 0.0)
    r = conv(x_bct, params["res_w"], 0)
    r = bn_apply(r, *params["res_bn"])
    return jnp.maximum(h + r, 0.0)


# --------------------------------------------------------------------------------------
if __name__ == "__main__":
    # Lane-aligned but small shapes: Cin = Cout = 128, T = 64 with two 32-wide time tiles so the
    # boundary-halo masking and the cross-tile DMA prefetch path are both exercised.
    B, Cin, Cout, T = 2, 128, 128, 64
    K, repeat = 11, 3
    pad = K // 2  # get_same_padding(11, 1, 1) == 5

    key = jax.random.PRNGKey(0)
    keys = jax.random.split(key, 6 * (repeat + 1) + 1)
    ki = 0

    conv_w, bn = [], []
    ci = Cin
    for _ in range(repeat):
        conv_w.append(jax.random.normal(keys[ki], (Cout, ci, K), jnp.float32)
                      / jnp.sqrt(ci * K)); ki += 1
        gamma = 1.0 + 0.1 * jax.random.normal(keys[ki], (Cout,), jnp.float32); ki += 1
        beta = 0.1 * jax.random.normal(keys[ki], (Cout,), jnp.float32); ki += 1
        mean = 0.1 * jax.random.normal(keys[ki], (Cout,), jnp.float32); ki += 1
        var = 1.0 + 0.1 * jnp.abs(jax.random.normal(keys[ki], (Cout,), jnp.float32)); ki += 1
        bn.append((gamma, beta, mean, var))
        ci = Cout

    res_w = jax.random.normal(keys[ki], (Cout, Cin, 1), jnp.float32) / jnp.sqrt(Cin); ki += 1
    r_gamma = 1.0 + 0.1 * jax.random.normal(keys[ki], (Cout,), jnp.float32); ki += 1
    r_beta = 0.1 * jax.random.normal(keys[ki], (Cout,), jnp.float32); ki += 1
    r_mean = 0.1 * jax.random.normal(keys[ki], (Cout,), jnp.float32); ki += 1
    r_var = 1.0 + 0.1 * jnp.abs(jax.random.normal(keys[ki], (Cout,), jnp.float32)); ki += 1

    params = dict(conv_w=conv_w, bn=bn, res_w=res_w,
                  res_bn=(r_gamma, r_beta, r_mean, r_var))

    x = jax.random.normal(keys[-1], (B, Cin, T), jnp.float32)  # (batch, features, time)

    prep = prepare_params(params)  # fold BN / flatten / pack residual / bf16-cast weights once
    fwd = jax.jit(functools.partial(quartznet_block_forward, pad=pad, t_tile=32))

    out = jax.block_until_ready(fwd(x, prep))
    ref = jax.block_until_ready(ref_forward(x, params, pad=pad))

    # bf16 MXU operands (f32 accumulation / epilogue) vs a pure-f32 reference -> relaxed tolerance.
    np.testing.assert_allclose(np.asarray(out), np.asarray(ref), rtol=5e-2, atol=5e-2)
    assert out.shape == (B, Cout, T)
    print("KERNEL_OK")
</pallas_src>

<mosaic_0001>
module attributes {stable_mosaic.version = 11 : i64} {
  func.func @_fused_block_kernel(%arg0: i32, %arg1: i32, %arg2: memref<2x96x128xbf16, #tpu.memory_space<any>>, %arg3: memref<1408x256xbf16, #tpu.memory_space<vmem>>, %arg4: memref<2x1408x128xbf16, #tpu.memory_space<vmem>>, %arg5: memref<3x1x128xf32, #tpu.memory_space<vmem>>, %arg6: memref<1x32x128xf32, #tpu.memory_space<vmem>>, %arg7: memref<2x64x128xbf16, #tpu.memory_space<vmem>>, %arg8: memref<64x128xbf16, #tpu.memory_space<vmem>>, %arg9: memref<2x!tpu.dma_semaphore, #tpu.memory_space<semaphore_mem>>) attributes {dimension_semantics = [#tpu.dimension_semantics<parallel>, #tpu.dimension_semantics<arbitrary>], iteration_bounds = array<i64: 2, 2>, scalar_prefetch = 0 : i64, scratch_operands = 3 : i64, tpu.core_type = #tpu.core_type<tc>, window_params = [{}, {pipeline_mode = #tpu.pipeline_mode<synchronous>, transform_indices = @transform_1, window_bounds = array<i64: 1408, 256>}, {pipeline_mode = #tpu.pipeline_mode<synchronous>, transform_indices = @transform_2, window_bounds = array<i64: 2, 1408, 128>}, {pipeline_mode = #tpu.pipeline_mode<synchronous>, transform_indices = @transform_3, window_bounds = array<i64: 3, 1, 128>}, {transform_indices = @transform_4, window_bounds = array<i64: 1, 32, 128>}]} {
    %c32_i32 = arith.constant 32 : i32
    %0 = arith.muli %arg1, %c32_i32 : i32
    %c2_i32 = arith.constant 2 : i32
    %c0_i32 = arith.constant 0 : i32
    %1 = arith.cmpi eq, %c2_i32, %c0_i32 : i32
    %c1_i32 = arith.constant 1 : i32
    %2 = arith.select %1, %c1_i32, %c2_i32 : i32
    %3 = arith.remsi %arg1, %2 : i32
    %c0_i32_0 = arith.constant 0 : i32
    %4 = arith.cmpi ne, %3, %c0_i32_0 : i32
    %c0_i32_1 = arith.constant 0 : i32
    %5 = arith.cmpi slt, %3, %c0_i32_1 : i32
    %c0_i32_2 = arith.constant 0 : i32
    %6 = arith.cmpi slt, %2, %c0_i32_2 : i32
    %7 = arith.xori %5, %6 : i1
    %8 = arith.andi %7, %4 : i1
    %9 = arith.addi %3, %2 : i32
    %10 = arith.select %8, %9, %3 : i32
    %c0_i32_3 = arith.constant 0 : i32
    %11 = arith.cmpi eq, %arg1, %c0_i32_3 : i32
    %12 = arith.extui %11 : i1 to i32
    %c0_i32_4 = arith.constant 0 : i32
    %13 = arith.cmpi ne, %12, %c0_i32_4 : i32
    scf.if %13 {
      %c32_i32_82 = arith.constant 32 : i32
      %130 = arith.muli %arg1, %c32_i32_82 : i32
      %131 = tpu.assume_multiple %130, 8 : i32
      %c0_i32_83 = arith.constant 0 : i32
      %132 = tpu.memref_slice %arg2[%arg0, %131, %c0_i32_83] : memref<2x96x128xbf16, #tpu.memory_space<any>> -> memref<1x64x128xbf16, #tpu.memory_space<any>>
      %133 = tpu.memref_squeeze %132 : memref<1x64x128xbf16, #tpu.memory_space<any>> -> memref<64x128xbf16, #tpu.memory_space<any>>
      %c0_i32_84 = arith.constant 0 : i32
      %c0_i32_85 = arith.constant 0 : i32
      %134 = tpu.memref_slice %arg7[%10, %c0_i32_84, %c0_i32_85] : memref<2x64x128xbf16, #tpu.memory_space<vmem>> -> memref<1x64x128xbf16, #tpu.memory_space<vmem>>
      %135 = tpu.memref_squeeze %134 : memref<1x64x128xbf16, #tpu.memory_space<vmem>> -> memref<64x128xbf16, #tpu.memory_space<vmem>>
      %136 = tpu.memref_slice %arg9[%10] : memref<2x!tpu.dma_semaphore, #tpu.memory_space<semaphore_mem>> -> memref<1x!tpu.dma_semaphore, #tpu.memory_space<semaphore_mem>>
      %137 = tpu.memref_squeeze %136 : memref<1x!tpu.dma_semaphore, #tpu.memory_space<semaphore_mem>> -> memref<!tpu.dma_semaphore, #tpu.memory_space<semaphore_mem>>
      tpu.enqueue_dma source(%133 : memref<64x128xbf16, #tpu.memory_space<any>>) target(%135 : memref<64x128xbf16, #tpu.memory_space<vmem>>) target_semaphore(%137 : memref<!tpu.dma_semaphore, #tpu.memory_space<semaphore_mem>>)
    } else {
    }
    %c32_i32_5 = arith.constant 32 : i32
    %14 = arith.muli %arg1, %c32_i32_5 : i32
    %15 = tpu.assume_multiple %14, 8 : i32
    %c0_i32_6 = arith.constant 0 : i32
    %16 = tpu.memref_slice %arg2[%arg0, %15, %c0_i32_6] : memref<2x96x128xbf16, #tpu.memory_space<any>> -> memref<1x64x128xbf16, #tpu.memory_space<any>>
    %17 = tpu.memref_squeeze %16 : memref<1x64x128xbf16, #tpu.memory_space<any>> -> memref<64x128xbf16, #tpu.memory_space<any>>
    %c0_i32_7 = arith.constant 0 : i32
    %c0_i32_8 = arith.constant 0 : i32
    %18 = tpu.memref_slice %arg7[%10, %c0_i32_7, %c0_i32_8] : memref<2x64x128xbf16, #tpu.memory_space<vmem>> -> memref<1x64x128xbf16, #tpu.memory_space<vmem>>
    %19 = tpu.memref_squeeze %18 : memref<1x64x128xbf16, #tpu.memory_space<vmem>> -> memref<64x128xbf16, #tpu.memory_space<vmem>>
    %20 = tpu.memref_slice %arg9[%10] : memref<2x!tpu.dma_semaphore, #tpu.memory_space<semaphore_mem>> -> memref<1x!tpu.dma_semaphore, #tpu.memory_space<semaphore_mem>>
    %21 = tpu.memref_squeeze %20 : memref<1x!tpu.dma_semaphore, #tpu.memory_space<semaphore_mem>> -> memref<!tpu.dma_semaphore, #tpu.memory_space<semaphore_mem>>
    tpu.wait_dma2 semaphore(%21 : memref<!tpu.dma_semaphore, #tpu.memory_space<semaphore_mem>>) src(%17 : memref<64x128xbf16, #tpu.memory_space<any>>) dst(%19 : memref<64x128xbf16, #tpu.memory_space<vmem>>)
    %c1_i32_9 = arith.constant 1 : i32
    %22 = arith.addi %arg1, %c1_i32_9 : i32
    %c2_i32_10 = arith.constant 2 : i32
    %23 = arith.cmpi slt, %22, %c2_i32_10 : i32
    %24 = arith.extui %23 : i1 to i32
    %c0_i32_11 = arith.constant 0 : i32
    %25 = arith.cmpi ne, %24, %c0_i32_11 : i32
    scf.if %25 {
      %c1_i32_82 = arith.constant 1 : i32
      %130 = arith.addi %arg1, %c1_i32_82 : i32
      %c1_i32_83 = arith.constant 1 : i32
      %131 = arith.subi %c1_i32_83, %10 : i32
      %c32_i32_84 = arith.constant 32 : i32
      %132 = arith.muli %130, %c32_i32_84 : i32
      %133 = tpu.assume_multiple %132, 8 : i32
      %c0_i32_85 = arith.constant 0 : i32
      %134 = tpu.memref_slice %arg2[%arg0, %133, %c0_i32_85] : memref<2x96x128xbf16, #tpu.memory_space<any>> -> memref<1x64x128xbf16, #tpu.memory_space<any>>
      %135 = tpu.memref_squeeze %134 : memref<1x64x128xbf16, #tpu.memory_space<any>> -> memref<64x128xbf16, #tpu.memory_space<any>>
      %c0_i32_86 = arith.constant 0 : i32
      %c0_i32_87 = arith.constant 0 : i32
      %136 = tpu.memref_slice %arg7[%131, %c0_i32_86, %c0_i32_87] : memref<2x64x128xbf16, #tpu.memory_space<vmem>> -> memref<1x64x128xbf16, #tpu.memory_space<vmem>>
      %137 = tpu.memref_squeeze %136 : memref<1x64x128xbf16, #tpu.memory_space<vmem>> -> memref<64x128xbf16, #tpu.memory_space<vmem>>
      %138 = tpu.memref_slice %arg9[%131] : memref<2x!tpu.dma_semaphore, #tpu.memory_space<semaphore_mem>> -> memref<1x!tpu.dma_semaphore, #tpu.memory_space<semaphore_mem>>
      %139 = tpu.memref_squeeze %138 : memref<1x!tpu.dma_semaphore, #tpu.memory_space<semaphore_mem>> -> memref<!tpu.dma_semaphore, #tpu.memory_space<semaphore_mem>>
      tpu.enqueue_dma source(%135 : memref<64x128xbf16, #tpu.memory_space<any>>) target(%137 : memref<64x128xbf16, #tpu.memory_space<vmem>>) target_semaphore(%139 : memref<!tpu.dma_semaphore, #tpu.memory_space<semaphore_mem>>)
    } else {
    }
    %26 = arith.index_cast %10 : i32 to index
    %c0 = arith.constant 0 : index
    %c0_12 = arith.constant 0 : index
    %27 = vector.load %arg7[%26, %c0, %c0_12] : memref<2x64x128xbf16, #tpu.memory_space<vmem>>, vector<1x64x128xbf16>
    %28 = vector.shape_cast %27 : vector<1x64x128xbf16> to vector<64x128xbf16>
    %29 = vector.extract_strided_slice %28 {offsets = [0, 0], sizes = [54, 128], strides = [1, 1]} : vector<64x128xbf16> to vector<54x128xbf16>
    %30 = vector.extract_strided_slice %28 {offsets = [1, 0], sizes = [54, 128], strides = [1, 1]} : vector<64x128xbf16> to vector<54x128xbf16>
    %31 = vector.extract_strided_slice %28 {offsets = [2, 0], sizes = [54, 128], strides = [1, 1]} : vector<64x128xbf16> to vector<54x128xbf16>
    %32 = vector.extract_strided_slice %28 {offsets = [3, 0], sizes = [54, 128], strides = [1, 1]} : vector<64x128xbf16> to vector<54x128xbf16>
    %33 = vector.extract_strided_slice %28 {offsets = [4, 0], sizes = [54, 128], strides = [1, 1]} : vector<64x128xbf16> to vector<54x128xbf16>
    %34 = vector.extract_strided_slice %28 {offsets = [5, 0], sizes = [54, 128], strides = [1, 1]} : vector<64x128xbf16> to vector<54x128xbf16>
    %35 = vector.extract_strided_slice %28 {offsets = [6, 0], sizes = [54, 128], strides = [1, 1]} : vector<64x128xbf16> to vector<54x128xbf16>
    %36 = vector.extract_strided_slice %28 {offsets = [7, 0], sizes = [54, 128], strides = [1, 1]} : vector<64x128xbf16> to vector<54x128xbf16>
    %37 = vector.extract_strided_slice %28 {offsets = [8, 0], sizes = [54, 128], strides = [1, 1]} : vector<64x128xbf16> to vector<54x128xbf16>
    %38 = vector.extract_strided_slice %28 {offsets = [9, 0], sizes = [54, 128], strides = [1, 1]} : vector<64x128xbf16> to vector<54x128xbf16>
    %39 = vector.extract_strided_slice %28 {offsets = [10, 0], sizes = [54, 128], strides = [1, 1]} : vector<64x128xbf16> to vector<54x128xbf16>
    %40 = tpu.concatenate %29, %30, %31, %32, %33, %34, %35, %36, %37, %38, %39 in 1 : vector<54x128xbf16>, vector<54x128xbf16>, vector<54x128xbf16>, vector<54x128xbf16>, vector<54x128xbf16>, vector<54x128xbf16>, vector<54x128xbf16>, vector<54x128xbf16>, vector<54x128xbf16>, vector<54x128xbf16>, vector<54x128xbf16> -> vector<54x1408xbf16>
    %c0_13 = arith.constant 0 : index
    %c0_14 = arith.constant 0 : index
    %41 = vector.load %arg3[%c0_13, %c0_14] : memref<1408x256xbf16, #tpu.memory_space<vmem>>, vector<1408x256xbf16>
    %cst = arith.constant dense<0.000000e+00> : vector<54x256xf32>
    %42 = tpu.matmul %40, %41, %cst {dimension_numbers = #tpu.dot_dimension_numbers<[1], [0], [0], [1], [0, 0, 1, 1], [], []>} : vector<54x1408xbf16>, vector<1408x256xbf16>, vector<54x256xf32> -> vector<54x256xf32>
    %43 = vector.extract_strided_slice %42 {offsets = [11, 128], sizes = [32, 128], strides = [1, 1]} : vector<54x256xf32> to vector<32x128xf32>
    %44 = vector.extract_strided_slice %42 {offsets = [0, 0], sizes = [54, 128], strides = [1, 1]} : vector<54x256xf32> to vector<54x128xf32>
    %c0_15 = arith.constant 0 : index
    %c0_16 = arith.constant 0 : index
    %c0_17 = arith.constant 0 : index
    %45 = vector.load %arg5[%c0_15, %c0_16, %c0_17] : memref<3x1x128xf32, #tpu.memory_space<vmem>>, vector<1x1x128xf32>
    %46 = vector.shape_cast %45 : vector<1x1x128xf32> to vector<1x128xf32>
    %47 = vector.broadcast %46 : vector<1x128xf32> to vector<54x128xf32>
    %48 = arith.addf %44, %47 : vector<54x128xf32>
    %49 = tpu.iota {dimensions = array<i32: 0>} : vector<54x1xi32>
    %c16_i32 = arith.constant 16 : i32
    %50 = arith.subi %0, %c16_i32 : i32
    %c5_i32 = arith.constant 5 : i32
    %51 = arith.addi %50, %c5_i32 : i32
    %52 = vector.broadcast %51 : i32 to vector<54x1xi32>
    %53 = arith.addi %49, %52 : vector<54x1xi32>
    %c0_i32_18 = arith.constant 0 : i32
    %54 = vector.broadcast %c0_i32_18 : i32 to vector<54x1xi32>
    %55 = arith.cmpi sge, %53, %54 : vector<54x1xi32>
    %c64_i32 = arith.constant 64 : i32
    %56 = vector.broadcast %c64_i32 : i32 to vector<54x1xi32>
    %57 = arith.cmpi slt, %53, %56 : vector<54x1xi32>
    %58 = arith.andi %55, %57 : vector<54x1xi1>
    %cst_19 = arith.constant 0.000000e+00 : f32
    %59 = vector.broadcast %cst_19 : f32 to vector<54x128xf32>
    %60 = arith.maximumf %48, %59 : vector<54x128xf32>
    %cst_20 = arith.constant 0.000000e+00 : f32
    %61 = vector.shape_cast %58 : vector<54x1xi1> to vector<54x1xi1>
    %62 = vector.broadcast %61 : vector<54x1xi1> to vector<54x128xi1>
    %63 = vector.broadcast %cst_20 : f32 to vector<54x128xf32>
    %64 = arith.select %62, %60, %63 : vector<54x128xi1>, vector<54x128xf32>
    %65 = arith.truncf %64 : vector<54x128xf32> to vector<54x128xbf16>
    %c0_21 = arith.constant 0 : index
    %c0_22 = arith.constant 0 : index
    %66 = vector.load %arg8[%c0_21, %c0_22] : memref<64x128xbf16, #tpu.memory_space<vmem>>, vector<54x128xbf16>
    tpu.vector_store %arg8[%c0_21, %c0_22], %65 {strides = array<i32>} : memref<64x128xbf16, #tpu.memory_space<vmem>>, vector<54x128xbf16>,
    %c0_23 = arith.constant 0 : index
    %c0_24 = arith.constant 0 : index
    %67 = vector.load %arg8[%c0_23, %c0_24] : memref<64x128xbf16, #tpu.memory_space<vmem>>, vector<44x128xbf16>
    %c1 = arith.constant 1 : index
    %c0_25 = arith.constant 0 : index
    %68 = vector.load %arg8[%c1, %c0_25] : memref<64x128xbf16, #tpu.memory_space<vmem>>, vector<44x128xbf16>
    %c2 = arith.constant 2 : index
    %c0_26 = arith.constant 0 : index
    %69 = vector.load %arg8[%c2, %c0_26] : memref<64x128xbf16, #tpu.memory_space<vmem>>, vector<44x128xbf16>
    %c3 = arith.constant 3 : index
    %c0_27 = arith.constant 0 : index
    %70 = vector.load %arg8[%c3, %c0_27] : memref<64x128xbf16, #tpu.memory_space<vmem>>, vector<44x128xbf16>
    %c4 = arith.constant 4 : index
    %c0_28 = arith.constant 0 : index
    %71 = vector.load %arg8[%c4, %c0_28] : memref<64x128xbf16, #tpu.memory_space<vmem>>, vector<44x128xbf16>
    %c5 = arith.constant 5 : index
    %c0_29 = arith.constant 0 : index
    %72 = vector.load %arg8[%c5, %c0_29] : memref<64x128xbf16, #tpu.memory_space<vmem>>, vector<44x128xbf16>
    %c6 = arith.constant 6 : index
    %c0_30 = arith.constant 0 : index
    %73 = vector.load %arg8[%c6, %c0_30] : memref<64x128xbf16, #tpu.memory_space<vmem>>, vector<44x128xbf16>
    %c7 = arith.constant 7 : index
    %c0_31 = arith.constant 0 : index
    %74 = vector.load %arg8[%c7, %c0_31] : memref<64x128xbf16, #tpu.memory_space<vmem>>, vector<44x128xbf16>
    %c8 = arith.constant 8 : index
    %c0_32 = arith.constant 0 : index
    %75 = vector.load %arg8[%c8, %c0_32] : memref<64x128xbf16, #tpu.memory_space<vmem>>, vector<44x128xbf16>
    %c9 = arith.constant 9 : index
    %c0_33 = arith.constant 0 : index
    %76 = vector.load %arg8[%c9, %c0_33] : memref<64x128xbf16, #tpu.memory_space<vmem>>, vector<44x128xbf16>
    %c10 = arith.constant 10 : index
    %c0_34 = arith.constant 0 : index
    %77 = vector.load %arg8[%c10, %c0_34] : memref<64x128xbf16, #tpu.memory_space<vmem>>, vector<44x128xbf16>
    %78 = tpu.concatenate %67, %68, %69, %70, %71, %72, %73, %74, %75, %76, %77 in 1 : vector<44x128xbf16>, vector<44x128xbf16>, vector<44x128xbf16>, vector<44x128xbf16>, vector<44x128xbf16>, vector<44x128xbf16>, vector<44x128xbf16>, vector<44x128xbf16>, vector<44x128xbf16>, vector<44x128xbf16>, vector<44x128xbf16> -> vector<44x1408xbf16>
    %c0_35 = arith.constant 0 : index
    %c0_36 = arith.constant 0 : index
    %c0_37 = arith.constant 0 : index
    %79 = vector.load %arg4[%c0_35, %c0_36, %c0_37] : memref<2x1408x128xbf16, #tpu.memory_space<vmem>>, vector<1x1408x128xbf16>
    %80 = vector.shape_cast %79 : vector<1x1408x128xbf16> to vector<1408x128xbf16>
    %cst_38 = arith.constant dense<0.000000e+00> : vector<44x128xf32>
    %81 = tpu.matmul %78, %80, %cst_38 {dimension_numbers = #tpu.dot_dimension_numbers<[1], [0], [0], [1], [0, 0, 1, 1], [], []>} : vector<44x1408xbf16>, vector<1408x128xbf16>, vector<44x128xf32> -> vector<44x128xf32>
    %c1_39 = arith.constant 1 : index
    %c0_40 = arith.constant 0 : index
    %c0_41 = arith.constant 0 : index
    %82 = vector.load %arg5[%c1_39, %c0_40, %c0_41] : memref<3x1x128xf32, #tpu.memory_space<vmem>>, vector<1x1x128xf32>
    %83 = vector.shape_cast %82 : vector<1x1x128xf32> to vector<1x128xf32>
    %84 = vector.broadcast %83 : vector<1x128xf32> to vector<44x128xf32>
    %85 = arith.addf %81, %84 : vector<44x128xf32>
    %86 = vector.extract_strided_slice %49 {offsets = [0, 0], sizes = [44, 1], strides = [1, 1]} : vector<54x1xi32> to vector<44x1xi32>
    %c16_i32_42 = arith.constant 16 : i32
    %87 = arith.subi %0, %c16_i32_42 : i32
    %c10_i32 = arith.constant 10 : i32
    %88 = arith.addi %87, %c10_i32 : i32
    %89 = vector.broadcast %88 : i32 to vector<44x1xi32>
    %90 = arith.addi %86, %89 : vector<44x1xi32>
    %c0_i32_43 = arith.constant 0 : i32
    %91 = vector.broadcast %c0_i32_43 : i32 to vector<44x1xi32>
    %92 = arith.cmpi sge, %90, %91 : vector<44x1xi32>
    %c64_i32_44 = arith.constant 64 : i32
    %93 = vector.broadcast %c64_i32_44 : i32 to vector<44x1xi32>
    %94 = arith.cmpi slt, %90, %93 : vector<44x1xi32>
    %95 = arith.andi %92, %94 : vector<44x1xi1>
    %cst_45 = arith.constant 0.000000e+00 : f32
    %96 = vector.broadcast %cst_45 : f32 to vector<44x128xf32>
    %97 = arith.maximumf %85, %96 : vector<44x128xf32>
    %cst_46 = arith.constant 0.000000e+00 : f32
    %98 = vector.shape_cast %95 : vector<44x1xi1> to vector<44x1xi1>
    %99 = vector.broadcast %98 : vector<44x1xi1> to vector<44x128xi1>
    %100 = vector.broadcast %cst_46 : f32 to vector<44x128xf32>
    %101 = arith.select %99, %97, %100 : vector<44x128xi1>, vector<44x128xf32>
    %102 = arith.truncf %101 : vector<44x128xf32> to vector<44x128xbf16>
    %c0_47 = arith.constant 0 : index
    %c0_48 = arith.constant 0 : index
    %103 = vector.load %arg8[%c0_47, %c0_48] : memref<64x128xbf16, #tpu.memory_space<vmem>>, vector<44x128xbf16>
    tpu.vector_store %arg8[%c0_47, %c0_48], %102 {strides = array<i32>} : memref<64x128xbf16, #tpu.memory_space<vmem>>, vector<44x128xbf16>,
    %c0_49 = arith.constant 0 : index
    %c0_50 = arith.constant 0 : index
    %104 = vector.load %arg8[%c0_49, %c0_50] : memref<64x128xbf16, #tpu.memory_space<vmem>>, vector<34x128xbf16>
    %c1_51 = arith.constant 1 : index
    %c0_52 = arith.constant 0 : index
    %105 = vector.load %arg8[%c1_51, %c0_52] : memref<64x128xbf16, #tpu.memory_space<vmem>>, vector<34x128xbf16>
    %c2_53 = arith.constant 2 : index
    %c0_54 = arith.constant 0 : index
    %106 = vector.load %arg8[%c2_53, %c0_54] : memref<64x128xbf16, #tpu.memory_space<vmem>>, vector<34x128xbf16>
    %c3_55 = arith.constant 3 : index
    %c0_56 = arith.constant 0 : index
    %107 = vector.load %arg8[%c3_55, %c0_56] : memref<64x128xbf16, #tpu.memory_space<vmem>>, vector<34x128xbf16>
    %c4_57 = arith.constant 4 : index
    %c0_58 = arith.constant 0 : index
    %108 = vector.load %arg8[%c4_57, %c0_58] : memref<64x128xbf16, #tpu.memory_space<vmem>>, vector<34x128xbf16>
    %c5_59 = arith.constant 5 : index
    %c0_60 = arith.constant 0 : index
    %109 = vector.load %arg8[%c5_59, %c0_60] : memref<64x128xbf16, #tpu.memory_space<vmem>>, vector<34x128xbf16>
    %c6_61 = arith.constant 6 : index
    %c0_62 = arith.constant 0 : index
    %110 = vector.load %arg8[%c6_61, %c0_62] : memref<64x128xbf16, #tpu.memory_space<vmem>>, vector<34x128xbf16>
    %c7_63 = arith.constant 7 : index
    %c0_64 = arith.constant 0 : index
    %111 = vector.load %arg8[%c7_63, %c0_64] : memref<64x128xbf16, #tpu.memory_space<vmem>>, vector<34x128xbf16>
    %c8_65 = arith.constant 8 : index
    %c0_66 = arith.constant 0 : index
    %112 = vector.load %arg8[%c8_65, %c0_66] : memref<64x128xbf16, #tpu.memory_space<vmem>>, vector<34x128xbf16>
    %c9_67 = arith.constant 9 : index
    %c0_68 = arith.constant 0 : index
    %113 = vector.load %arg8[%c9_67, %c0_68] : memref<64x128xbf16, #tpu.memory_space<vmem>>, vector<34x128xbf16>
    %c10_69 = arith.constant 10 : index
    %c0_70 = arith.constant 0 : index
    %114 = vector.load %arg8[%c10_69, %c0_70] : memref<64x128xbf16, #tpu.memory_space<vmem>>, vector<34x128xbf16>
    %115 = tpu.concatenate %104, %105, %106, %107, %108, %109, %110, %111, %112, %113, %114 in 1 : vector<34x128xbf16>, vector<34x128xbf16>, vector<34x128xbf16>, vector<34x128xbf16>, vector<34x128xbf16>, vector<34x128xbf16>, vector<34x128xbf16>, vector<34x128xbf16>, vector<34x128xbf16>, vector<34x128xbf16>, vector<34x128xbf16> -> vector<34x1408xbf16>
    %c1_71 = arith.constant 1 : index
    %c0_72 = arith.constant 0 : index
    %c0_73 = arith.constant 0 : index
    %116 = vector.load %arg4[%c1_71, %c0_72, %c0_73] : memref<2x1408x128xbf16, #tpu.memory_space<vmem>>, vector<1x1408x128xbf16>
    %117 = vector.shape_cast %116 : vector<1x1408x128xbf16> to vector<1408x128xbf16>
    %cst_74 = arith.constant dense<0.000000e+00> : vector<34x128xf32>
    %118 = tpu.matmul %115, %117, %cst_74 {dimension_numbers = #tpu.dot_dimension_numbers<[1], [0], [0], [1], [0, 0, 1, 1], [], []>} : vector<34x1408xbf16>, vector<1408x128xbf16>, vector<34x128xf32> -> vector<34x128xf32>
    %c2_75 = arith.constant 2 : index
    %c0_76 = arith.constant 0 : index
    %c0_77 = arith.constant 0 : index
    %119 = vector.load %arg5[%c2_75, %c0_76, %c0_77] : memref<3x1x128xf32, #tpu.memory_space<vmem>>, vector<1x1x128xf32>
    %120 = vector.shape_cast %119 : vector<1x1x128xf32> to vector<1x128xf32>
    %121 = vector.broadcast %120 : vector<1x128xf32> to vector<34x128xf32>
    %122 = arith.addf %118, %121 : vector<34x128xf32>
    %123 = vector.extract_strided_slice %122 {offsets = [1, 0], sizes = [32, 128], strides = [1, 1]} : vector<34x128xf32> to vector<32x128xf32>
    %124 = arith.addf %123, %43 : vector<32x128xf32>
    %cst_78 = arith.constant 0.000000e+00 : f32
    %125 = vector.broadcast %cst_78 : f32 to vector<32x128xf32>
    %126 = arith.maximumf %124, %125 : vector<32x128xf32>
    %c0_79 = arith.constant 0 : index
    %c0_80 = arith.constant 0 : index
    %c0_81 = arith.constant 0 : index
    %127 = vector.load %arg6[%c0_79, %c0_80, %c0_81] : memref<1x32x128xf32, #tpu.memory_space<vmem>>, vector<1x32x128xf32>
    %128 = vector.shape_cast %127 : vector<1x32x128xf32> to vector<32x128xf32>
    %129 = vector.shape_cast %126 : vector<32x128xf32> to vector<1x32x128xf32>
    tpu.vector_store %arg6[%c0_79, %c0_80, %c0_81], %129 {strides = array<i32>} : memref<1x32x128xf32, #tpu.memory_space<vmem>>, vector<1x32x128xf32>,
    return
  }
  func.func @transform_1(%arg0: i32, %arg1: i32) -> (i32, i32) {
    %c0_i32 = arith.constant 0 : i32
    %c0_i32_0 = arith.constant 0 : i32
    %c0_i32_1 = arith.constant 0 : i32
    return %c0_i32, %c0_i32_0 : i32, i32
  }
  func.func @transform_2(%arg0: i32, %arg1: i32) -> (i32, i32, i32) {
    %c0_i32 = arith.constant 0 : i32
    %c0_i32_0 = arith.constant 0 : i32
    %c0_i32_1 = arith.constant 0 : i32
    %c0_i32_2 = arith.constant 0 : i32
    return %c0_i32, %c0_i32_0, %c0_i32_1 : i32, i32, i32
  }
  func.func @transform_3(%arg0: i32, %arg1: i32) -> (i32, i32, i32) {
    %c0_i32 = arith.constant 0 : i32
    %c0_i32_0 = arith.constant 0 : i32
    %c0_i32_1 = arith.constant 0 : i32
    %c0_i32_2 = arith.constant 0 : i32
    return %c0_i32, %c0_i32_0, %c0_i32_1 : i32, i32, i32
  }
  func.func @transform_4(%arg0: i32, %arg1: i32) -> (i32, i32, i32) {
    %c0_i32 = arith.constant 0 : i32
    %c0_i32_0 = arith.constant 0 : i32
    return %arg0, %arg1, %c0_i32 : i32, i32, i32
  }
}

</mosaic_0001>

<llo_original>
// kernel: quartznet_block_forward.1
$region0: #{quartznet_block_forward.1}
  #allocation0 [shape = 'u32[]', space=smem, size = 0x4, offset = 0x4, fixed_abs, tag = 'smem constant byte address 0x4 - core index']
  #allocation1 [shape = 'u32[144,128]{1,0:T(1,128)}', space=vmem, size = 0x12000, scoped, tag = 'internal scratch']
  #allocation2 [shape = 'bf16[2,64,128]{2,1,0:T(8,128)(2,1)}', space=vmem, size = 0x8000, scoped, tag = 'scratch operand']
  #allocation3 [shape = 'bf16[64,128]{1,0:T(8,128)(2,1)}', space=vmem, size = 0x4000, scoped, tag = 'scratch operand']
  #allocation4 [shape = 's32[2]{0}', space=sflag, size = 0x8, scoped, tag = 'scratch operand']
  #allocation11 [shape = 's32[]', space=sflag, size = 0x4, offset = 0, fixed_abs, tag = 'sflag constant byte address 0x0 - dummy sync flag']
  #allocation12 [shape = 's32[]', space=sflag, size = 0x4, offset = 0, fixed_abs, tag = 'sflag constant byte address 0x0 - dummy sync flag']
  %s0 = inlined_call_operand.vmem [shape: bf16[2,96,128], index: 0, kind: input, shape index: {}]
  %s1 = inlined_call_operand.hbm [shape: bf16[1408,256], index: 1, kind: input, shape index: {}]
  %s2 = inlined_call_operand.hbm [shape: bf16[2,1408,128], index: 2, kind: input, shape index: {}]
  %s3 = inlined_call_operand.vmem [shape: f32[3,1,128], index: 3, kind: input, shape index: {}]
  %s4 = inlined_call_operand.hbm [shape: f32[2,64,128], index: 4, kind: output, shape index: {}]
  %s5 = sld [smem:[#allocation0]]
  $region129: #{quartznet_block_forward.1} parent=0
    _
  %s7 = ssub.s32 1, %s5
  %s8 = scalar_select 0, %s7, %s5
  $region1: #{quartznet_block_forward.1} parent=0
    #allocation5 [shape = 'u8[720896]{0}', space=vmem, size = 0xb0000, scoped, tag = 'input window, operand 1, single buffered']
    #allocation6 [shape = 's32[2]{0}', space=sflag, size = 0x8, scoped, tag = 'scoped memory for quartznet_block_forward.1']
    #allocation7 [shape = 's32[2]{0}', space=sflag, size = 0x8, scoped, tag = 'scoped memory for quartznet_block_forward.1']
    #allocation8 [shape = 'u8[720896]{0}', space=vmem, size = 0xb0000, scoped, tag = 'input window, operand 2, single buffered']
    #allocation9 [shape = 's32[1]{0}', space=sflag, size = 0x4, scoped, tag = 'scoped memory for quartznet_block_forward.1']
    #allocation10 [shape = 'u8[32768]{0}', space=vmem, size = 0x8000, scoped, tag = 'output window, operand 0']
    %9 = vsyncpa [#allocation6], 0
    %10 = vsyncpa [#allocation9], 0
    %11 = vsyncpa [#allocation7], 0
    %s12 = scalar_lea.sflag [#allocation7], 1
    %13 = vsyncpa %s12, 0
    loop: start=0, step=1, limit=6
    $region2: #{quartznet_block_forward.1} parent=1 // loop_pre_header
      _
    $region3: #{quartznet_block_forward.1} parent=1 // loop_header
      %s15 = sphi 0, %s19
      %p16 = scmp.ge.s32.totalorder %s15, 6
      %s22 = sphi 0, %s34
      %s23 = sphi 0, %s30
      %s24 = sphi 0, %s22
      %s25 = sphi 0, %s23
      %s26 = sphi 0, %s24
      %s27 = sphi 0, %s25
      %s35 = sphi 0, %s35
      %s37 = sphi 0, %s35
      %s38 = sphi 0, %s37
      %s52 = sphi 0, %s38
      %s56 = sphi 0, %s56
      %s58 = sphi 0, %s56
      %s59 = sphi 0, %s58
      %s73 = sphi 0, %s59
      %s77 = sphi 0, %s77
      %s79 = sphi 0, %s77
      %s80 = sphi 0, %s79
      %s94 = sphi 0, %s80
      %s102 = sphi 0, %s104
      %s105 = sphi 0, %s102
      %s106 = sphi 0, %s105
      %s122 = sphi 0, %s106
    $region4: #{quartznet_block_forward.1} parent=1 // loop_header_branch
      %18 = sbr.rel (%p16) target = $region8
    $region5: #{quartznet_block_forward.1} parent=1 // loop_body
      %s20 = ssub.s32 %s15, 1
      %s21 = ssub.s32 %s15, 2
      %s28 = sadd.s32 1, %s23
      %p29 = scmp.ge.s32.totalorder %s28, 2
      %s30 = scalar_select %p29, 0, %s28
      %s31 = sadd.s32 1, %s22
      %s32 = scalar_select %p29, %s31, %s22
      %p33 = scmp.ge.s32.totalorder %s32, 2
      %s34 = scalar_select %p33, 0, %s32
      %s36 = sadd.s32 %s35, 1
      %p39 = scmp.eq.s32.totalorder %s15, 3
      %p40 = scmp.ne.s32.totalorder %s35, %s37
      %p41 = scmp.eq.s32.totalorder %s15, 0
      %p42 = por %p40, %p41
      %p43 = scmp.ne.s32.totalorder %s35, %s37
      %p44 = scmp.eq.s32.totalorder %s20, 3
      %p45 = por %p43, %p44
      %p46 = scmp.ne.s32.totalorder %s37, %s38
      %p47 = scmp.eq.s32.totalorder %s20, 0
      %p48 = por %p46, %p47
      %p49 = scmp.ne.s32.totalorder %s37, %s38
      %p50 = scmp.eq.s32.totalorder %s21, 3
      %p51 = por %p49, %p50
      %p53 = scmp.ne.s32.totalorder %s38, %s52
      %p54 = scmp.eq.s32.totalorder %s21, 0
      %p55 = por %p53, %p54
      %s57 = sadd.s32 %s56, 1
      %p60 = scmp.eq.s32.totalorder %s15, 3
      %p61 = scmp.ne.s32.totalorder %s56, %s58
      %p62 = scmp.eq.s32.totalorder %s15, 0
      %p63 = por %p61, %p62
      %p64 = scmp.ne.s32.totalorder %s56, %s58
      %p65 = scmp.eq.s32.totalorder %s20, 3
      %p66 = por %p64, %p65
      %p67 = scmp.ne.s32.totalorder %s58, %s59
      %p68 = scmp.eq.s32.totalorder %s20, 0
      %p69 = por %p67, %p68
      %p70 = scmp.ne.s32.totalorder %s58, %s59
      %p71 = scmp.eq.s32.totalorder %s21, 3
      %p72 = por %p70, %p71
      %p74 = scmp.ne.s32.totalorder %s59, %s73
      %p75 = scmp.eq.s32.totalorder %s21, 0
      %p76 = por %p74, %p75
      %s78 = sadd.s32 %s77, 1
      %p81 = scmp.eq.s32.totalorder %s15, 3
      %p82 = scmp.ne.s32.totalorder %s77, %s79
      %p83 = scmp.eq.s32.totalorder %s15, 0
      %p84 = por %p82, %p83
      %p85 = scmp.ne.s32.totalorder %s77, %s79
      %p86 = scmp.eq.s32.totalorder %s20, 3
      %p87 = por %p85, %p86
      %p88 = scmp.ne.s32.totalorder %s79, %s80
      %p89 = scmp.eq.s32.totalorder %s20, 0
      %p90 = por %p88, %p89
      %p91 = scmp.ne.s32.totalorder %s79, %s80
      %p92 = scmp.eq.s32.totalorder %s21, 3
      %p93 = por %p91, %p92
      %p95 = scmp.ne.s32.totalorder %s80, %s94
      %p96 = scmp.eq.s32.totalorder %s21, 0
      %p97 = por %p95, %p96
      %s98 = ssub.s32 %s22, %s34
      %s99 = ssub.s32 %s23, %s30
      %s100 = sor.u32 %s98, %s99
      %p101 = scmp.eq.s32.totalorder %s100, 0
      %s103 = sadd.s32 %s102, 1
      %s104 = scalar_select %p101, %s102, %s103
      %p107 = pneg %p101
      %p108 = scmp.eq.s32.totalorder %s15, 3
      %p109 = por %p107, %p108
      %p110 = scmp.ne.s32.totalorder %s102, %s105
      %p111 = scmp.eq.s32.totalorder %s15, 0
      %p112 = por %p110, %p111
      %p113 = scmp.ne.s32.totalorder %s102, %s105
      %p114 = scmp.eq.s32.totalorder %s20, 3
      %p115 = por %p113, %p114
      %p116 = scmp.ne.s32.totalorder %s105, %s106
      %p117 = scmp.eq.s32.totalorder %s20, 0
      %p118 = por %p116, %p117
      %p119 = scmp.ne.s32.totalorder %s105, %s106
      %p120 = scmp.eq.s32.totalorder %s21, 3
      %p121 = por %p119, %p120
      %p123 = scmp.ne.s32.totalorder %s106, %s122
      %p124 = scmp.eq.s32.totalorder %s21, 0
      %p125 = por %p123, %p124
      %p126 = scmp.le.s32.totalorder 1, %s15
      %p127 = scmp.lt.s32.totalorder %s15, 5
      %p128 = pnand %p126, %p127
      %p129 = pneg %p128
      // Predicated region
      $region9: #{quartznet_block_forward.1} parent=5 // pred_check
        _
      $region10: #{quartznet_block_forward.1} parent=5 // pred_check_branch
        %131 = sbr.rel (%p128) target = $region12
      $region11: #{quartznet_block_forward.1} parent=5 // pred_region
        %s132 = ssub.s32 %s15, 1
        // Predicated region
        $region13: #{quartznet_block_forward.1} parent=11 // pred_check
          %p133 = pneg %p48
        $region14: #{quartznet_block_forward.1} parent=11 // pred_check_branch
          %135 = sbr.rel (%p133) target = $region16
        $region15: #{quartznet_block_forward.1} parent=11 // pred_region
          %s137 = ssub.s32 22528, 22528
          %138 = vsyncadd [#allocation6], %s137
          %s139 = sshll.u32 [#allocation5], 4
          %s140 = int_to_ptr.vmem [resolvable:$true] %s139
          %145 = dma.hbm_to_vmem [thread:$0]  %s1, 22528, %s140, [#allocation6], 128, 128, 8
        $region16: #{quartznet_block_forward.1} parent=11 // pred_fallthru
          _
        // Predicated region
        $region17: #{quartznet_block_forward.1} parent=11 // pred_check
          %p146 = pneg %p69
        $region18: #{quartznet_block_forward.1} parent=11 // pred_check_branch
          %148 = sbr.rel (%p146) target = $region20
        $region19: #{quartznet_block_forward.1} parent=11 // pred_region
          %s150 = ssub.s32 22528, 22528
          %151 = vsyncadd [#allocation9], %s150
          %s152 = sshll.u32 [#allocation8], 4
          %s153 = int_to_ptr.vmem [resolvable:$true] %s152
          %158 = dma.hbm_to_vmem [thread:$0]  %s2, 22528, %s153, [#allocation9], 64, 64, 4
        $region20: #{quartznet_block_forward.1} parent=11 // pred_fallthru
          _
        // Predicated region
        $region21: #{quartznet_block_forward.1} parent=11 // pred_check
          %p159 = pneg %p90
        $region22: #{quartznet_block_forward.1} parent=11 // pred_check_branch
          %161 = sbr.rel (%p159) target = $region24
        $region23: #{quartznet_block_forward.1} parent=11 // pred_region
          _
        $region24: #{quartznet_block_forward.1} parent=11 // pred_fallthru
          _
      $region12: #{quartznet_block_forward.1} parent=5 // pred_fallthru
        _
      %p162 = scmp.lt.s32.totalorder %s15, 4
      // Predicated region
      $region25: #{quartznet_block_forward.1} parent=5 // pred_check
        %p163 = pneg %p162
      $region26: #{quartznet_block_forward.1} parent=5 // pred_check_branch
        %165 = sbr.rel (%p163) target = $region28
      $region27: #{quartznet_block_forward.1} parent=5 // pred_region
        _
      $region28: #{quartznet_block_forward.1} parent=5 // pred_fallthru
        _
      %p166 = scmp.le.s32.totalorder 1, %s15
      %p167 = scmp.lt.s32.totalorder %s15, 5
      %p168 = pnand %p166, %p167
      %p169 = pneg %p168
      // Predicated region
      $region29: #{quartznet_block_forward.1} parent=5 // pred_check
        _
      $region30: #{quartznet_block_forward.1} parent=5 // pred_check_branch
        %171 = sbr.rel (%p168) target = $region32
      $region31: #{quartznet_block_forward.1} parent=5 // pred_region
        %s172 = ssub.s32 %s15, 1
        // Predicated region
        $region33: #{quartznet_block_forward.1} parent=31 // pred_check
          %p173 = pneg %p48
        $region34: #{quartznet_block_forward.1} parent=31 // pred_check_branch
          %175 = sbr.rel (%p173) target = $region36
        $region35: #{quartznet_block_forward.1} parent=31 // pred_region
          %176 = dma.done [#allocation6], 22528
        $region36: #{quartznet_block_forward.1} parent=31 // pred_fallthru
          _
        // Predicated region
        $region37: #{quartznet_block_forward.1} parent=31 // pred_check
          %p177 = pneg %p69
        $region38: #{quartznet_block_forward.1} parent=31 // pred_check_branch
          %179 = sbr.rel (%p177) target = $region40
        $region39: #{quartznet_block_forward.1} parent=31 // pred_region
          %180 = dma.done [#allocation9], 22528
        $region40: #{quartznet_block_forward.1} parent=31 // pred_fallthru
          _
        %p181 = pneg %p48
        %p182 = pneg %p45
        %p183 = pneg %p69
        %p184 = pneg %p66
        %p185 = pneg %p90
        %p186 = pneg %p87
        %p187 = pneg %p118
        %p188 = pneg %p115
        %s189 = sand.u32 %s105, 1
        %s190 = scalar_lea.sflag [#allocation7], %s189
        %s191 = sand.u32 %s105, 1
        %s192 = smul.addr %s191, 32
        %s193 = scalar_lea.vmem [#allocation10], %s192
        %s194 = smul.u32 4, %s25
        %s196 = smul.u32 %s25, 32
        %p197 = scmp.lt.s32.totalorder %s25, 0
        %s198 = ssub.s32 0, %s25
        %s199 = scalar_select %p197, %s198, %s25
        %s200 = sand.u32 %s199, 1
        %s201 = ssub.s32 0, %s200
        %s202 = scalar_select %p197, %s201, %s200
        %p203 = scmp.ne.s32.totalorder %s202, 0
        %p204 = scmp.lt.s32.totalorder %s202, 0
        %p205 = pnand %p204, %p203
        %p206 = pneg %p205
        %s207 = sadd.s32 %s202, 2
        %s208 = scalar_select %p206, %s207, %s202
        %p209 = scmp.eq.s32.totalorder %s25, 0
        // Predicated region
        $region41: #{quartznet_block_forward.1} parent=31 // pred_check
          %p210 = pneg %p209
        $region42: #{quartznet_block_forward.1} parent=31 // pred_check_branch
          %212 = sbr.rel (%p210) target = $region44
        $region43: #{quartznet_block_forward.1} parent=31 // pred_region
          %s213 = sshra.s32 %s196, 3
          %s214 = sand.u32 %s196, 7
          %s215 = smul.u32 %s24, 12
          %s216 = sadd.s32 %s213, %s215
          %s217 = smul.addr %s216, 4
          %s218 = scalar_lea.vmem %s0, %s217
          %s219 = smul.u32 %s208, 8
          %s220 = smul.addr %s219, 4
          %s221 = scalar_lea.vmem [#allocation2], %s220
          %s222 = scalar_lea.sflag [#allocation4], %s208
          %p224 = scmp.lt.u32.totalorder 32, 8
          %p225 = pneg %p224
          // Predicated region
          $region45: #{quartznet_block_forward.1} parent=43 // pred_check
            _
          $region46: #{quartznet_block_forward.1} parent=43 // pred_check_branch
            %227 = sbr.rel (%p224) target = $region48
          $region47: #{quartznet_block_forward.1} parent=43 // pred_region
            %s243 = sand.u32 32, 7
            %p244 = scmp.eq.s32.totalorder %s243, 0
            // Predicated region
            $region60: #{quartznet_block_forward.1} parent=47 // pred_check
              %p245 = pneg %p244
            $region61: #{quartznet_block_forward.1} parent=47 // pred_check_branch
              %247 = sbr.rel (%p245) target = $region63
            $region62: #{quartznet_block_forward.1} parent=47 // pred_region
              loop: start=0, step=1, limit=1
              $region64: #{quartznet_block_forward.1} parent=62 // loop_pre_header
                _
              $region65: #{quartznet_block_forward.1} parent=62 // loop_header
                %s249 = sphi 0, %s253
                %p250 = scmp.ge.s32.totalorder %s249, 1
                %s254 = sphi %s218, %s218
                %s255 = sphi %s221, %s221
              $region66: #{quartznet_block_forward.1} parent=62 // loop_header_branch
                %252 = sbr.rel (%p250) target = $region70
              $region67: #{quartznet_block_forward.1} parent=62 // loop_body
                %v256 = vld [vmem:[%s254] sm:$0xff]
                %257 = vst [vmem:[%s255] sm:$0xff] %v256
                %v258 = vld [vmem:[%s254 + $0x8] sm:$0xff]
                %259 = vst [vmem:[%s255 + $0x8] sm:$0xff] %v258
                %v260 = vld [vmem:[%s254 + $0x10] sm:$0xff]
                %261 = vst [vmem:[%s255 + $0x10] sm:$0xff] %v260
                %v262 = vld [vmem:[%s254 + $0x18] sm:$0xff]
                %263 = vst [vmem:[%s255 + $0x18] sm:$0xff] %v262
              $region68: #{quartznet_block_forward.1} parent=62 // loop_footer
                %s253 = sadd.s32 1, %s249
              $region69: #{quartznet_block_forward.1} parent=62 // loop_footer_branch
                %248 = sbr.rel target = $region65
              $region70: #{quartznet_block_forward.1} parent=62 // loop_exit
                _
            $region63: #{quartznet_block_forward.1} parent=47 // pred_fallthru
              _
            %p264 = pneg %p244
            // Predicated region
            $region71: #{quartznet_block_forward.1} parent=47 // pred_check
              _
            $region72: #{quartznet_block_forward.1} parent=47 // pred_check_branch
              %266 = sbr.rel (%p244) target = $region74
            $region73: #{quartznet_block_forward.1} parent=47 // pred_region
              %s267 = sand.u32 32, 7
            $region74: #{quartznet_block_forward.1} parent=47 // pred_fallthru
              _
          $region48: #{quartznet_block_forward.1} parent=43 // pred_fallthru
            _
          // Predicated region
          $region49: #{quartznet_block_forward.1} parent=43 // pred_check
            %p228 = pneg %p224
          $region50: #{quartznet_block_forward.1} parent=43 // pred_check_branch
            %230 = sbr.rel (%p228) target = $region52
          $region51: #{quartznet_block_forward.1} parent=43 // pred_region
            %s231 = sshll.u32 1, 32
            %s232 = ssub.s32 %s231, 1
            loop: start=0, step=1, limit=1
            $region53: #{quartznet_block_forward.1} parent=51 // loop_pre_header
              _
            $region54: #{quartznet_block_forward.1} parent=51 // loop_header
              %s234 = sphi 0, %s238
              %p235 = scmp.ge.s32.totalorder %s234, 1
              %s239 = sphi %s218, %s218
              %s240 = sphi %s221, %s221
            $region55: #{quartznet_block_forward.1} parent=51 // loop_header_branch
              %237 = sbr.rel (%p235) target = $region59
            $region56: #{quartznet_block_forward.1} parent=51 // loop_body
              %v241 = vld [vmem:[%s239] sm:%s232]
              %242 = vst [vmem:[%s240] sm:%s232] %v241
            $region57: #{quartznet_block_forward.1} parent=51 // loop_footer
              %s238 = sadd.s32 1, %s234
            $region58: #{quartznet_block_forward.1} parent=51 // loop_footer_branch
              %233 = sbr.rel target = $region54
            $region59: #{quartznet_block_forward.1} parent=51 // loop_exit
              _
          $region52: #{quartznet_block_forward.1} parent=43 // pred_fallthru
            _
          // Predicated region
          $region75: #{quartznet_block_forward.1} parent=43 // pred_check
            _
          $region76: #{quartznet_block_forward.1} parent=43 // pred_check_branch
            %270 = sbr.rel (0) target = $region78
          $region77: #{quartznet_block_forward.1} parent=43 // pred_region
            %271 = vsyncadd %s222, 512
          $region78: #{quartznet_block_forward.1} parent=43 // pred_fallthru
            _
        $region44: #{quartznet_block_forward.1} parent=31 // pred_fallthru
          _
        %s272 = smul.u32 %s208, 8
        %s273 = smul.addr %s272, 4
        %s274 = scalar_lea.vmem [#allocation2], %s273
        %s275 = scalar_lea.sflag [#allocation4], %s208
        %s276 = smul.u32 4, 8
        %s277 = smul.u32 %s276, 1
        %s278 = sshll.u32 %s277, 4
        %279 = dma.done %s275, %s278
        %s280 = sadd.s32 %s25, 1
        %p281 = scmp.lt.s32.totalorder %s280, 2
        // Predicated region
        $region79: #{quartznet_block_forward.1} parent=31 // pred_check
          %p282 = pneg %p281
        $region80: #{quartznet_block_forward.1} parent=31 // pred_check_branch
          %284 = sbr.rel (%p282) target = $region82
        $region81: #{quartznet_block_forward.1} parent=31 // pred_region
          %s285 = ssub.s32 1, %s208
          %s286 = smul.u32 %s280, 32
          %s287 = sshra.s32 %s286, 3
          %s288 = sand.u32 %s286, 7
          %s289 = smul.u32 %s24, 12
          %s290 = sadd.s32 %s287, %s289
          %s291 = smul.addr %s290, 4
          %s292 = scalar_lea.vmem %s0, %s291
          %s293 = smul.u32 %s285, 8
          %s294 = smul.addr %s293, 4
          %s295 = scalar_lea.vmem [#allocation2], %s294
          %s296 = scalar_lea.sflag [#allocation4], %s285
          %p298 = scmp.lt.u32.totalorder 32, 8
          %p299 = pneg %p298
          // Predicated region
          $region83: #{quartznet_block_forward.1} parent=81 // pred_check
            _
          $region84: #{quartznet_block_forward.1} parent=81 // pred_check_branch
            %301 = sbr.rel (%p298) target = $region86
          $region85: #{quartznet_block_forward.1} parent=81 // pred_region
            %s317 = sand.u32 32, 7
            %p318 = scmp.eq.s32.totalorder %s317, 0
            // Predicated region
            $region98: #{quartznet_block_forward.1} parent=85 // pred_check
              %p319 = pneg %p318
            $region99: #{quartznet_block_forward.1} parent=85 // pred_check_branch
              %321 = sbr.rel (%p319) target = $region101
            $region100: #{quartznet_block_forward.1} parent=85 // pred_region
              loop: start=0, step=1, limit=1
              $region102: #{quartznet_block_forward.1} parent=100 // loop_pre_header
                _
              $region103: #{quartznet_block_forward.1} parent=100 // loop_header
                %s323 = sphi 0, %s327
                %p324 = scmp.ge.s32.totalorder %s323, 1
                %s328 = sphi %s292, %s292
                %s329 = sphi %s295, %s295
              $region104: #{quartznet_block_forward.1} parent=100 // loop_header_branch
                %326 = sbr.rel (%p324) target = $region108
              $region105: #{quartznet_block_forward.1} parent=100 // loop_body
                %v330 = vld [vmem:[%s328] sm:$0xff]
                %331 = vst [vmem:[%s329] sm:$0xff] %v330
                %v332 = vld [vmem:[%s328 + $0x8] sm:$0xff]
                %333 = vst [vmem:[%s329 + $0x8] sm:$0xff] %v332
                %v334 = vld [vmem:[%s328 + $0x10] sm:$0xff]
                %335 = vst [vmem:[%s329 + $0x10] sm:$0xff] %v334
                %v336 = vld [vmem:[%s328 + $0x18] sm:$0xff]
                %337 = vst [vmem:[%s329 + $0x18] sm:$0xff] %v336
              $region106: #{quartznet_block_forward.1} parent=100 // loop_footer
                %s327 = sadd.s32 1, %s323
              $region107: #{quartznet_block_forward.1} parent=100 // loop_footer_branch
                %322 = sbr.rel target = $region103
              $region108: #{quartznet_block_forward.1} parent=100 // loop_exit
                _
            $region101: #{quartznet_block_forward.1} parent=85 // pred_fallthru
              _
            %p338 = pneg %p318
            // Predicated region
            $region109: #{quartznet_block_forward.1} parent=85 // pred_check
              _
            $region110: #{quartznet_block_forward.1} parent=85 // pred_check_branch
              %340 = sbr.rel (%p318) target = $region112
            $region111: #{quartznet_block_forward.1} parent=85 // pred_region
              %s341 = sand.u32 32, 7
            $region112: #{quartznet_block_forward.1} parent=85 // pred_fallthru
              _
          $region86: #{quartznet_block_forward.1} parent=81 // pred_fallthru
            _
          // Predicated region
          $region87: #{quartznet_block_forward.1} parent=81 // pred_check
            %p302 = pneg %p298
          $region88: #{quartznet_block_forward.1} parent=81 // pred_check_branch
            %304 = sbr.rel (%p302) target = $region90
          $region89: #{quartznet_block_forward.1} parent=81 // pred_region
            %s305 = sshll.u32 1, 32
            %s306 = ssub.s32 %s305, 1
            loop: start=0, step=1, limit=1
            $region91: #{quartznet_block_forward.1} parent=89 // loop_pre_header
              _
            $region92: #{quartznet_block_forward.1} parent=89 // loop_header
              %s308 = sphi 0, %s312
              %p309 = scmp.ge.s32.totalorder %s308, 1
              %s313 = sphi %s292, %s292
              %s314 = sphi %s295, %s295
            $region93: #{quartznet_block_forward.1} parent=89 // loop_header_branch
              %311 = sbr.rel (%p309) target = $region97
            $region94: #{quartznet_block_forward.1} parent=89 // loop_body
              %v315 = vld [vmem:[%s313] sm:%s306]
              %316 = vst [vmem:[%s314] sm:%s306] %v315
            $region95: #{quartznet_block_forward.1} parent=89 // loop_footer
              %s312 = sadd.s32 1, %s308
            $region96: #{quartznet_block_forward.1} parent=89 // loop_footer_branch
              %307 = sbr.rel target = $region92
            $region97: #{quartznet_block_forward.1} parent=89 // loop_exit
              _
          $region90: #{quartznet_block_forward.1} parent=81 // pred_fallthru
            _
          // Predicated region
          $region113: #{quartznet_block_forward.1} parent=81 // pred_check
            _
          $region114: #{quartznet_block_forward.1} parent=81 // pred_check_branch
            %344 = sbr.rel (0) target = $region116
          $region115: #{quartznet_block_forward.1} parent=81 // pred_region
            %345 = vsyncadd %s296, 512
          $region116: #{quartznet_block_forward.1} parent=81 // pred_fallthru
            _
        $region82: #{quartznet_block_forward.1} parent=31 // pred_fallthru
          _
        %v346 = vld [vmem:[%s274] sm:$0xf]
        %v347 = vld [vmem:[%s274 + $0x4] sm:$0xf]
        %v348 = vld [vmem:[%s274 + $0x8] sm:$0xf]
        %v349 = vld [vmem:[%s274 + $0xc] sm:$0xf]
        %v350 = vld [vmem:[%s274 + $0x10] sm:$0xf]
        %v351 = vld [vmem:[%s274 + $0x14] sm:$0xf]
        %v352 = vld [vmem:[%s274 + $0x18] sm:$0xf]
        %v353 = vld [vmem:[%s274 + $0x1c] sm:$0xf]
        %v361 = vunpack.c.l.b16 %v346
        %v362 = vunpack.c.l.b16 %v347
        %v363 = vunpack.c.l.b16 %v348
        %v364 = vunpack.c.l.b16 %v349
        %v365 = vunpack.c.l.b16 %v350
        %v366 = vunpack.c.l.b16 %v351
        %v367 = vunpack.c.l.b16 %v352
        %v368 = vpack.c.b16 %v362, %v361
        %v369 = vpack.c.b16 %v364, %v363
        %v370 = vpack.c.b16 %v366, %v365
        %v371 = vpack.c.b16 %v367, %v367
        %vm376 = vsmask.f32 7424
        %v378 = vshrl.u32 %v368, 16
        %v380 = vshll.u32 %v368, 16
        %v382 = vrot.slane %v380, 1
        %v383 = vor.u32 %v378, %v382
        %v385 = vshll.u32 %v369, 16
        %v387 = vrot.slane %v385, 1
        %v388 = vsel %vm376, %v383, %v387
        %v389 = vshrl.u32 %v369, 16
        %v391 = vor.u32 %v389, %v387
        %v393 = vshll.u32 %v370, 16
        %v395 = vrot.slane %v393, 1
        %v396 = vsel %vm376, %v391, %v395
        %v397 = vshrl.u32 %v370, 16
        %v399 = vor.u32 %v397, %v395
        %v401 = vshll.u32 %v371, 16
        %v403 = vrot.slane %v401, 1
        %v404 = vsel %vm376, %v399, %v403
        %v405 = vshrl.u32 %v371, 16
        %v407 = vor.u32 %v405, %v403
        %vm412 = vcmask 1046528
        %v413 = vrot.slane %v368, 1
        %v414 = vrot.slane %v369, 1
        %v415 = vsel %vm412, %v413, %v414
        %v416 = vrot.slane %v370, 1
        %v417 = vsel %vm412, %v414, %v416
        %v418 = vrot.slane %v371, 1
        %v419 = vsel %vm412, %v416, %v418
        %v425 = vunpack.c.l.b16 %v353
        %v426 = vpack.c.b16 %v425, %v367
        %vm427 = vsmask.f32 6400
        %v428 = vrot.slane %v378, 1
        %v429 = vrot.slane %v380, 2
        %v430 = vor.u32 %v428, %v429
        %v431 = vrot.slane %v389, 1
        %v432 = vrot.slane %v385, 2
        %v433 = vor.u32 %v431, %v432
        %v434 = vsel %vm427, %v430, %v433
        %v435 = vrot.slane %v397, 1
        %v436 = vrot.slane %v393, 2
        %v437 = vor.u32 %v435, %v436
        %v438 = vsel %vm427, %v433, %v437
        %v440 = vshrl.u32 %v426, 16
        %v442 = vrot.slane %v440, 1
        %v443 = vshll.u32 %v426, 16
        %v445 = vrot.slane %v443, 2
        %v446 = vor.u32 %v442, %v445
        %v447 = vsel %vm427, %v437, %v446
        %vm452 = vcmask 1045504
        %v453 = vrot.slane %v368, 2
        %v454 = vrot.slane %v369, 2
        %v455 = vsel %vm452, %v453, %v454
        %v456 = vrot.slane %v370, 2
        %v457 = vsel %vm452, %v454, %v456
        %v458 = vrot.slane %v426, 2
        %v459 = vsel %vm452, %v456, %v458
        %vm464 = vsmask.f32 5376
        %v465 = vrot.slane %v378, 2
        %v466 = vrot.slane %v380, 3
        %v467 = vor.u32 %v465, %v466
        %v468 = vrot.slane %v389, 2
        %v469 = vrot.slane %v385, 3
        %v470 = vor.u32 %v468, %v469
        %v471 = vsel %vm464, %v467, %v470
        %v472 = vrot.slane %v397, 2
        %v473 = vrot.slane %v393, 3
        %v474 = vor.u32 %v472, %v473
        %v475 = vsel %vm464, %v470, %v474
        %v476 = vrot.slane %v440, 2
        %v477 = vrot.slane %v443, 3
        %v478 = vor.u32 %v476, %v477
        %v479 = vsel %vm464, %v474, %v478
        %vm484 = vcmask 1044480
        %v485 = vrot.slane %v368, 3
        %v486 = vrot.slane %v369, 3
        %v487 = vsel %vm484, %v485, %v486
        %v488 = vrot.slane %v370, 3
        %v489 = vsel %vm484, %v486, %v488
        %v490 = vrot.slane %v426, 3
        %v491 = vsel %vm484, %v488, %v490
        %vm496 = vsmask.f32 4352
        %v497 = vrot.slane %v378, 3
        %v498 = vrot.slane %v380, 4
        %v499 = vor.u32 %v497, %v498
        %v500 = vrot.slane %v389, 3
        %v501 = vrot.slane %v385, 4
        %v502 = vor.u32 %v500, %v501
        %v503 = vsel %vm496, %v499, %v502
        %v504 = vrot.slane %v397, 3
        %v505 = vrot.slane %v393, 4
        %v506 = vor.u32 %v504, %v505
        %v507 = vsel %vm496, %v502, %v506
        %v508 = vrot.slane %v440, 3
        %v509 = vrot.slane %v443, 4
        %v510 = vor.u32 %v508, %v509
        %v511 = vsel %vm496, %v506, %v510
        %v516 = vpack.c.b16 %v363, %v362
        %v517 = vpack.c.b16 %v365, %v364
        %v518 = vpack.c.b16 %v367, %v366
        %v519 = vpack.c.b16 %v425, %v425
        %v525 = vshrl.u32 %v516, 16
        %v527 = vshll.u32 %v516, 16
        %v529 = vrot.slane %v527, 1
        %v530 = vor.u32 %v525, %v529
        %v532 = vshll.u32 %v517, 16
        %v534 = vrot.slane %v532, 1
        %v535 = vsel %vm376, %v530, %v534
        %v536 = vshrl.u32 %v517, 16
        %v538 = vor.u32 %v536, %v534
        %v540 = vshll.u32 %v518, 16
        %v542 = vrot.slane %v540, 1
        %v543 = vsel %vm376, %v538, %v542
        %v544 = vshrl.u32 %v518, 16
        %v546 = vor.u32 %v544, %v542
        %v548 = vshll.u32 %v519, 16
        %v550 = vrot.slane %v548, 1
        %v551 = vsel %vm376, %v546, %v550
        %v552 = vshrl.u32 %v519, 16
        %v554 = vor.u32 %v552, %v550
        %v559 = vrot.slane %v516, 1
        %v560 = vrot.slane %v517, 1
        %v561 = vsel %vm412, %v559, %v560
        %v562 = vrot.slane %v518, 1
        %v563 = vsel %vm412, %v560, %v562
        %v564 = vrot.slane %v519, 1
        %v565 = vsel %vm412, %v562, %v564
        %v570 = vld [vmem:[#allocation5] sm:$0xff]
        %v571 = vld [vmem:[#allocation5 + $0x8] sm:$0xff]
        %v572 = vld [vmem:[#allocation5 + $0x10] sm:$0xff]
        %v573 = vld [vmem:[#allocation5 + $0x18] sm:$0xff]
        %v574 = vld [vmem:[#allocation5 + $0x20] sm:$0xff]
        %v575 = vld [vmem:[#allocation5 + $0x28] sm:$0xff]
        %v576 = vld [vmem:[#allocation5 + $0x30] sm:$0xff]
        %v577 = vld [vmem:[#allocation5 + $0x38] sm:$0xff]
        %v578 = vld [vmem:[#allocation5 + $0x40] sm:$0xff]
        %v579 = vld [vmem:[#allocation5 + $0x48] sm:$0xff]
        %v580 = vld [vmem:[#allocation5 + $0x50] sm:$0xff]
        %v581 = vld [vmem:[#allocation5 + $0x58] sm:$0xff]
        %v582 = vld [vmem:[#allocation5 + $0x60] sm:$0xff]
        %v583 = vld [vmem:[#allocation5 + $0x68] sm:$0xff]
        %v584 = vld [vmem:[#allocation5 + $0x70] sm:$0xff]
        %v585 = vld [vmem:[#allocation5 + $0x78] sm:$0xff]
        %v586 = vld [vmem:[#allocation5 + $0x80] sm:$0xff]
        %v587 = vld [vmem:[#allocation5 + $0x88] sm:$0xff]
        %v588 = vld [vmem:[#allocation5 + $0x90] sm:$0xff]
        %v589 = vld [vmem:[#allocation5 + $0x98] sm:$0xff]
        %v590 = vld [vmem:[#allocation5 + $0xa0] sm:$0xff]
        %v591 = vld [vmem:[#allocation5 + $0xa8] sm:$0xff]
        %v592 = vld [vmem:[#allocation5 + $0xb0] sm:$0xff]
        %v593 = vld [vmem:[#allocation5 + $0xb8] sm:$0xff]
        %v594 = vld [vmem:[#allocation5 + $0xc0] sm:$0xff]
        %v595 = vld [vmem:[#allocation5 + $0xc8] sm:$0xff]
        %v596 = vld [vmem:[#allocation5 + $0xd0] sm:$0xff]
        %v597 = vld [vmem:[#allocation5 + $0xd8] sm:$0xff]
        %v598 = vld [vmem:[#allocation5 + $0xe0] sm:$0xff]
        %v599 = vld [vmem:[#allocation5 + $0xe8] sm:$0xff]
        %v600 = vld [vmem:[#allocation5 + $0xf0] sm:$0xff]
        %v601 = vld [vmem:[#allocation5 + $0xf8] sm:$0xff]
        %v602 = vld [vmem:[#allocation5 + $0x100] sm:$0xff]
        %v603 = vld [vmem:[#allocation5 + $0x108] sm:$0xff]
        %v604 = vld [vmem:[#allocation5 + $0x110] sm:$0xff]
        %v605 = vld [vmem:[#allocation5 + $0x118] sm:$0xff]
        %v606 = vld [vmem:[#allocation5 + $0x120] sm:$0xff]
        %v607 = vld [vmem:[#allocation5 + $0x128] sm:$0xff]
        %v608 = vld [vmem:[#allocation5 + $0x130] sm:$0xff]
        %v609 = vld [vmem:[#allocation5 + $0x138] sm:$0xff]
        %v610 = vld [vmem:[#allocation5 + $0x140] sm:$0xff]
        %v611 = vld [vmem:[#allocation5 + $0x148] sm:$0xff]
        %v612 = vld [vmem:[#allocation5 + $0x150] sm:$0xff]
        %v613 = vld [vmem:[#allocation5 + $0x158] sm:$0xff]
        %v614 = vld [vmem:[#allocation5 + $0x160] sm:$0xff]
        %v615 = vld [vmem:[#allocation5 + $0x168] sm:$0xff]
        %v616 = vld [vmem:[#allocation5 + $0x170] sm:$0xff]
        %v617 = vld [vmem:[#allocation5 + $0x178] sm:$0xff]
        %v618 = vld [vmem:[#allocation5 + $0x180] sm:$0xff]
        %v619 = vld [vmem:[#allocation5 + $0x188] sm:$0xff]
        %v620 = vld [vmem:[#allocation5 + $0x190] sm:$0xff]
        %v621 = vld [vmem:[#allocation5 + $0x198] sm:$0xff]
        %v622 = vld [vmem:[#allocation5 + $0x1a0] sm:$0xff]
        %v623 = vld [vmem:[#allocation5 + $0x1a8] sm:$0xff]
        %v624 = vld [vmem:[#allocation5 + $0x1b0] sm:$0xff]
        %v625 = vld [vmem:[#allocation5 + $0x1b8] sm:$0xff]
        %v626 = vld [vmem:[#allocation5 + $0x1c0] sm:$0xff]
        %v627 = vld [vmem:[#allocation5 + $0x1c8] sm:$0xff]
        %v628 = vld [vmem:[#allocation5 + $0x1d0] sm:$0xff]
        %v629 = vld [vmem:[#allocation5 + $0x1d8] sm:$0xff]
        %v630 = vld [vmem:[#allocation5 + $0x1e0] sm:$0xff]
        %v631 = vld [vmem:[#allocation5 + $0x1e8] sm:$0xff]
        %v632 = vld [vmem:[#allocation5 + $0x1f0] sm:$0xff]
        %v633 = vld [vmem:[#allocation5 + $0x1f8] sm:$0xff]
        %v634 = vld [vmem:[#allocation5 + $0x200] sm:$0xff]
        %v635 = vld [vmem:[#allocation5 + $0x208] sm:$0xff]
        %v636 = vld [vmem:[#allocation5 + $0x210] sm:$0xff]
        %v637 = vld [vmem:[#allocation5 + $0x218] sm:$0xff]
        %v638 = vld [vmem:[#allocation5 + $0x220] sm:$0xff]
        %v639 = vld [vmem:[#allocation5 + $0x228] sm:$0xff]
        %v640 = vld [vmem:[#allocation5 + $0x230] sm:$0xff]
        %v641 = vld [vmem:[#allocation5 + $0x238] sm:$0xff]
        %v642 = vld [vmem:[#allocation5 + $0x240] sm:$0xff]
        %v643 = vld [vmem:[#allocation5 + $0x248] sm:$0xff]
        %v644 = vld [vmem:[#allocation5 + $0x250] sm:$0xff]
        %v645 = vld [vmem:[#allocation5 + $0x258] sm:$0xff]
        %v646 = vld [vmem:[#allocation5 + $0x260] sm:$0xff]
        %v647 = vld [vmem:[#allocation5 + $0x268] sm:$0xff]
        %v648 = vld [vmem:[#allocation5 + $0x270] sm:$0xff]
        %v649 = vld [vmem:[#allocation5 + $0x278] sm:$0xff]
        %v650 = vld [vmem:[#allocation5 + $0x280] sm:$0xff]
        %v651 = vld [vmem:[#allocation5 + $0x288] sm:$0xff]
        %v652 = vld [vmem:[#allocation5 + $0x290] sm:$0xff]
        %v653 = vld [vmem:[#allocation5 + $0x298] sm:$0xff]
        %v654 = vld [vmem:[#allocation5 + $0x2a0] sm:$0xff]
        %v655 = vld [vmem:[#allocation5 + $0x2a8] sm:$0xff]
        %v656 = vld [vmem:[#allocation5 + $0x2b0] sm:$0xff]
        %v657 = vld [vmem:[#allocation5 + $0x2b8] sm:$0xff]
        %v658 = vld [vmem:[#allocation5 + $0x2c0] sm:$0xff]
        %v659 = vld [vmem:[#allocation5 + $0x2c8] sm:$0xff]
        %v660 = vld [vmem:[#allocation5 + $0x2d0] sm:$0xff]
        %v661 = vld [vmem:[#allocation5 + $0x2d8] sm:$0xff]
        %v662 = vld [vmem:[#allocation5 + $0x2e0] sm:$0xff]
        %v663 = vld [vmem:[#allocation5 + $0x2e8] sm:$0xff]
        %v664 = vld [vmem:[#allocation5 + $0x2f0] sm:$0xff]
        %v665 = vld [vmem:[#allocation5 + $0x2f8] sm:$0xff]
        %v666 = vld [vmem:[#allocation5 + $0x300] sm:$0xff]
        %v667 = vld [vmem:[#allocation5 + $0x308] sm:$0xff]
        %v668 = vld [vmem:[#allocation5 + $0x310] sm:$0xff]
        %v669 = vld [vmem:[#allocation5 + $0x318] sm:$0xff]
        %v670 = vld [vmem:[#allocation5 + $0x320] sm:$0xff]
        %v671 = vld [vmem:[#allocation5 + $0x328] sm:$0xff]
        %v672 = vld [vmem:[#allocation5 + $0x330] sm:$0xff]
        %v673 = vld [vmem:[#allocation5 + $0x338] sm:$0xff]
        %v674 = vld [vmem:[#allocation5 + $0x340] sm:$0xff]
        %v675 = vld [vmem:[#allocation5 + $0x348] sm:$0xff]
        %v676 = vld [vmem:[#allocation5 + $0x350] sm:$0xff]
        %v677 = vld [vmem:[#allocation5 + $0x358] sm:$0xff]
        %v678 = vld [vmem:[#allocation5 + $0x360] sm:$0xff]
        %v679 = vld [vmem:[#allocation5 + $0x368] sm:$0xff]
        %v680 = vld [vmem:[#allocation5 + $0x370] sm:$0xff]
        %v681 = vld [vmem:[#allocation5 + $0x378] sm:$0xff]
        %v682 = vld [vmem:[#allocation5 + $0x380] sm:$0xff]
        %v683 = vld [vmem:[#allocation5 + $0x388] sm:$0xff]
        %v684 = vld [vmem:[#allocation5 + $0x390] sm:$0xff]
        %v685 = vld [vmem:[#allocation5 + $0x398] sm:$0xff]
        %v686 = vld [vmem:[#allocation5 + $0x3a0] sm:$0xff]
        %v687 = vld [vmem:[#allocation5 + $0x3a8] sm:$0xff]
        %v688 = vld [vmem:[#allocation5 + $0x3b0] sm:$0xff]
        %v689 = vld [vmem:[#allocation5 + $0x3b8] sm:$0xff]
        %v690 = vld [vmem:[#allocation5 + $0x3c0] sm:$0xff]
        %v691 = vld [vmem:[#allocation5 + $0x3c8] sm:$0xff]
        %v692 = vld [vmem:[#allocation5 + $0x3d0] sm:$0xff]
        %v693 = vld [vmem:[#allocation5 + $0x3d8] sm:$0xff]
        %v694 = vld [vmem:[#allocation5 + $0x3e0] sm:$0xff]
        %v695 = vld [vmem:[#allocation5 + $0x3e8] sm:$0xff]
        %v696 = vld [vmem:[#allocation5 + $0x3f0] sm:$0xff]
        %v697 = vld [vmem:[#allocation5 + $0x3f8] sm:$0xff]
        %v698 = vld [vmem:[#allocation5 + $0x400] sm:$0xff]
        %v699 = vld [vmem:[#allocation5 + $0x408] sm:$0xff]
        %v700 = vld [vmem:[#allocation5 + $0x410] sm:$0xff]
        %v701 = vld [vmem:[#allocation5 + $0x418] sm:$0xff]
        %v702 = vld [vmem:[#allocation5 + $0x420] sm:$0xff]
        %v703 = vld [vmem:[#allocation5 + $0x428] sm:$0xff]
        %v704 = vld [vmem:[#allocation5 + $0x430] sm:$0xff]
        %v705 = vld [vmem:[#allocation5 + $0x438] sm:$0xff]
        %v706 = vld [vmem:[#allocation5 + $0x440] sm:$0xff]
        %v707 = vld [vmem:[#allocation5 + $0x448] sm:$0xff]
        %v708 = vld [vmem:[#allocation5 + $0x450] sm:$0xff]
        %v709 = vld [vmem:[#allocation5 + $0x458] sm:$0xff]
        %v710 = vld [vmem:[#allocation5 + $0x460] sm:$0xff]
        %v711 = vld [vmem:[#allocation5 + $0x468] sm:$0xff]
        %v712 = vld [vmem:[#allocation5 + $0x470] sm:$0xff]
        %v713 = vld [vmem:[#allocation5 + $0x478] sm:$0xff]
        %v714 = vld [vmem:[#allocation5 + $0x480] sm:$0xff]
        %v715 = vld [vmem:[#allocation5 + $0x488] sm:$0xff]
        %v716 = vld [vmem:[#allocation5 + $0x490] sm:$0xff]
        %v717 = vld [vmem:[#allocation5 + $0x498] sm:$0xff]
        %v718 = vld [vmem:[#allocation5 + $0x4a0] sm:$0xff]
        %v719 = vld [vmem:[#allocation5 + $0x4a8] sm:$0xff]
        %v720 = vld [vmem:[#allocation5 + $0x4b0] sm:$0xff]
        %v721 = vld [vmem:[#allocation5 + $0x4b8] sm:$0xff]
        %v722 = vld [vmem:[#allocation5 + $0x4c0] sm:$0xff]
        %v723 = vld [vmem:[#allocation5 + $0x4c8] sm:$0xff]
        %v724 = vld [vmem:[#allocation5 + $0x4d0] sm:$0xff]
        %v725 = vld [vmem:[#allocation5 + $0x4d8] sm:$0xff]
        %v726 = vld [vmem:[#allocation5 + $0x4e0] sm:$0xff]
        %v727 = vld [vmem:[#allocation5 + $0x4e8] sm:$0xff]
        %v728 = vld [vmem:[#allocation5 + $0x4f0] sm:$0xff]
        %v729 = vld [vmem:[#allocation5 + $0x4f8] sm:$0xff]
        %v730 = vld [vmem:[#allocation5 + $0x500] sm:$0xff]
        %v731 = vld [vmem:[#allocation5 + $0x508] sm:$0xff]
        %v732 = vld [vmem:[#allocation5 + $0x510] sm:$0xff]
        %v733 = vld [vmem:[#allocation5 + $0x518] sm:$0xff]
        %v734 = vld [vmem:[#allocation5 + $0x520] sm:$0xff]
        %v735 = vld [vmem:[#allocation5 + $0x528] sm:$0xff]
        %v736 = vld [vmem:[#allocation5 + $0x530] sm:$0xff]
        %v737 = vld [vmem:[#allocation5 + $0x538] sm:$0xff]
        %v738 = vld [vmem:[#allocation5 + $0x540] sm:$0xff]
        %v739 = vld [vmem:[#allocation5 + $0x548] sm:$0xff]
        %v740 = vld [vmem:[#allocation5 + $0x550] sm:$0xff]
        %v741 = vld [vmem:[#allocation5 + $0x558] sm:$0xff]
        %v742 = vld [vmem:[#allocation5 + $0x560] sm:$0xff]
        %v743 = vld [vmem:[#allocation5 + $0x568] sm:$0xff]
        %v744 = vld [vmem:[#allocation5 + $0x570] sm:$0xff]
        %v745 = vld [vmem:[#allocation5 + $0x578] sm:$0xff]
        %v922 = vunpack.c.l.b16 %v570
        %v923 = vunpack.c.h.b16 %v570
        %v924 = vunpack.c.l.b16 %v571
        %v925 = vunpack.c.h.b16 %v571
        %v926 = vunpack.c.l.b16 %v572
        %v927 = vunpack.c.h.b16 %v572
        %v928 = vunpack.c.l.b16 %v573
        %v929 = vunpack.c.h.b16 %v573
        %v930 = vunpack.c.l.b16 %v574
        %v931 = vunpack.c.h.b16 %v574
        %v932 = vunpack.c.l.b16 %v575
        %v933 = vunpack.c.h.b16 %v575
        %v934 = vunpack.c.l.b16 %v576
        %v935 = vunpack.c.h.b16 %v576
        %v936 = vunpack.c.l.b16 %v577
        %v937 = vunpack.c.h.b16 %v577
        %v938 = vunpack.c.l.b16 %v578
        %v939 = vunpack.c.h.b16 %v578
        %v940 = vunpack.c.l.b16 %v579
        %v941 = vunpack.c.h.b16 %v579
        %v942 = vunpack.c.l.b16 %v580
        %v943 = vunpack.c.h.b16 %v580
        %v944 = vunpack.c.l.b16 %v581
        %v945 = vunpack.c.h.b16 %v581
        %v946 = vunpack.c.l.b16 %v582
        %v947 = vunpack.c.h.b16 %v582
        %v948 = vunpack.c.l.b16 %v583
        %v949 = vunpack.c.h.b16 %v583
        %v950 = vunpack.c.l.b16 %v584
        %v951 = vunpack.c.h.b16 %v584
        %v952 = vunpack.c.l.b16 %v585
        %v953 = vunpack.c.h.b16 %v585
        %v954 = vunpack.c.l.b16 %v586
        %v955 = vunpack.c.h.b16 %v586
        %v956 = vunpack.c.l.b16 %v587
        %v957 = vunpack.c.h.b16 %v587
        %v958 = vunpack.c.l.b16 %v588
        %v959 = vunpack.c.h.b16 %v588
        %v960 = vunpack.c.l.b16 %v589
        %v961 = vunpack.c.h.b16 %v589
        %v962 = vunpack.c.l.b16 %v590
        %v963 = vunpack.c.h.b16 %v590
        %v964 = vunpack.c.l.b16 %v591
        %v965 = vunpack.c.h.b16 %v591
        %v966 = vunpack.c.l.b16 %v592
        %v967 = vunpack.c.h.b16 %v592
        %v968 = vunpack.c.l.b16 %v593
        %v969 = vunpack.c.h.b16 %v593
        %v970 = vunpack.c.l.b16 %v594
        %v971 = vunpack.c.h.b16 %v594
        %v972 = vunpack.c.l.b16 %v595
        %v973 = vunpack.c.h.b16 %v595
        %v974 = vunpack.c.l.b16 %v596
        %v975 = vunpack.c.h.b16 %v596
        %v976 = vunpack.c.l.b16 %v597
        %v977 = vunpack.c.h.b16 %v597
        %v978 = vunpack.c.l.b16 %v598
        %v979 = vunpack.c.h.b16 %v598
        %v980 = vunpack.c.l.b16 %v599
        %v981 = vunpack.c.h.b16 %v599
        %v982 = vunpack.c.l.b16 %v600
        %v983 = vunpack.c.h.b16 %v600
        %v984 = vunpack.c.l.b16 %v601
        %v985 = vunpack.c.h.b16 %v601
        %v986 = vunpack.c.l.b16 %v602
        %v987 = vunpack.c.h.b16 %v602
        %v988 = vunpack.c.l.b16 %v603
        %v989 = vunpack.c.h.b16 %v603
        %v990 = vunpack.c.l.b16 %v604
        %v991 = vunpack.c.h.b16 %v604
        %v992 = vunpack.c.l.b16 %v605
        %v993 = vunpack.c.h.b16 %v605
        %v994 = vunpack.c.l.b16 %v606
        %v995 = vunpack.c.h.b16 %v606
        %v996 = vunpack.c.l.b16 %v607
        %v997 = vunpack.c.h.b16 %v607
        %v998 = vunpack.c.l.b16 %v608
        %v999 = vunpack.c.h.b16 %v608
        %v1000 = vunpack.c.l.b16 %v609
        %v1001 = vunpack.c.h.b16 %v609
        %v1002 = vunpack.c.l.b16 %v610
        %v1003 = vunpack.c.h.b16 %v610
        %v1004 = vunpack.c.l.b16 %v611
        %v1005 = vunpack.c.h.b16 %v611
        %v1006 = vunpack.c.l.b16 %v612
        %v1007 = vunpack.c.h.b16 %v612
        %v1008 = vunpack.c.l.b16 %v613
        %v1009 = vunpack.c.h.b16 %v613
        %v1010 = vunpack.c.l.b16 %v614
        %v1011 = vunpack.c.h.b16 %v614
        %v1012 = vunpack.c.l.b16 %v615
        %v1013 = vunpack.c.h.b16 %v615
        %v1014 = vunpack.c.l.b16 %v616
        %v1015 = vunpack.c.h.b16 %v616
        %v1016 = vunpack.c.l.b16 %v617
        %v1017 = vunpack.c.h.b16 %v617
        %v1018 = vunpack.c.l.b16 %v618
        %v1019 = vunpack.c.h.b16 %v618
        %v1020 = vunpack.c.l.b16 %v619
        %v1021 = vunpack.c.h.b16 %v619
        %v1022 = vunpack.c.l.b16 %v620
        %v1023 = vunpack.c.h.b16 %v620
        %v1024 = vunpack.c.l.b16 %v621
        %v1025 = vunpack.c.h.b16 %v621
        %v1026 = vunpack.c.l.b16 %v622
        %v1027 = vunpack.c.h.b16 %v622
        %v1028 = vunpack.c.l.b16 %v623
        %v1029 = vunpack.c.h.b16 %v623
        %v1030 = vunpack.c.l.b16 %v624
        %v1031 = vunpack.c.h.b16 %v624
        %v1032 = vunpack.c.l.b16 %v625
        %v1033 = vunpack.c.h.b16 %v625
        %v1034 = vunpack.c.l.b16 %v626
        %v1035 = vunpack.c.h.b16 %v626
        %v1036 = vunpack.c.l.b16 %v627
        %v1037 = vunpack.c.h.b16 %v627
        %v1038 = vunpack.c.l.b16 %v628
        %v1039 = vunpack.c.h.b16 %v628
        %v1040 = vunpack.c.l.b16 %v629
        %v1041 = vunpack.c.h.b16 %v629
        %v1042 = vunpack.c.l.b16 %v630
        %v1043 = vunpack.c.h.b16 %v630
        %v1044 = vunpack.c.l.b16 %v631
        %v1045 = vunpack.c.h.b16 %v631
        %v1046 = vunpack.c.l.b16 %v632
        %v1047 = vunpack.c.h.b16 %v632
        %v1048 = vunpack.c.l.b16 %v633
        %v1049 = vunpack.c.h.b16 %v633
        %v1050 = vunpack.c.l.b16 %v634
        %v1051 = vunpack.c.h.b16 %v634
        %v1052 = vunpack.c.l.b16 %v635
        %v1053 = vunpack.c.h.b16 %v635
        %v1054 = vunpack.c.l.b16 %v636
        %v1055 = vunpack.c.h.b16 %v636
        %v1056 = vunpack.c.l.b16 %v637
        %v1057 = vunpack.c.h.b16 %v637
        %v1058 = vunpack.c.l.b16 %v638
        %v1059 = vunpack.c.h.b16 %v638
        %v1060 = vunpack.c.l.b16 %v639
        %v1061 = vunpack.c.h.b16 %v639
        %v1062 = vunpack.c.l.b16 %v640
        %v1063 = vunpack.c.h.b16 %v640
        %v1064 = vunpack.c.l.b16 %v641
        %v1065 = vunpack.c.h.b16 %v641
        %v1066 = vunpack.c.l.b16 %v642
        %v1067 = vunpack.c.h.b16 %v642
        %v1068 = vunpack.c.l.b16 %v643
        %v1069 = vunpack.c.h.b16 %v643
        %v1070 = vunpack.c.l.b16 %v644
        %v1071 = vunpack.c.h.b16 %v644
        %v1072 = vunpack.c.l.b16 %v645
        %v1073 = vunpack.c.h.b16 %v645
        %v1074 = vunpack.c.l.b16 %v646
        %v1075 = vunpack.c.h.b16 %v646
        %v1076 = vunpack.c.l.b16 %v647
        %v1077 = vunpack.c.h.b16 %v647
        %v1078 = vunpack.c.l.b16 %v648
        %v1079 = vunpack.c.h.b16 %v648
        %v1080 = vunpack.c.l.b16 %v649
        %v1081 = vunpack.c.h.b16 %v649
        %v1082 = vunpack.c.l.b16 %v650
        %v1083 = vunpack.c.h.b16 %v650
        %v1084 = vunpack.c.l.b16 %v651
        %v1085 = vunpack.c.h.b16 %v651
        %v1086 = vunpack.c.l.b16 %v652
        %v1087 = vunpack.c.h.b16 %v652
        %v1088 = vunpack.c.l.b16 %v653
        %v1089 = vunpack.c.h.b16 %v653
        %v1090 = vunpack.c.l.b16 %v654
        %v1091 = vunpack.c.h.b16 %v654
        %v1092 = vunpack.c.l.b16 %v655
        %v1093 = vunpack.c.h.b16 %v655
        %v1094 = vunpack.c.l.b16 %v656
        %v1095 = vunpack.c.h.b16 %v656
        %v1096 = vunpack.c.l.b16 %v657
        %v1097 = vunpack.c.h.b16 %v657
        %v1098 = vunpack.c.l.b16 %v658
        %v1099 = vunpack.c.h.b16 %v658
        %v1100 = vunpack.c.l.b16 %v659
        %v1101 = vunpack.c.h.b16 %v659
        %v1102 = vunpack.c.l.b16 %v660
        %v1103 = vunpack.c.h.b16 %v660
        %v1104 = vunpack.c.l.b16 %v661
        %v1105 = vunpack.c.h.b16 %v661
        %v1106 = vunpack.c.l.b16 %v662
        %v1107 = vunpack.c.h.b16 %v662
        %v1108 = vunpack.c.l.b16 %v663
        %v1109 = vunpack.c.h.b16 %v663
        %v1110 = vunpack.c.l.b16 %v664
        %v1111 = vunpack.c.h.b16 %v664
        %v1112 = vunpack.c.l.b16 %v665
        %v1113 = vunpack.c.h.b16 %v665
        %v1114 = vunpack.c.l.b16 %v666
        %v1115 = vunpack.c.h.b16 %v666
        %v1116 = vunpack.c.l.b16 %v667
        %v1117 = vunpack.c.h.b16 %v667
        %v1118 = vunpack.c.l.b16 %v668
        %v1119 = vunpack.c.h.b16 %v668
        %v1120 = vunpack.c.l.b16 %v669
        %v1121 = vunpack.c.h.b16 %v669
        %v1122 = vunpack.c.l.b16 %v670
        %v1123 = vunpack.c.h.b16 %v670
        %v1124 = vunpack.c.l.b16 %v671
        %v1125 = vunpack.c.h.b16 %v671
        %v1126 = vunpack.c.l.b16 %v672
        %v1127 = vunpack.c.h.b16 %v672
        %v1128 = vunpack.c.l.b16 %v673
        %v1129 = vunpack.c.h.b16 %v673
        %v1130 = vunpack.c.l.b16 %v674
        %v1131 = vunpack.c.h.b16 %v674
        %v1132 = vunpack.c.l.b16 %v675
        %v1133 = vunpack.c.h.b16 %v675
        %v1134 = vunpack.c.l.b16 %v676
        %v1135 = vunpack.c.h.b16 %v676
        %v1136 = vunpack.c.l.b16 %v677
        %v1137 = vunpack.c.h.b16 %v677
        %v1138 = vunpack.c.l.b16 %v678
        %v1139 = vunpack.c.h.b16 %v678
        %v1140 = vunpack.c.l.b16 %v679
        %v1141 = vunpack.c.h.b16 %v679
        %v1142 = vunpack.c.l.b16 %v680
        %v1143 = vunpack.c.h.b16 %v680
        %v1144 = vunpack.c.l.b16 %v681
        %v1145 = vunpack.c.h.b16 %v681
        %v1146 = vunpack.c.l.b16 %v682
        %v1147 = vunpack.c.h.b16 %v682
        %v1148 = vunpack.c.l.b16 %v683
        %v1149 = vunpack.c.h.b16 %v683
        %v1150 = vunpack.c.l.b16 %v684
        %v1151 = vunpack.c.h.b16 %v684
        %v1152 = vunpack.c.l.b16 %v685
        %v1153 = vunpack.c.h.b16 %v685
        %v1154 = vunpack.c.l.b16 %v686
        %v1155 = vunpack.c.h.b16 %v686
        %v1156 = vunpack.c.l.b16 %v687
        %v1157 = vunpack.c.h.b16 %v687
        %v1158 = vunpack.c.l.b16 %v688
        %v1159 = vunpack.c.h.b16 %v688
        %v1160 = vunpack.c.l.b16 %v689
        %v1161 = vunpack.c.h.b16 %v689
        %v1162 = vunpack.c.l.b16 %v690
        %v1163 = vunpack.c.h.b16 %v690
        %v1164 = vunpack.c.l.b16 %v691
        %v1165 = vunpack.c.h.b16 %v691
        %v1166 = vunpack.c.l.b16 %v692
        %v1167 = vunpack.c.h.b16 %v692
        %v1168 = vunpack.c.l.b16 %v693
        %v1169 = vunpack.c.h.b16 %v693
        %v1170 = vunpack.c.l.b16 %v694
        %v1171 = vunpack.c.h.b16 %v694
        %v1172 = vunpack.c.l.b16 %v695
        %v1173 = vunpack.c.h.b16 %v695
        %v1174 = vunpack.c.l.b16 %v696
        %v1175 = vunpack.c.h.b16 %v696
        %v1176 = vunpack.c.l.b16 %v697
        %v1177 = vunpack.c.h.b16 %v697
        %v1178 = vunpack.c.l.b16 %v698
        %v1179 = vunpack.c.h.b16 %v698
        %v1180 = vunpack.c.l.b16 %v699
        %v1181 = vunpack.c.h.b16 %v699
        %v1182 = vunpack.c.l.b16 %v700
        %v1183 = vunpack.c.h.b16 %v700
        %v1184 = vunpack.c.l.b16 %v701
        %v1185 = vunpack.c.h.b16 %v701
        %v1186 = vunpack.c.l.b16 %v702
        %v1187 = vunpack.c.h.b16 %v702
        %v1188 = vunpack.c.l.b16 %v703
        %v1189 = vunpack.c.h.b16 %v703
        %v1190 = vunpack.c.l.b16 %v704
        %v1191 = vunpack.c.h.b16 %v704
        %v1192 = vunpack.c.l.b16 %v705
        %v1193 = vunpack.c.h.b16 %v705
        %v1194 = vunpack.c.l.b16 %v706
        %v1195 = vunpack.c.h.b16 %v706
        %v1196 = vunpack.c.l.b16 %v707
        %v1197 = vunpack.c.h.b16 %v707
        %v1198 = vunpack.c.l.b16 %v708
        %v1199 = vunpack.c.h.b16 %v708
        %v1200 = vunpack.c.l.b16 %v709
        %v1201 = vunpack.c.h.b16 %v709
        %v1202 = vunpack.c.l.b16 %v710
        %v1203 = vunpack.c.h.b16 %v710
        %v1204 = vunpack.c.l.b16 %v711
        %v1205 = vunpack.c.h.b16 %v711
        %v1206 = vunpack.c.l.b16 %v712
        %v1207 = vunpack.c.h.b16 %v712
        %v1208 = vunpack.c.l.b16 %v713
        %v1209 = vunpack.c.h.b16 %v713
        %v1210 = vunpack.c.l.b16 %v714
        %v1211 = vunpack.c.h.b16 %v714
        %v1212 = vunpack.c.l.b16 %v715
        %v1213 = vunpack.c.h.b16 %v715
        %v1214 = vunpack.c.l.b16 %v716
        %v1215 = vunpack.c.h.b16 %v716
        %v1216 = vunpack.c.l.b16 %v717
        %v1217 = vunpack.c.h.b16 %v717
        %v1218 = vunpack.c.l.b16 %v718
        %v1219 = vunpack.c.h.b16 %v718
        %v1220 = vunpack.c.l.b16 %v719
        %v1221 = vunpack.c.h.b16 %v719
        %v1222 = vunpack.c.l.b16 %v720
        %v1223 = vunpack.c.h.b16 %v720
        %v1224 = vunpack.c.l.b16 %v721
        %v1225 = vunpack.c.h.b16 %v721
        %v1226 = vunpack.c.l.b16 %v722
        %v1227 = vunpack.c.h.b16 %v722
        %v1228 = vunpack.c.l.b16 %v723
        %v1229 = vunpack.c.h.b16 %v723
        %v1230 = vunpack.c.l.b16 %v724
        %v1231 = vunpack.c.h.b16 %v724
        %v1232 = vunpack.c.l.b16 %v725
        %v1233 = vunpack.c.h.b16 %v725
        %v1234 = vunpack.c.l.b16 %v726
        %v1235 = vunpack.c.h.b16 %v726
        %v1236 = vunpack.c.l.b16 %v727
        %v1237 = vunpack.c.h.b16 %v727
        %v1238 = vunpack.c.l.b16 %v728
        %v1239 = vunpack.c.h.b16 %v728
        %v1240 = vunpack.c.l.b16 %v729
        %v1241 = vunpack.c.h.b16 %v729
        %v1242 = vunpack.c.l.b16 %v730
        %v1243 = vunpack.c.h.b16 %v730
        %v1244 = vunpack.c.l.b16 %v731
        %v1245 = vunpack.c.h.b16 %v731
        %v1246 = vunpack.c.l.b16 %v732
        %v1247 = vunpack.c.h.b16 %v732
        %v1248 = vunpack.c.l.b16 %v733
        %v1249 = vunpack.c.h.b16 %v733
        %v1250 = vunpack.c.l.b16 %v734
        %v1251 = vunpack.c.h.b16 %v734
        %v1252 = vunpack.c.l.b16 %v735
        %v1253 = vunpack.c.h.b16 %v735
        %v1254 = vunpack.c.l.b16 %v736
        %v1255 = vunpack.c.h.b16 %v736
        %v1256 = vunpack.c.l.b16 %v737
        %v1257 = vunpack.c.h.b16 %v737
        %v1258 = vunpack.c.l.b16 %v738
        %v1259 = vunpack.c.h.b16 %v738
        %v1260 = vunpack.c.l.b16 %v739
        %v1261 = vunpack.c.h.b16 %v739
        %v1262 = vunpack.c.l.b16 %v740
        %v1263 = vunpack.c.h.b16 %v740
        %v1264 = vunpack.c.l.b16 %v741
        %v1265 = vunpack.c.h.b16 %v741
        %v1266 = vunpack.c.l.b16 %v742
        %v1267 = vunpack.c.h.b16 %v742
        %v1268 = vunpack.c.l.b16 %v743
        %v1269 = vunpack.c.h.b16 %v743
        %v1270 = vunpack.c.l.b16 %v744
        %v1271 = vunpack.c.h.b16 %v744
        %v1272 = vunpack.c.l.b16 %v745
        %v1273 = vunpack.c.h.b16 %v745
        %v1274 = vpack.c.b16 %v924, %v922
        %v1275 = vpack.c.b16 %v925, %v923
        %v1276 = vpack.c.b16 %v928, %v926
        %v1277 = vpack.c.b16 %v929, %v927
        %v1278 = vpack.c.b16 %v932, %v930
        %v1279 = vpack.c.b16 %v933, %v931
        %v1280 = vpack.c.b16 %v936, %v934
        %v1281 = vpack.c.b16 %v937, %v935
        %v1282 = vpack.c.b16 %v940, %v938
        %v1283 = vpack.c.b16 %v941, %v939
        %v1284 = vpack.c.b16 %v944, %v942
        %v1285 = vpack.c.b16 %v945, %v943
        %v1286 = vpack.c.b16 %v948, %v946
        %v1287 = vpack.c.b16 %v949, %v947
        %v1288 = vpack.c.b16 %v952, %v950
        %v1289 = vpack.c.b16 %v953, %v951
        %v1290 = vpack.c.b16 %v956, %v954
        %v1291 = vpack.c.b16 %v957, %v955
        %v1292 = vpack.c.b16 %v960, %v958
        %v1293 = vpack.c.b16 %v961, %v959
        %v1294 = vpack.c.b16 %v964, %v962
        %v1295 = vpack.c.b16 %v965, %v963
        %v1296 = vpack.c.b16 %v968, %v966
        %v1297 = vpack.c.b16 %v969, %v967
        %v1298 = vpack.c.b16 %v972, %v970
        %v1299 = vpack.c.b16 %v973, %v971
        %v1300 = vpack.c.b16 %v976, %v974
        %v1301 = vpack.c.b16 %v977, %v975
        %v1302 = vpack.c.b16 %v980, %v978
        %v1303 = vpack.c.b16 %v981, %v979
        %v1304 = vpack.c.b16 %v984, %v982
        %v1305 = vpack.c.b16 %v985, %v983
        %v1306 = vpack.c.b16 %v988, %v986
        %v1307 = vpack.c.b16 %v989, %v987
        %v1308 = vpack.c.b16 %v992, %v990
        %v1309 = vpack.c.b16 %v993, %v991
        %v1310 = vpack.c.b16 %v996, %v994
        %v1311 = vpack.c.b16 %v997, %v995
        %v1312 = vpack.c.b16 %v1000, %v998
        %v1313 = vpack.c.b16 %v1001, %v999
        %v1314 = vpack.c.b16 %v1004, %v1002
        %v1315 = vpack.c.b16 %v1005, %v1003
        %v1316 = vpack.c.b16 %v1008, %v1006
        %v1317 = vpack.c.b16 %v1009, %v1007
        %v1318 = vpack.c.b16 %v1012, %v1010
        %v1319 = vpack.c.b16 %v1013, %v1011
        %v1320 = vpack.c.b16 %v1016, %v1014
        %v1321 = vpack.c.b16 %v1017, %v1015
        %v1322 = vpack.c.b16 %v1020, %v1018
        %v1323 = vpack.c.b16 %v1021, %v1019
        %v1324 = vpack.c.b16 %v1024, %v1022
        %v1325 = vpack.c.b16 %v1025, %v1023
        %v1326 = vpack.c.b16 %v1028, %v1026
        %v1327 = vpack.c.b16 %v1029, %v1027
        %v1328 = vpack.c.b16 %v1032, %v1030
        %v1329 = vpack.c.b16 %v1033, %v1031
        %v1330 = vpack.c.b16 %v1036, %v1034
        %v1331 = vpack.c.b16 %v1037, %v1035
        %v1332 = vpack.c.b16 %v1040, %v1038
        %v1333 = vpack.c.b16 %v1041, %v1039
        %v1334 = vpack.c.b16 %v1044, %v1042
        %v1335 = vpack.c.b16 %v1045, %v1043
        %v1336 = vpack.c.b16 %v1048, %v1046
        %v1337 = vpack.c.b16 %v1049, %v1047
        %v1338 = vpack.c.b16 %v1052, %v1050
        %v1339 = vpack.c.b16 %v1053, %v1051
        %v1340 = vpack.c.b16 %v1056, %v1054
        %v1341 = vpack.c.b16 %v1057, %v1055
        %v1342 = vpack.c.b16 %v1060, %v1058
        %v1343 = vpack.c.b16 %v1061, %v1059
        %v1344 = vpack.c.b16 %v1064, %v1062
        %v1345 = vpack.c.b16 %v1065, %v1063
        %v1346 = vpack.c.b16 %v1068, %v1066
        %v1347 = vpack.c.b16 %v1069, %v1067
        %v1348 = vpack.c.b16 %v1072, %v1070
        %v1349 = vpack.c.b16 %v1073, %v1071
        %v1350 = vpack.c.b16 %v1076, %v1074
        %v1351 = vpack.c.b16 %v1077, %v1075
        %v1352 = vpack.c.b16 %v1080, %v1078
        %v1353 = vpack.c.b16 %v1081, %v1079
        %v1354 = vpack.c.b16 %v1084, %v1082
        %v1355 = vpack.c.b16 %v1085, %v1083
        %v1356 = vpack.c.b16 %v1088, %v1086
        %v1357 = vpack.c.b16 %v1089, %v1087
        %v1358 = vpack.c.b16 %v1092, %v1090
        %v1359 = vpack.c.b16 %v1093, %v1091
        %v1360 = vpack.c.b16 %v1096, %v1094
        %v1361 = vpack.c.b16 %v1097, %v1095
        %v1362 = vpack.c.b16 %v1100, %v1098
        %v1363 = vpack.c.b16 %v1101, %v1099
        %v1364 = vpack.c.b16 %v1104, %v1102
        %v1365 = vpack.c.b16 %v1105, %v1103
        %v1366 = vpack.c.b16 %v1108, %v1106
        %v1367 = vpack.c.b16 %v1109, %v1107
        %v1368 = vpack.c.b16 %v1112, %v1110
        %v1369 = vpack.c.b16 %v1113, %v1111
        %v1370 = vpack.c.b16 %v1116, %v1114
        %v1371 = vpack.c.b16 %v1117, %v1115
        %v1372 = vpack.c.b16 %v1120, %v1118
        %v1373 = vpack.c.b16 %v1121, %v1119
        %v1374 = vpack.c.b16 %v1124, %v1122
        %v1375 = vpack.c.b16 %v1125, %v1123
        %v1376 = vpack.c.b16 %v1128, %v1126
        %v1377 = vpack.c.b16 %v1129, %v1127
        %v1378 = vpack.c.b16 %v1132, %v1130
        %v1379 = vpack.c.b16 %v1133, %v1131
        %v1380 = vpack.c.b16 %v1136, %v1134
        %v1381 = vpack.c.b16 %v1137, %v1135
        %v1382 = vpack.c.b16 %v1140, %v1138
        %v1383 = vpack.c.b16 %v1141, %v1139
        %v1384 = vpack.c.b16 %v1144, %v1142
        %v1385 = vpack.c.b16 %v1145, %v1143
        %v1386 = vpack.c.b16 %v1148, %v1146
        %v1387 = vpack.c.b16 %v1149, %v1147
        %v1388 = vpack.c.b16 %v1152, %v1150
        %v1389 = vpack.c.b16 %v1153, %v1151
        %v1390 = vpack.c.b16 %v1156, %v1154
        %v1391 = vpack.c.b16 %v1157, %v1155
        %v1392 = vpack.c.b16 %v1160, %v1158
        %v1393 = vpack.c.b16 %v1161, %v1159
        %v1394 = vpack.c.b16 %v1164, %v1162
        %v1395 = vpack.c.b16 %v1165, %v1163
        %v1396 = vpack.c.b16 %v1168, %v1166
        %v1397 = vpack.c.b16 %v1169, %v1167
        %v1398 = vpack.c.b16 %v1172, %v1170
        %v1399 = vpack.c.b16 %v1173, %v1171
        %v1400 = vpack.c.b16 %v1176, %v1174
        %v1401 = vpack.c.b16 %v1177, %v1175
        %v1402 = vpack.c.b16 %v1180, %v1178
        %v1403 = vpack.c.b16 %v1181, %v1179
        %v1404 = vpack.c.b16 %v1184, %v1182
        %v1405 = vpack.c.b16 %v1185, %v1183
        %v1406 = vpack.c.b16 %v1188, %v1186
        %v1407 = vpack.c.b16 %v1189, %v1187
        %v1408 = vpack.c.b16 %v1192, %v1190
        %v1409 = vpack.c.b16 %v1193, %v1191
        %v1410 = vpack.c.b16 %v1196, %v1194
        %v1411 = vpack.c.b16 %v1197, %v1195
        %v1412 = vpack.c.b16 %v1200, %v1198
        %v1413 = vpack.c.b16 %v1201, %v1199
        %v1414 = vpack.c.b16 %v1204, %v1202
        %v1415 = vpack.c.b16 %v1205, %v1203
        %v1416 = vpack.c.b16 %v1208, %v1206
        %v1417 = vpack.c.b16 %v1209, %v1207
        %v1418 = vpack.c.b16 %v1212, %v1210
        %v1419 = vpack.c.b16 %v1213, %v1211
        %v1420 = vpack.c.b16 %v1216, %v1214
        %v1421 = vpack.c.b16 %v1217, %v1215
        %v1422 = vpack.c.b16 %v1220, %v1218
        %v1423 = vpack.c.b16 %v1221, %v1219
        %v1424 = vpack.c.b16 %v1224, %v1222
        %v1425 = vpack.c.b16 %v1225, %v1223
        %v1426 = vpack.c.b16 %v1228, %v1226
        %v1427 = vpack.c.b16 %v1229, %v1227
        %v1428 = vpack.c.b16 %v1232, %v1230
        %v1429 = vpack.c.b16 %v1233, %v1231
        %v1430 = vpack.c.b16 %v1236, %v1234
        %v1431 = vpack.c.b16 %v1237, %v1235
        %v1432 = vpack.c.b16 %v1240, %v1238
        %v1433 = vpack.c.b16 %v1241, %v1239
        %v1434 = vpack.c.b16 %v1244, %v1242
        %v1435 = vpack.c.b16 %v1245, %v1243
        %v1436 = vpack.c.b16 %v1248, %v1246
        %v1437 = vpack.c.b16 %v1249, %v1247
        %v1438 = vpack.c.b16 %v1252, %v1250
        %v1439 = vpack.c.b16 %v1253, %v1251
        %v1440 = vpack.c.b16 %v1256, %v1254
        %v1441 = vpack.c.b16 %v1257, %v1255
        %v1442 = vpack.c.b16 %v1260, %v1258
        %v1443 = vpack.c.b16 %v1261, %v1259
        %v1444 = vpack.c.b16 %v1264, %v1262
        %v1445 = vpack.c.b16 %v1265, %v1263
        %v1446 = vpack.c.b16 %v1268, %v1266
        %v1447 = vpack.c.b16 %v1269, %v1267
        %v1448 = vpack.c.b16 %v1272, %v1270
        %v1449 = vpack.c.b16 %v1273, %v1271
        %1626 = vmatprep.subr.bf16.mxu0 %v1289
        %1627 = vmatpush1.bf16.msra.mxu0 %v1288
        %1628 = vmatprep.subr.bf16.mxu0 %v1287
        %1629 = vmatpush1.bf16.msra.mxu0 %v1286
        %1630 = vmatprep.subr.bf16.mxu0 %v1285
        %1631 = vmatpush1.bf16.msra.mxu0 %v1284
        %1632 = vmatprep.subr.bf16.mxu0 %v1283
        %1633 = vmatpush1.bf16.msra.mxu0 %v1282
        %1634 = vmatprep.subr.bf16.mxu0 %v1281
        %1635 = vmatpush1.bf16.msra.mxu0 %v1280
        %1636 = vmatprep.subr.bf16.mxu0 %v1279
        %1637 = vmatpush1.bf16.msra.mxu0 %v1278
        %1638 = vmatprep.subr.bf16.mxu0 %v1277
        %1639 = vmatpush1.bf16.msra.mxu0 %v1276
        %1640 = vmatprep.subr.bf16.mxu0 %v1275
        %1641 = vmatpush1.bf16.msra.mxu0 %v1274
        %1642 = vmatprep.subr.bf16.mxu0 %v1305
        %1643 = vmatpush2.bf16.msra.mxu0 %v1304
        %1644 = vmatprep.subr.bf16.mxu0 %v1303
        %1645 = vmatpush2.bf16.msra.mxu0 %v1302
        %1646 = vmatprep.subr.bf16.mxu0 %v1301
        %1647 = vmatpush2.bf16.msra.mxu0 %v1300
        %1648 = vmatprep.subr.bf16.mxu0 %v1299
        %1649 = vmatpush2.bf16.msra.mxu0 %v1298
        %1650 = vmatprep.subr.bf16.mxu0 %v1297
        %1651 = vmatpush2.bf16.msra.mxu0 %v1296
        %1652 = vmatprep.subr.bf16.mxu0 %v1295
        %1653 = vmatpush2.bf16.msra.mxu0 %v1294
        %1654 = vmatprep.subr.bf16.mxu0 %v1293
        %1655 = vmatpush2.bf16.msra.mxu0 %v1292
        %1656 = vmatprep.subr.bf16.mxu0 %v1291
        %1657 = vmatpush2.bf16.msra.mxu0 %v1290
        %1658 = vmatprep.mubr.bf16.mxu0 %v388
        %1659 = vmatmul.mubr.bf16.gmra.mxu0 %v368
        %v1660 = vpop.f32.mrf.mxu0
        %v1661 = vadd.f32 0.0, %v1660
        %v1662 = vpop.f32.mrf.mxu0
        %v1663 = vpop.f32.mrf.mxu0
        %v1664 = vadd.f32 0.0, %v1663
        %v1665 = vpop.f32.mrf.mxu0
        %v1666 = vadd.f32 0.0, %v1665
        %1667 = vmatprep.mubr.bf16.mxu0 %v396
        %1668 = vmatmul.mubr.bf16.gmra.mxu0 %v369
        %v1669 = vpop.f32.mrf.mxu0
        %v1670 = vadd.f32 0.0, %v1669
        %v1671 = vpop.f32.mrf.mxu0
        %v1672 = vadd.f32 0.0, %v1671
        %v1673 = vpop.f32.mrf.mxu0
        %v1674 = vadd.f32 0.0, %v1673
        %v1675 = vpop.f32.mrf.mxu0
        %v1676 = vadd.f32 0.0, %v1675
        %1677 = vmatprep.mubr.bf16.mxu0 %v404
        %1678 = vmatmul.mubr.bf16.gmra.mxu0 %v370
        %v1679 = vpop.f32.mrf.mxu0
        %v1680 = vadd.f32 0.0, %v1679
        %v1681 = vpop.f32.mrf.mxu0
        %v1682 = vadd.f32 0.0, %v1681
        %v1683 = vpop.f32.mrf.mxu0
        %v1684 = vadd.f32 0.0, %v1683
        %v1685 = vpop.f32.mrf.mxu0
        %v1686 = vadd.f32 0.0, %v1685
        %1687 = vmatprep.mubr.bf16.mxu0 %v407
        %1688 = vmatmul.mubr.bf16.gmra.mxu0 %v371
        %v1689 = vpop.f32.mrf.mxu0
        %v1690 = vadd.f32 0.0, %v1689
        %v1691 = vpop.f32.mrf.mxu0
        %v1692 = vpop.f32.mrf.mxu0
        %v1693 = vpop.f32.mrf.mxu0
        %1694 = vdwg.mxu0
        %1695 = vmatprep.subr.bf16.mxu0 %v1321
        %1696 = vmatpush1.bf16.msra.mxu0 %v1320
        %1697 = vmatprep.subr.bf16.mxu0 %v1319
        %1698 = vmatpush1.bf16.msra.mxu0 %v1318
        %1699 = vmatprep.subr.bf16.mxu0 %v1317
        %1700 = vmatpush1.bf16.msra.mxu0 %v1316
        %1701 = vmatprep.subr.bf16.mxu0 %v1315
        %1702 = vmatpush1.bf16.msra.mxu0 %v1314
        %1703 = vmatprep.subr.bf16.mxu0 %v1313
        %1704 = vmatpush1.bf16.msra.mxu0 %v1312
        %1705 = vmatprep.subr.bf16.mxu0 %v1311
        %1706 = vmatpush1.bf16.msra.mxu0 %v1310
        %1707 = vmatprep.subr.bf16.mxu0 %v1309
        %1708 = vmatpush1.bf16.msra.mxu0 %v1308
        %1709 = vmatprep.subr.bf16.mxu0 %v1307
        %1710 = vmatpush1.bf16.msra.mxu0 %v1306
        %1711 = vmatprep.subr.bf16.mxu0 %v1337
        %1712 = vmatpush2.bf16.msra.mxu0 %v1336
        %1713 = vmatprep.subr.bf16.mxu0 %v1335
        %1714 = vmatpush2.bf16.msra.mxu0 %v1334
        %1715 = vmatprep.subr.bf16.mxu0 %v1333
        %1716 = vmatpush2.bf16.msra.mxu0 %v1332
        %1717 = vmatprep.subr.bf16.mxu0 %v1331
        %1718 = vmatpush2.bf16.msra.mxu0 %v1330
        %1719 = vmatprep.subr.bf16.mxu0 %v1329
        %1720 = vmatpush2.bf16.msra.mxu0 %v1328
        %1721 = vmatprep.subr.bf16.mxu0 %v1327
        %1722 = vmatpush2.bf16.msra.mxu0 %v1326
        %1723 = vmatprep.subr.bf16.mxu0 %v1325
        %1724 = vmatpush2.bf16.msra.mxu0 %v1324
        %1725 = vmatprep.subr.bf16.mxu0 %v1323
        %1726 = vmatpush2.bf16.msra.mxu0 %v1322
        %1727 = vmatprep.mubr.bf16.mxu0 %v434
        %1728 = vmatmul.mubr.bf16.gmra.mxu0 %v415
        %v1729 = vpop.f32.mrf.mxu0
        %v1730 = vadd.f32 %v1661, %v1729
        %v1731 = vpop.f32.mrf.mxu0
        %v1732 = vpop.f32.mrf.mxu0
        %v1733 = vadd.f32 %v1664, %v1732
        %v1734 = vpop.f32.mrf.mxu0
        %v1735 = vadd.f32 %v1666, %v1734
        %1736 = vmatprep.mubr.bf16.mxu0 %v438
        %1737 = vmatmul.mubr.bf16.gmra.mxu0 %v417
        %v1738 = vpop.f32.mrf.mxu0
        %v1739 = vadd.f32 %v1670, %v1738
        %v1740 = vpop.f32.mrf.mxu0
        %v1741 = vadd.f32 %v1672, %v1740
        %v1742 = vpop.f32.mrf.mxu0
        %v1743 = vadd.f32 %v1674, %v1742
        %v1744 = vpop.f32.mrf.mxu0
        %v1745 = vadd.f32 %v1676, %v1744
        %1746 = vmatprep.mubr.bf16.mxu0 %v447
        %1747 = vmatmul.mubr.bf16.gmra.mxu0 %v419
        %v1748 = vpop.f32.mrf.mxu0
        %v1749 = vadd.f32 %v1680, %v1748
        %v1750 = vpop.f32.mrf.mxu0
        %v1751 = vadd.f32 %v1682, %v1750
        %v1752 = vpop.f32.mrf.mxu0
        %v1753 = vadd.f32 %v1684, %v1752
        %v1754 = vpop.f32.mrf.mxu0
        %v1755 = vadd.f32 %v1686, %v1754
        %1756 = vmatprep.mubr.bf16.mxu0 %v446
        %1757 = vmatmul.mubr.bf16.gmra.mxu0 %v418
        %v1758 = vpop.f32.mrf.mxu0
        %v1759 = vadd.f32 %v1690, %v1758
        %v1760 = vpop.f32.mrf.mxu0
        %v1761 = vpop.f32.mrf.mxu0
        %v1762 = vpop.f32.mrf.mxu0
        %1763 = vdwg.mxu0
        %1764 = vmatprep.subr.bf16.mxu0 %v1353
        %1765 = vmatpush1.bf16.msra.mxu0 %v1352
        %1766 = vmatprep.subr.bf16.mxu0 %v1351
        %1767 = vmatpush1.bf16.msra.mxu0 %v1350
        %1768 = vmatprep.subr.bf16.mxu0 %v1349
        %1769 = vmatpush1.bf16.msra.mxu0 %v1348
        %1770 = vmatprep.subr.bf16.mxu0 %v1347
        %1771 = vmatpush1.bf16.msra.mxu0 %v1346
        %1772 = vmatprep.subr.bf16.mxu0 %v1345
        %1773 = vmatpush1.bf16.msra.mxu0 %v1344
        %1774 = vmatprep.subr.bf16.mxu0 %v1343
        %1775 = vmatpush1.bf16.msra.mxu0 %v1342
        %1776 = vmatprep.subr.bf16.mxu0 %v1341
        %1777 = vmatpush1.bf16.msra.mxu0 %v1340
        %1778 = vmatprep.subr.bf16.mxu0 %v1339
        %1779 = vmatpush1.bf16.msra.mxu0 %v1338
        %1780 = vmatprep.subr.bf16.mxu0 %v1369
        %1781 = vmatpush2.bf16.msra.mxu0 %v1368
        %1782 = vmatprep.subr.bf16.mxu0 %v1367
        %1783 = vmatpush2.bf16.msra.mxu0 %v1366
        %1784 = vmatprep.subr.bf16.mxu0 %v1365
        %1785 = vmatpush2.bf16.msra.mxu0 %v1364
        %1786 = vmatprep.subr.bf16.mxu0 %v1363
        %1787 = vmatpush2.bf16.msra.mxu0 %v1362
        %1788 = vmatprep.subr.bf16.mxu0 %v1361
        %1789 = vmatpush2.bf16.msra.mxu0 %v1360
        %1790 = vmatprep.subr.bf16.mxu0 %v1359
        %1791 = vmatpush2.bf16.msra.mxu0 %v1358
        %1792 = vmatprep.subr.bf16.mxu0 %v1357
        %1793 = vmatpush2.bf16.msra.mxu0 %v1356
        %1794 = vmatprep.subr.bf16.mxu0 %v1355
        %1795 = vmatpush2.bf16.msra.mxu0 %v1354
        %1796 = vmatprep.mubr.bf16.mxu0 %v471
        %1797 = vmatmul.mubr.bf16.gmra.mxu0 %v455
        %v1798 = vpop.f32.mrf.mxu0
        %v1799 = vadd.f32 %v1730, %v1798
        %v1800 = vpop.f32.mrf.mxu0
        %v1801 = vpop.f32.mrf.mxu0
        %v1802 = vadd.f32 %v1733, %v1801
        %v1803 = vpop.f32.mrf.mxu0
        %v1804 = vadd.f32 %v1735, %v1803
        %1805 = vmatprep.mubr.bf16.mxu0 %v475
        %1806 = vmatmul.mubr.bf16.gmra.mxu0 %v457
        %v1807 = vpop.f32.mrf.mxu0
        %v1808 = vadd.f32 %v1739, %v1807
        %v1809 = vpop.f32.mrf.mxu0
        %v1810 = vadd.f32 %v1741, %v1809
        %v1811 = vpop.f32.mrf.mxu0
        %v1812 = vadd.f32 %v1743, %v1811
        %v1813 = vpop.f32.mrf.mxu0
        %v1814 = vadd.f32 %v1745, %v1813
        %1815 = vmatprep.mubr.bf16.mxu0 %v479
        %1816 = vmatmul.mubr.bf16.gmra.mxu0 %v459
        %v1817 = vpop.f32.mrf.mxu0
        %v1818 = vadd.f32 %v1749, %v1817
        %v1819 = vpop.f32.mrf.mxu0
        %v1820 = vadd.f32 %v1751, %v1819
        %v1821 = vpop.f32.mrf.mxu0
        %v1822 = vadd.f32 %v1753, %v1821
        %v1823 = vpop.f32.mrf.mxu0
        %v1824 = vadd.f32 %v1755, %v1823
        %1825 = vmatprep.mubr.bf16.mxu0 %v478
        %1826 = vmatmul.mubr.bf16.gmra.mxu0 %v458
        %v1827 = vpop.f32.mrf.mxu0
        %v1828 = vadd.f32 %v1759, %v1827
        %v1829 = vpop.f32.mrf.mxu0
        %v1830 = vpop.f32.mrf.mxu0
        %v1831 = vpop.f32.mrf.mxu0
        %1832 = vdwg.mxu0
        %1833 = vmatprep.subr.bf16.mxu0 %v1385
        %1834 = vmatpush1.bf16.msra.mxu0 %v1384
        %1835 = vmatprep.subr.bf16.mxu0 %v1383
        %1836 = vmatpush1.bf16.msra.mxu0 %v1382
        %1837 = vmatprep.subr.bf16.mxu0 %v1381
        %1838 = vmatpush1.bf16.msra.mxu0 %v1380
        %1839 = vmatprep.subr.bf16.mxu0 %v1379
        %1840 = vmatpush1.bf16.msra.mxu0 %v1378
        %1841 = vmatprep.subr.bf16.mxu0 %v1377
        %1842 = vmatpush1.bf16.msra.mxu0 %v1376
        %1843 = vmatprep.subr.bf16.mxu0 %v1375
        %1844 = vmatpush1.bf16.msra.mxu0 %v1374
        %1845 = vmatprep.subr.bf16.mxu0 %v1373
        %1846 = vmatpush1.bf16.msra.mxu0 %v1372
        %1847 = vmatprep.subr.bf16.mxu0 %v1371
        %1848 = vmatpush1.bf16.msra.mxu0 %v1370
        %1849 = vmatprep.subr.bf16.mxu0 %v1401
        %1850 = vmatpush2.bf16.msra.mxu0 %v1400
        %1851 = vmatprep.subr.bf16.mxu0 %v1399
        %1852 = vmatpush2.bf16.msra.mxu0 %v1398
        %1853 = vmatprep.subr.bf16.mxu0 %v1397
        %1854 = vmatpush2.bf16.msra.mxu0 %v1396
        %1855 = vmatprep.subr.bf16.mxu0 %v1395
        %1856 = vmatpush2.bf16.msra.mxu0 %v1394
        %1857 = vmatprep.subr.bf16.mxu0 %v1393
        %1858 = vmatpush2.bf16.msra.mxu0 %v1392
        %1859 = vmatprep.subr.bf16.mxu0 %v1391
        %1860 = vmatpush2.bf16.msra.mxu0 %v1390
        %1861 = vmatprep.subr.bf16.mxu0 %v1389
        %1862 = vmatpush2.bf16.msra.mxu0 %v1388
        %1863 = vmatprep.subr.bf16.mxu0 %v1387
        %1864 = vmatpush2.bf16.msra.mxu0 %v1386
        %1865 = vmatprep.mubr.bf16.mxu0 %v503
        %1866 = vmatmul.mubr.bf16.gmra.mxu0 %v487
        %v1867 = vpop.f32.mrf.mxu0
        %v1868 = vadd.f32 %v1799, %v1867
        %v1869 = vpop.f32.mrf.mxu0
        %v1870 = vpop.f32.mrf.mxu0
        %v1871 = vadd.f32 %v1802, %v1870
        %v1872 = vpop.f32.mrf.mxu0
        %v1873 = vadd.f32 %v1804, %v1872
        %1874 = vmatprep.mubr.bf16.mxu0 %v507
        %1875 = vmatmul.mubr.bf16.gmra.mxu0 %v489
        %v1876 = vpop.f32.mrf.mxu0
        %v1877 = vadd.f32 %v1808, %v1876
        %v1878 = vpop.f32.mrf.mxu0
        %v1879 = vadd.f32 %v1810, %v1878
        %v1880 = vpop.f32.mrf.mxu0
        %v1881 = vadd.f32 %v1812, %v1880
        %v1882 = vpop.f32.mrf.mxu0
        %v1883 = vadd.f32 %v1814, %v1882
        %1884 = vmatprep.mubr.bf16.mxu0 %v511
        %1885 = vmatmul.mubr.bf16.gmra.mxu0 %v491
        %v1886 = vpop.f32.mrf.mxu0
        %v1887 = vadd.f32 %v1818, %v1886
        %v1888 = vpop.f32.mrf.mxu0
        %v1889 = vadd.f32 %v1820, %v1888
        %v1890 = vpop.f32.mrf.mxu0
        %v1891 = vadd.f32 %v1822, %v1890
        %v1892 = vpop.f32.mrf.mxu0
        %v1893 = vadd.f32 %v1824, %v1892
        %1894 = vmatprep.mubr.bf16.mxu0 %v510
        %1895 = vmatmul.mubr.bf16.gmra.mxu0 %v490
        %v1896 = vpop.f32.mrf.mxu0
        %v1897 = vadd.f32 %v1828, %v1896
        %v1898 = vpop.f32.mrf.mxu0
        %v1899 = vpop.f32.mrf.mxu0
        %v1900 = vpop.f32.mrf.mxu0
        %1901 = vdwg.mxu0
        %1902 = vmatprep.subr.bf16.mxu0 %v1417
        %1903 = vmatpush1.bf16.msra.mxu0 %v1416
        %1904 = vmatprep.subr.bf16.mxu0 %v1415
        %1905 = vmatpush1.bf16.msra.mxu0 %v1414
        %1906 = vmatprep.subr.bf16.mxu0 %v1413
        %1907 = vmatpush1.bf16.msra.mxu0 %v1412
        %1908 = vmatprep.subr.bf16.mxu0 %v1411
        %1909 = vmatpush1.bf16.msra.mxu0 %v1410
        %1910 = vmatprep.subr.bf16.mxu0 %v1409
        %1911 = vmatpush1.bf16.msra.mxu0 %v1408
        %1912 = vmatprep.subr.bf16.mxu0 %v1407
        %1913 = vmatpush1.bf16.msra.mxu0 %v1406
        %1914 = vmatprep.subr.bf16.mxu0 %v1405
        %1915 = vmatpush1.bf16.msra.mxu0 %v1404
        %1916 = vmatprep.subr.bf16.mxu0 %v1403
        %1917 = vmatpush1.bf16.msra.mxu0 %v1402
        %1918 = vmatprep.subr.bf16.mxu0 %v1433
        %1919 = vmatpush2.bf16.msra.mxu0 %v1432
        %1920 = vmatprep.subr.bf16.mxu0 %v1431
        %1921 = vmatpush2.bf16.msra.mxu0 %v1430
        %1922 = vmatprep.subr.bf16.mxu0 %v1429
        %1923 = vmatpush2.bf16.msra.mxu0 %v1428
        %1924 = vmatprep.subr.bf16.mxu0 %v1427
        %1925 = vmatpush2.bf16.msra.mxu0 %v1426
        %1926 = vmatprep.subr.bf16.mxu0 %v1425
        %1927 = vmatpush2.bf16.msra.mxu0 %v1424
        %1928 = vmatprep.subr.bf16.mxu0 %v1423
        %1929 = vmatpush2.bf16.msra.mxu0 %v1422
        %1930 = vmatprep.subr.bf16.mxu0 %v1421
        %1931 = vmatpush2.bf16.msra.mxu0 %v1420
        %1932 = vmatprep.subr.bf16.mxu0 %v1419
        %1933 = vmatpush2.bf16.msra.mxu0 %v1418
        %1934 = vmatprep.mubr.bf16.mxu0 %v535
        %1935 = vmatmul.mubr.bf16.gmra.mxu0 %v516
        %v1936 = vpop.f32.mrf.mxu0
        %v1937 = vadd.f32 %v1868, %v1936
        %v1938 = vpop.f32.mrf.mxu0
        %v1939 = vpop.f32.mrf.mxu0
        %v1940 = vadd.f32 %v1871, %v1939
        %v1941 = vpop.f32.mrf.mxu0
        %v1942 = vadd.f32 %v1873, %v1941
        %1943 = vmatprep.mubr.bf16.mxu0 %v543
        %1944 = vmatmul.mubr.bf16.gmra.mxu0 %v517
        %v1945 = vpop.f32.mrf.mxu0
        %v1946 = vadd.f32 %v1877, %v1945
        %v1947 = vpop.f32.mrf.mxu0
        %v1948 = vadd.f32 %v1879, %v1947
        %v1949 = vpop.f32.mrf.mxu0
        %v1950 = vadd.f32 %v1881, %v1949
        %v1951 = vpop.f32.mrf.mxu0
        %v1952 = vadd.f32 %v1883, %v1951
        %1953 = vmatprep.mubr.bf16.mxu0 %v551
        %1954 = vmatmul.mubr.bf16.gmra.mxu0 %v518
        %v1955 = vpop.f32.mrf.mxu0
        %v1956 = vadd.f32 %v1887, %v1955
        %v1957 = vpop.f32.mrf.mxu0
        %v1958 = vadd.f32 %v1889, %v1957
        %v1959 = vpop.f32.mrf.mxu0
        %v1960 = vadd.f32 %v1891, %v1959
        %v1961 = vpop.f32.mrf.mxu0
        %v1962 = vadd.f32 %v1893, %v1961
        %1963 = vmatprep.mubr.bf16.mxu0 %v554
        %1964 = vmatmul.mubr.bf16.gmra.mxu0 %v519
        %v1965 = vpop.f32.mrf.mxu0
        %v1966 = vadd.f32 %v1897, %v1965
        %v1967 = vpop.f32.mrf.mxu0
        %v1968 = vpop.f32.mrf.mxu0
        %v1969 = vpop.f32.mrf.mxu0
        %1970 = vdwg.mxu0
        %1971 = vmatprep.subr.bf16.mxu0 %v1449
        %1972 = vmatpush1.bf16.msra.mxu0 %v1448
        %1973 = vmatprep.subr.bf16.mxu0 %v1447
        %1974 = vmatpush1.bf16.msra.mxu0 %v1446
        %1975 = vmatprep.subr.bf16.mxu0 %v1445
        %1976 = vmatpush1.bf16.msra.mxu0 %v1444
        %1977 = vmatprep.subr.bf16.mxu0 %v1443
        %1978 = vmatpush1.bf16.msra.mxu0 %v1442
        %1979 = vmatprep.subr.bf16.mxu0 %v1441
        %1980 = vmatpush1.bf16.msra.mxu0 %v1440
        %1981 = vmatprep.subr.bf16.mxu0 %v1439
        %1982 = vmatpush1.bf16.msra.mxu0 %v1438
        %1983 = vmatprep.subr.bf16.mxu0 %v1437
        %1984 = vmatpush1.bf16.msra.mxu0 %v1436
        %1985 = vmatprep.subr.bf16.mxu0 %v1435
        %1986 = vmatpush1.bf16.msra.mxu0 %v1434
        %1987 = vmatprep.subr.bf16.mxu0 0
        %1988 = vmatpush2.bf16.msra.mxu0 0
        %1989 = vmatprep.subr.bf16.mxu0 0
        %1990 = vmatpush2.bf16.msra.mxu0 0
        %1991 = vmatprep.subr.bf16.mxu0 0
        %1992 = vmatpush2.bf16.msra.mxu0 0
        %1993 = vmatprep.subr.bf16.mxu0 0
        %1994 = vmatpush2.bf16.msra.mxu0 0
        %1995 = vmatprep.subr.bf16.mxu0 0
        %1996 = vmatpush2.bf16.msra.mxu0 0
        %1997 = vmatprep.subr.bf16.mxu0 0
        %1998 = vmatpush2.bf16.msra.mxu0 0
        %1999 = vmatprep.subr.bf16.mxu0 0
        %2000 = vmatpush2.bf16.msra.mxu0 0
        %2001 = vmatprep.subr.bf16.mxu0 0
        %2002 = vmatpush2.bf16.msra.mxu0 0
        %2003 = vmatprep.mubr.bf16.mxu0 0
        %2004 = vmatmul.mubr.bf16.gmra.mxu0 %v561
        %v2005 = vpop.f32.mrf.mxu0
        %v2006 = vadd.f32 %v1937, %v2005
        %v2007 = vpop.f32.mrf.mxu0
        %v2008 = vpop.f32.mrf.mxu0
        %v2009 = vadd.f32 %v1940, %v2008
        %v2010 = vpop.f32.mrf.mxu0
        %v2011 = vadd.f32 %v1942, %v2010
        %2012 = vmatprep.mubr.bf16.mxu0 0
        %2013 = vmatmul.mubr.bf16.gmra.mxu0 %v563
        %v2014 = vpop.f32.mrf.mxu0
        %v2015 = vadd.f32 %v1946, %v2014
        %v2016 = vpop.f32.mrf.mxu0
        %v2017 = vadd.f32 %v1948, %v2016
        %v2018 = vpop.f32.mrf.mxu0
        %v2019 = vadd.f32 %v1950, %v2018
        %v2020 = vpop.f32.mrf.mxu0
        %v2021 = vadd.f32 %v1952, %v2020
        %2022 = vmatprep.mubr.bf16.mxu0 0
        %2023 = vmatmul.mubr.bf16.gmra.mxu0 %v565
        %v2024 = vpop.f32.mrf.mxu0
        %v2025 = vadd.f32 %v1956, %v2024
        %v2026 = vpop.f32.mrf.mxu0
        %v2027 = vadd.f32 %v1958, %v2026
        %v2028 = vpop.f32.mrf.mxu0
        %v2029 = vadd.f32 %v1960, %v2028
        %v2030 = vpop.f32.mrf.mxu0
        %v2031 = vadd.f32 %v1962, %v2030
        %2032 = vmatprep.mubr.bf16.mxu0 0
        %2033 = vmatmul.mubr.bf16.gmra.mxu0 %v564
        %v2034 = vpop.f32.mrf.mxu0
        %v2035 = vadd.f32 %v1966, %v2034
        %v2036 = vpop.f32.mrf.mxu0
        %v2037 = vpop.f32.mrf.mxu0
        %v2038 = vpop.f32.mrf.mxu0
        %2039 = vdwg.mxu0
        %v2040 = vld [vmem:[%s3] sm:$0x1]
        %v2042 = vlaneseq
        %v2043 = vshrl.u32 %v2042, 7
        %v2044 = vsub.s32 0, %v2043
        %v2045 = vrot.slane %v2040, %v2044
        %v2047 = vadd.f32 %v2006, %v2045
        %v2048 = vadd.f32 %v2009, %v2045
        %v2049 = vadd.f32 %v2015, %v2045
        %v2050 = vadd.f32 %v2019, %v2045
        %v2051 = vadd.f32 %v2025, %v2045
        %v2052 = vadd.f32 %v2029, %v2045
        %v2053 = vadd.f32 %v2035, %v2045
        %v2054 = vlaneseq
        %v2055 = vshrl.u32 %v2054, 7
        %v2056 = vadd.s32 %v2055, 8
        %v2057 = vadd.s32 %v2055, 16
        %v2058 = vadd.s32 %v2055, 24
        %v2059 = vadd.s32 %v2055, 32
        %v2060 = vadd.s32 %v2055, 40
        %v2061 = vadd.s32 %v2055, 48
        %s2062 = sadd.s32 %s196, 4294967285
        %v2063 = vstv %s2062
        %v2064 = vadd.s32 %v2055, %v2063
        %v2065 = vadd.s32 %v2056, %v2063
        %v2066 = vadd.s32 %v2057, %v2063
        %v2067 = vadd.s32 %v2058, %v2063
        %v2068 = vadd.s32 %v2059, %v2063
        %v2069 = vadd.s32 %v2060, %v2063
        %v2070 = vadd.s32 %v2061, %v2063
        %vm2071 = vcmp.ge.s32.totalorder %v2064, 0
        %vm2072 = vcmp.ge.s32.totalorder %v2065, 0
        %vm2073 = vcmp.ge.s32.totalorder %v2066, 0
        %vm2074 = vcmp.ge.s32.totalorder %v2067, 0
        %vm2075 = vcmp.ge.s32.totalorder %v2068, 0
        %vm2076 = vcmp.ge.s32.totalorder %v2069, 0
        %vm2077 = vcmp.ge.s32.totalorder %v2070, 0
        %vm2078 = vcmp.lt.s32.totalorder %v2064, 64
        %vm2079 = vcmp.lt.s32.totalorder %v2065, 64
        %vm2080 = vcmp.lt.s32.totalorder %v2066, 64
        %vm2081 = vcmp.lt.s32.totalorder %v2067, 64
        %vm2082 = vcmp.lt.s32.totalorder %v2068, 64
        %vm2083 = vcmp.lt.s32.totalorder %v2069, 64
        %vm2084 = vcmp.lt.s32.totalorder %v2070, 64
        %vm2085 = vmand %vm2071, %vm2078
        %vm2086 = vmand %vm2072, %vm2079
        %vm2087 = vmand %vm2073, %vm2080
        %vm2088 = vmand %vm2074, %vm2081
        %vm2089 = vmand %vm2075, %vm2082
        %vm2090 = vmand %vm2076, %vm2083
        %vm2091 = vmand %vm2077, %vm2084
        %v2092 = vmax.f32 %v2047, 0.0
        %v2093 = vmax.f32 %v2048, 0.0
        %v2094 = vmax.f32 %v2049, 0.0
        %v2095 = vmax.f32 %v2050, 0.0
        %v2096 = vmax.f32 %v2051, 0.0
        %v2097 = vmax.f32 %v2052, 0.0
        %v2098 = vmax.f32 %v2053, 0.0
        %v2099 = vsel %vm2085, 1, 0
        %v2100 = vsel %vm2086, 1, 0
        %v2101 = vsel %vm2087, 1, 0
        %v2102 = vsel %vm2088, 1, 0
        %v2103 = vsel %vm2089, 1, 0
        %v2104 = vsel %vm2090, 1, 0
        %v2105 = vsel %vm2091, 1, 0
        %vm2106 = vcmp.eq.s32.totalorder %v2099, 1
        %vm2107 = vcmp.eq.s32.totalorder %v2100, 1
        %vm2108 = vcmp.eq.s32.totalorder %v2101, 1
        %vm2109 = vcmp.eq.s32.totalorder %v2102, 1
        %vm2110 = vcmp.eq.s32.totalorder %v2103, 1
        %vm2111 = vcmp.eq.s32.totalorder %v2104, 1
        %vm2112 = vcmp.eq.s32.totalorder %v2105, 1
        %v2113 = vsel %vm2106, %v2092, 0.0
        %v2114 = vsel %vm2107, %v2093, 0.0
        %v2115 = vsel %vm2108, %v2094, 0.0
        %v2116 = vsel %vm2109, %v2095, 0.0
        %v2117 = vsel %vm2110, %v2096, 0.0
        %v2118 = vsel %vm2111, %v2097, 0.0
        %v2119 = vsel %vm2112, %v2098, 0.0
        %v2120 = vpack.c.bf16 %v2114, %v2113
        %v2121 = vpack.c.bf16 %v2116, %v2115
        %v2122 = vpack.c.bf16 %v2118, %v2117
        %v2123 = vpack.c.bf16 %v2119, %v2119
        %v2128 = vunpack.c.l.b16 %v2120
        %v2129 = vunpack.c.h.b16 %v2120
        %v2130 = vunpack.c.l.b16 %v2121
        %v2131 = vunpack.c.h.b16 %v2121
        %v2132 = vunpack.c.l.b16 %v2122
        %v2133 = vunpack.c.h.b16 %v2122
        %v2134 = vunpack.c.l.b16 %v2123
        %v2135 = vpack.c.b16 %v2128, %v2128
        %v2136 = vpack.c.b16 %v2129, %v2129
        %v2137 = vpack.c.b16 %v2130, %v2130
        %v2138 = vpack.c.b16 %v2131, %v2131
        %v2139 = vpack.c.b16 %v2132, %v2132
        %v2140 = vpack.c.b16 %v2133, %v2133
        %v2141 = vpack.c.b16 %v2134, %v2134
        %2149 = vst [vmem:[#allocation3] sm:$0xf] %v2135
        %2150 = vst [vmem:[#allocation3 + $0x4] sm:$0xf] %v2136
        %2151 = vst [vmem:[#allocation3 + $0x8] sm:$0xf] %v2137
        %2152 = vst [vmem:[#allocation3 + $0xc] sm:$0xf] %v2138
        %2153 = vst [vmem:[#allocation3 + $0x10] sm:$0xf] %v2139
        %2154 = vst [vmem:[#allocation3 + $0x14] sm:$0xf] %v2140
        %2155 = vst [vmem:[#allocation3 + $0x18] sm:$0x7] %v2141
        %v2156 = vld [vmem:[#allocation3] sm:$0xf]
        %v2157 = vld [vmem:[#allocation3 + $0x4] sm:$0xf]
        %v2158 = vld [vmem:[#allocation3 + $0x8] sm:$0xf]
        %v2159 = vld [vmem:[#allocation3 + $0xc] sm:$0xf]
        %v2160 = vld [vmem:[#allocation3 + $0x10] sm:$0xf]
        %v2161 = vld [vmem:[#allocation3 + $0x14] sm:$0x3]
        %v2162 = vld [vmem:[#allocation3 + $0x14] sm:$0x7]
        %v2163 = vld [vmem:[#allocation3] sm:$0xe]
        %v2164 = vld [vmem:[#allocation3 + $0x14] sm:$0xf]
        %v2165 = vld [vmem:[#allocation3] sm:$0xc]
        %v2166 = vld [vmem:[#allocation3 + $0x18] sm:$0x1]
        %v2167 = vld [vmem:[#allocation3] sm:$0x8]
        %v2168 = vld [vmem:[#allocation3 + $0x18] sm:$0x3]
        %v2169 = vld [vmem:[#allocation3 + $0x18] sm:$0x7]
        %v2170 = vld [vmem:[#allocation3 + $0x4] sm:$0xe]
        %v2177 = vunpack.c.l.b16 %v2156
        %v2178 = vunpack.c.l.b16 %v2157
        %v2179 = vunpack.c.l.b16 %v2158
        %v2180 = vunpack.c.l.b16 %v2159
        %v2181 = vunpack.c.l.b16 %v2160
        %v2182 = vunpack.c.l.b16 %v2161
        %v2183 = vpack.c.b16 %v2178, %v2177
        %v2184 = vpack.c.b16 %v2180, %v2179
        %v2185 = vpack.c.b16 %v2182, %v2181
        %v2190 = vunpack.c.l.b16 %v2162
        %v2191 = vpack.c.b16 %v2190, %v2181
        %v2193 = vshrl.u32 %v2183, 16
        %v2195 = vshll.u32 %v2183, 16
        %v2197 = vrot.slane %v2195, 1
        %v2198 = vor.u32 %v2193, %v2197
        %v2200 = vshll.u32 %v2184, 16
        %v2202 = vrot.slane %v2200, 1
        %v2203 = vsel %vm376, %v2198, %v2202
        %v2204 = vshrl.u32 %v2184, 16
        %v2206 = vor.u32 %v2204, %v2202
        %v2208 = vshll.u32 %v2191, 16
        %v2210 = vrot.slane %v2208, 1
        %v2211 = vsel %vm376, %v2206, %v2210
        %v2212 = vshrl.u32 %v2191, 16
        %v2214 = vor.u32 %v2212, %v2210
        %v2219 = vunpack.c.l.b16 %v2163
        %v2220 = vpack.c.b16 %v2178, %v2219
        %v2221 = vrot.slane %v2220, 1
        %v2222 = vrot.slane %v2184, 1
        %v2223 = vsel %vm412, %v2221, %v2222
        %v2224 = vrot.slane %v2191, 1
        %v2225 = vsel %vm412, %v2222, %v2224
        %v2230 = vunpack.c.l.b16 %v2164
        %v2231 = vpack.c.b16 %v2230, %v2181
        %v2233 = vshrl.u32 %v2220, 16
        %v2235 = vrot.slane %v2233, 1
        %v2236 = vshll.u32 %v2220, 16
        %v2238 = vrot.slane %v2236, 2
        %v2239 = vor.u32 %v2235, %v2238
        %v2240 = vrot.slane %v2204, 1
        %v2241 = vrot.slane %v2200, 2
        %v2242 = vor.u32 %v2240, %v2241
        %v2243 = vsel %vm427, %v2239, %v2242
        %v2245 = vshrl.u32 %v2231, 16
        %v2247 = vrot.slane %v2245, 1
        %v2248 = vshll.u32 %v2231, 16
        %v2250 = vrot.slane %v2248, 2
        %v2251 = vor.u32 %v2247, %v2250
        %v2252 = vsel %vm427, %v2242, %v2251
        %v2257 = vunpack.c.l.b16 %v2165
        %v2258 = vpack.c.b16 %v2178, %v2257
        %v2259 = vrot.slane %v2258, 2
        %v2260 = vrot.slane %v2184, 2
        %v2261 = vsel %vm452, %v2259, %v2260
        %v2262 = vrot.slane %v2231, 2
        %v2263 = vsel %vm452, %v2260, %v2262
        %v2268 = vunpack.c.l.b16 %v2166
        %v2269 = vpack.c.b16 %v2268, %v2268
        %v2271 = vshrl.u32 %v2258, 16
        %v2273 = vrot.slane %v2271, 2
        %v2274 = vshll.u32 %v2258, 16
        %v2276 = vrot.slane %v2274, 3
        %v2277 = vor.u32 %v2273, %v2276
        %v2278 = vrot.slane %v2204, 2
        %v2279 = vrot.slane %v2200, 3
        %v2280 = vor.u32 %v2278, %v2279
        %v2281 = vsel %vm464, %v2277, %v2280
        %v2282 = vrot.slane %v2245, 2
        %v2283 = vrot.slane %v2248, 3
        %v2284 = vor.u32 %v2282, %v2283
        %v2285 = vsel %vm464, %v2280, %v2284
        %v2287 = vshll.u32 %v2269, 16
        %v2289 = vrot.slane %v2287, 3
        %v2290 = vsel %vm464, %v2284, %v2289
        %v2295 = vunpack.c.l.b16 %v2167
        %v2296 = vpack.c.b16 %v2178, %v2295
        %v2297 = vrot.slane %v2296, 3
        %v2298 = vrot.slane %v2184, 3
        %v2299 = vsel %vm484, %v2297, %v2298
        %v2300 = vrot.slane %v2231, 3
        %v2301 = vsel %vm484, %v2298, %v2300
        %v2302 = vrot.slane %v2269, 3
        %v2303 = vsel %vm484, %v2300, %v2302
        %v2308 = vunpack.c.l.b16 %v2168
        %v2309 = vpack.c.b16 %v2308, %v2308
        %v2311 = vshrl.u32 %v2296, 16
        %v2313 = vrot.slane %v2311, 3
        %v2314 = vshll.u32 %v2296, 16
        %v2316 = vrot.slane %v2314, 4
        %v2317 = vor.u32 %v2313, %v2316
        %v2318 = vrot.slane %v2204, 3
        %v2319 = vrot.slane %v2200, 4
        %v2320 = vor.u32 %v2318, %v2319
        %v2321 = vsel %vm496, %v2317, %v2320
        %v2322 = vrot.slane %v2245, 3
        %v2323 = vrot.slane %v2248, 4
        %v2324 = vor.u32 %v2322, %v2323
        %v2325 = vsel %vm496, %v2320, %v2324
        %v2327 = vshrl.u32 %v2309, 16
        %v2329 = vrot.slane %v2327, 3
        %v2330 = vshll.u32 %v2309, 16
        %v2332 = vrot.slane %v2330, 4
        %v2333 = vor.u32 %v2329, %v2332
        %v2334 = vsel %vm496, %v2324, %v2333
        %v2338 = vpack.c.b16 %v2179, %v2178
        %v2339 = vpack.c.b16 %v2181, %v2180
        %v2340 = vpack.c.b16 %v2308, %v2230
        %v2345 = vunpack.c.l.b16 %v2169
        %v2346 = vpack.c.b16 %v2345, %v2230
        %v2348 = vshrl.u32 %v2338, 16
        %v2350 = vshll.u32 %v2338, 16
        %v2352 = vrot.slane %v2350, 1
        %v2353 = vor.u32 %v2348, %v2352
        %v2355 = vshll.u32 %v2339, 16
        %v2357 = vrot.slane %v2355, 1
        %v2358 = vsel %vm376, %v2353, %v2357
        %v2359 = vshrl.u32 %v2339, 16
        %v2361 = vor.u32 %v2359, %v2357
        %v2363 = vshll.u32 %v2346, 16
        %v2365 = vrot.slane %v2363, 1
        %v2366 = vsel %vm376, %v2361, %v2365
        %v2367 = vshrl.u32 %v2346, 16
        %v2369 = vor.u32 %v2367, %v2365
        %v2374 = vunpack.c.l.b16 %v2170
        %v2375 = vpack.c.b16 %v2179, %v2374
        %v2376 = vrot.slane %v2375, 1
        %v2377 = vrot.slane %v2339, 1
        %v2378 = vsel %vm412, %v2376, %v2377
        %v2379 = vrot.slane %v2346, 1
        %v2380 = vsel %vm412, %v2377, %v2379
        %v2384 = vld [vmem:[#allocation8] sm:$0xf]
        %v2385 = vld [vmem:[#allocation8 + $0x4] sm:$0xf]
        %v2386 = vld [vmem:[#allocation8 + $0x8] sm:$0xf]
        %v2387 = vld [vmem:[#allocation8 + $0xc] sm:$0xf]
        %v2388 = vld [vmem:[#allocation8 + $0x10] sm:$0xf]
        %v2389 = vld [vmem:[#allocation8 + $0x14] sm:$0xf]
        %v2390 = vld [vmem:[#allocation8 + $0x18] sm:$0xf]
        %v2391 = vld [vmem:[#allocation8 + $0x1c] sm:$0xf]
        %v2392 = vld [vmem:[#allocation8 + $0x20] sm:$0xf]
        %v2393 = vld [vmem:[#allocation8 + $0x24] sm:$0xf]
        %v2394 = vld [vmem:[#allocation8 + $0x28] sm:$0xf]
        %v2395 = vld [vmem:[#allocation8 + $0x2c] sm:$0xf]
        %v2396 = vld [vmem:[#allocation8 + $0x30] sm:$0xf]
        %v2397 = vld [vmem:[#allocation8 + $0x34] sm:$0xf]
        %v2398 = vld [vmem:[#allocation8 + $0x38] sm:$0xf]
        %v2399 = vld [vmem:[#allocation8 + $0x3c] sm:$0xf]
        %v2400 = vld [vmem:[#allocation8 + $0x40] sm:$0xf]
        %v2401 = vld [vmem:[#allocation8 + $0x44] sm:$0xf]
        %v2402 = vld [vmem:[#allocation8 + $0x48] sm:$0xf]
        %v2403 = vld [vmem:[#allocation8 + $0x4c] sm:$0xf]
        %v2404 = vld [vmem:[#allocation8 + $0x50] sm:$0xf]
        %v2405 = vld [vmem:[#allocation8 + $0x54] sm:$0xf]
        %v2406 = vld [vmem:[#allocation8 + $0x58] sm:$0xf]
        %v2407 = vld [vmem:[#allocation8 + $0x5c] sm:$0xf]
        %v2408 = vld [vmem:[#allocation8 + $0x60] sm:$0xf]
        %v2409 = vld [vmem:[#allocation8 + $0x64] sm:$0xf]
        %v2410 = vld [vmem:[#allocation8 + $0x68] sm:$0xf]
        %v2411 = vld [vmem:[#allocation8 + $0x6c] sm:$0xf]
        %v2412 = vld [vmem:[#allocation8 + $0x70] sm:$0xf]
        %v2413 = vld [vmem:[#allocation8 + $0x74] sm:$0xf]
        %v2414 = vld [vmem:[#allocation8 + $0x78] sm:$0xf]
        %v2415 = vld [vmem:[#allocation8 + $0x7c] sm:$0xf]
        %v2416 = vld [vmem:[#allocation8 + $0x80] sm:$0xf]
        %v2417 = vld [vmem:[#allocation8 + $0x84] sm:$0xf]
        %v2418 = vld [vmem:[#allocation8 + $0x88] sm:$0xf]
        %v2419 = vld [vmem:[#allocation8 + $0x8c] sm:$0xf]
        %v2420 = vld [vmem:[#allocation8 + $0x90] sm:$0xf]
        %v2421 = vld [vmem:[#allocation8 + $0x94] sm:$0xf]
        %v2422 = vld [vmem:[#allocation8 + $0x98] sm:$0xf]
        %v2423 = vld [vmem:[#allocation8 + $0x9c] sm:$0xf]
        %v2424 = vld [vmem:[#allocation8 + $0xa0] sm:$0xf]
        %v2425 = vld [vmem:[#allocation8 + $0xa4] sm:$0xf]
        %v2426 = vld [vmem:[#allocation8 + $0xa8] sm:$0xf]
        %v2427 = vld [vmem:[#allocation8 + $0xac] sm:$0xf]
        %v2428 = vld [vmem:[#allocation8 + $0xb0] sm:$0xf]
        %v2429 = vld [vmem:[#allocation8 + $0xb4] sm:$0xf]
        %v2430 = vld [vmem:[#allocation8 + $0xb8] sm:$0xf]
        %v2431 = vld [vmem:[#allocation8 + $0xbc] sm:$0xf]
        %v2432 = vld [vmem:[#allocation8 + $0xc0] sm:$0xf]
        %v2433 = vld [vmem:[#allocation8 + $0xc4] sm:$0xf]
        %v2434 = vld [vmem:[#allocation8 + $0xc8] sm:$0xf]
        %v2435 = vld [vmem:[#allocation8 + $0xcc] sm:$0xf]
        %v2436 = vld [vmem:[#allocation8 + $0xd0] sm:$0xf]
        %v2437 = vld [vmem:[#allocation8 + $0xd4] sm:$0xf]
        %v2438 = vld [vmem:[#allocation8 + $0xd8] sm:$0xf]
        %v2439 = vld [vmem:[#allocation8 + $0xdc] sm:$0xf]
        %v2440 = vld [vmem:[#allocation8 + $0xe0] sm:$0xf]
        %v2441 = vld [vmem:[#allocation8 + $0xe4] sm:$0xf]
        %v2442 = vld [vmem:[#allocation8 + $0xe8] sm:$0xf]
        %v2443 = vld [vmem:[#allocation8 + $0xec] sm:$0xf]
        %v2444 = vld [vmem:[#allocation8 + $0xf0] sm:$0xf]
        %v2445 = vld [vmem:[#allocation8 + $0xf4] sm:$0xf]
        %v2446 = vld [vmem:[#allocation8 + $0xf8] sm:$0xf]
        %v2447 = vld [vmem:[#allocation8 + $0xfc] sm:$0xf]
        %v2448 = vld [vmem:[#allocation8 + $0x100] sm:$0xf]
        %v2449 = vld [vmem:[#allocation8 + $0x104] sm:$0xf]
        %v2450 = vld [vmem:[#allocation8 + $0x108] sm:$0xf]
        %v2451 = vld [vmem:[#allocation8 + $0x10c] sm:$0xf]
        %v2452 = vld [vmem:[#allocation8 + $0x110] sm:$0xf]
        %v2453 = vld [vmem:[#allocation8 + $0x114] sm:$0xf]
        %v2454 = vld [vmem:[#allocation8 + $0x118] sm:$0xf]
        %v2455 = vld [vmem:[#allocation8 + $0x11c] sm:$0xf]
        %v2456 = vld [vmem:[#allocation8 + $0x120] sm:$0xf]
        %v2457 = vld [vmem:[#allocation8 + $0x124] sm:$0xf]
        %v2458 = vld [vmem:[#allocation8 + $0x128] sm:$0xf]
        %v2459 = vld [vmem:[#allocation8 + $0x12c] sm:$0xf]
        %v2460 = vld [vmem:[#allocation8 + $0x130] sm:$0xf]
        %v2461 = vld [vmem:[#allocation8 + $0x134] sm:$0xf]
        %v2462 = vld [vmem:[#allocation8 + $0x138] sm:$0xf]
        %v2463 = vld [vmem:[#allocation8 + $0x13c] sm:$0xf]
        %v2464 = vld [vmem:[#allocation8 + $0x140] sm:$0xf]
        %v2465 = vld [vmem:[#allocation8 + $0x144] sm:$0xf]
        %v2466 = vld [vmem:[#allocation8 + $0x148] sm:$0xf]
        %v2467 = vld [vmem:[#allocation8 + $0x14c] sm:$0xf]
        %v2468 = vld [vmem:[#allocation8 + $0x150] sm:$0xf]
        %v2469 = vld [vmem:[#allocation8 + $0x154] sm:$0xf]
        %v2470 = vld [vmem:[#allocation8 + $0x158] sm:$0xf]
        %v2471 = vld [vmem:[#allocation8 + $0x15c] sm:$0xf]
        %v2472 = vld [vmem:[#allocation8 + $0x160] sm:$0xf]
        %v2473 = vld [vmem:[#allocation8 + $0x164] sm:$0xf]
        %v2474 = vld [vmem:[#allocation8 + $0x168] sm:$0xf]
        %v2475 = vld [vmem:[#allocation8 + $0x16c] sm:$0xf]
        %v2476 = vld [vmem:[#allocation8 + $0x170] sm:$0xf]
        %v2477 = vld [vmem:[#allocation8 + $0x174] sm:$0xf]
        %v2478 = vld [vmem:[#allocation8 + $0x178] sm:$0xf]
        %v2479 = vld [vmem:[#allocation8 + $0x17c] sm:$0xf]
        %v2480 = vld [vmem:[#allocation8 + $0x180] sm:$0xf]
        %v2481 = vld [vmem:[#allocation8 + $0x184] sm:$0xf]
        %v2482 = vld [vmem:[#allocation8 + $0x188] sm:$0xf]
        %v2483 = vld [vmem:[#allocation8 + $0x18c] sm:$0xf]
        %v2484 = vld [vmem:[#allocation8 + $0x190] sm:$0xf]
        %v2485 = vld [vmem:[#allocation8 + $0x194] sm:$0xf]
        %v2486 = vld [vmem:[#allocation8 + $0x198] sm:$0xf]
        %v2487 = vld [vmem:[#allocation8 + $0x19c] sm:$0xf]
        %v2488 = vld [vmem:[#allocation8 + $0x1a0] sm:$0xf]
        %v2489 = vld [vmem:[#allocation8 + $0x1a4] sm:$0xf]
        %v2490 = vld [vmem:[#allocation8 + $0x1a8] sm:$0xf]
        %v2491 = vld [vmem:[#allocation8 + $0x1ac] sm:$0xf]
        %v2492 = vld [vmem:[#allocation8 + $0x1b0] sm:$0xf]
        %v2493 = vld [vmem:[#allocation8 + $0x1b4] sm:$0xf]
        %v2494 = vld [vmem:[#allocation8 + $0x1b8] sm:$0xf]
        %v2495 = vld [vmem:[#allocation8 + $0x1bc] sm:$0xf]
        %v2496 = vld [vmem:[#allocation8 + $0x1c0] sm:$0xf]
        %v2497 = vld [vmem:[#allocation8 + $0x1c4] sm:$0xf]
        %v2498 = vld [vmem:[#allocation8 + $0x1c8] sm:$0xf]
        %v2499 = vld [vmem:[#allocation8 + $0x1cc] sm:$0xf]
        %v2500 = vld [vmem:[#allocation8 + $0x1d0] sm:$0xf]
        %v2501 = vld [vmem:[#allocation8 + $0x1d4] sm:$0xf]
        %v2502 = vld [vmem:[#allocation8 + $0x1d8] sm:$0xf]
        %v2503 = vld [vmem:[#allocation8 + $0x1dc] sm:$0xf]
        %v2504 = vld [vmem:[#allocation8 + $0x1e0] sm:$0xf]
        %v2505 = vld [vmem:[#allocation8 + $0x1e4] sm:$0xf]
        %v2506 = vld [vmem:[#allocation8 + $0x1e8] sm:$0xf]
        %v2507 = vld [vmem:[#allocation8 + $0x1ec] sm:$0xf]
        %v2508 = vld [vmem:[#allocation8 + $0x1f0] sm:$0xf]
        %v2509 = vld [vmem:[#allocation8 + $0x1f4] sm:$0xf]
        %v2510 = vld [vmem:[#allocation8 + $0x1f8] sm:$0xf]
        %v2511 = vld [vmem:[#allocation8 + $0x1fc] sm:$0xf]
        %v2512 = vld [vmem:[#allocation8 + $0x200] sm:$0xf]
        %v2513 = vld [vmem:[#allocation8 + $0x204] sm:$0xf]
        %v2514 = vld [vmem:[#allocation8 + $0x208] sm:$0xf]
        %v2515 = vld [vmem:[#allocation8 + $0x20c] sm:$0xf]
        %v2516 = vld [vmem:[#allocation8 + $0x210] sm:$0xf]
        %v2517 = vld [vmem:[#allocation8 + $0x214] sm:$0xf]
        %v2518 = vld [vmem:[#allocation8 + $0x218] sm:$0xf]
        %v2519 = vld [vmem:[#allocation8 + $0x21c] sm:$0xf]
        %v2520 = vld [vmem:[#allocation8 + $0x220] sm:$0xf]
        %v2521 = vld [vmem:[#allocation8 + $0x224] sm:$0xf]
        %v2522 = vld [vmem:[#allocation8 + $0x228] sm:$0xf]
        %v2523 = vld [vmem:[#allocation8 + $0x22c] sm:$0xf]
        %v2524 = vld [vmem:[#allocation8 + $0x230] sm:$0xf]
        %v2525 = vld [vmem:[#allocation8 + $0x234] sm:$0xf]
        %v2526 = vld [vmem:[#allocation8 + $0x238] sm:$0xf]
        %v2527 = vld [vmem:[#allocation8 + $0x23c] sm:$0xf]
        %v2528 = vld [vmem:[#allocation8 + $0x240] sm:$0xf]
        %v2529 = vld [vmem:[#allocation8 + $0x244] sm:$0xf]
        %v2530 = vld [vmem:[#allocation8 + $0x248] sm:$0xf]
        %v2531 = vld [vmem:[#allocation8 + $0x24c] sm:$0xf]
        %v2532 = vld [vmem:[#allocation8 + $0x250] sm:$0xf]
        %v2533 = vld [vmem:[#allocation8 + $0x254] sm:$0xf]
        %v2534 = vld [vmem:[#allocation8 + $0x258] sm:$0xf]
        %v2535 = vld [vmem:[#allocation8 + $0x25c] sm:$0xf]
        %v2536 = vld [vmem:[#allocation8 + $0x260] sm:$0xf]
        %v2537 = vld [vmem:[#allocation8 + $0x264] sm:$0xf]
        %v2538 = vld [vmem:[#allocation8 + $0x268] sm:$0xf]
        %v2539 = vld [vmem:[#allocation8 + $0x26c] sm:$0xf]
        %v2540 = vld [vmem:[#allocation8 + $0x270] sm:$0xf]
        %v2541 = vld [vmem:[#allocation8 + $0x274] sm:$0xf]
        %v2542 = vld [vmem:[#allocation8 + $0x278] sm:$0xf]
        %v2543 = vld [vmem:[#allocation8 + $0x27c] sm:$0xf]
        %v2544 = vld [vmem:[#allocation8 + $0x280] sm:$0xf]
        %v2545 = vld [vmem:[#allocation8 + $0x284] sm:$0xf]
        %v2546 = vld [vmem:[#allocation8 + $0x288] sm:$0xf]
        %v2547 = vld [vmem:[#allocation8 + $0x28c] sm:$0xf]
        %v2548 = vld [vmem:[#allocation8 + $0x290] sm:$0xf]
        %v2549 = vld [vmem:[#allocation8 + $0x294] sm:$0xf]
        %v2550 = vld [vmem:[#allocation8 + $0x298] sm:$0xf]
        %v2551 = vld [vmem:[#allocation8 + $0x29c] sm:$0xf]
        %v2552 = vld [vmem:[#allocation8 + $0x2a0] sm:$0xf]
        %v2553 = vld [vmem:[#allocation8 + $0x2a4] sm:$0xf]
        %v2554 = vld [vmem:[#allocation8 + $0x2a8] sm:$0xf]
        %v2555 = vld [vmem:[#allocation8 + $0x2ac] sm:$0xf]
        %v2556 = vld [vmem:[#allocation8 + $0x2b0] sm:$0xf]
        %v2557 = vld [vmem:[#allocation8 + $0x2b4] sm:$0xf]
        %v2558 = vld [vmem:[#allocation8 + $0x2b8] sm:$0xf]
        %v2559 = vld [vmem:[#allocation8 + $0x2bc] sm:$0xf]
        %s2560 = scalar_lea.vmem %s3, 1
        %v2561 = vld [vmem:[%s2560] sm:$0x1]
        %v2563 = vlaneseq
        %v2564 = vshrl.u32 %v2563, 7
        %v2565 = vsub.s32 0, %v2564
        %v2566 = vrot.slane %v2561, %v2565
        %v2744 = vunpack.c.l.b16 %v2384
        %v2745 = vunpack.c.l.b16 %v2385
        %v2746 = vunpack.c.l.b16 %v2386
        %v2747 = vunpack.c.l.b16 %v2387
        %v2748 = vunpack.c.l.b16 %v2388
        %v2749 = vunpack.c.l.b16 %v2389
        %v2750 = vunpack.c.l.b16 %v2390
        %v2751 = vunpack.c.l.b16 %v2391
        %v2752 = vunpack.c.l.b16 %v2392
        %v2753 = vunpack.c.l.b16 %v2393
        %v2754 = vunpack.c.l.b16 %v2394
        %v2755 = vunpack.c.l.b16 %v2395
        %v2756 = vunpack.c.l.b16 %v2396
        %v2757 = vunpack.c.l.b16 %v2397
        %v2758 = vunpack.c.l.b16 %v2398
        %v2759 = vunpack.c.l.b16 %v2399
        %v2760 = vunpack.c.l.b16 %v2400
        %v2761 = vunpack.c.l.b16 %v2401
        %v2762 = vunpack.c.l.b16 %v2402
        %v2763 = vunpack.c.l.b16 %v2403
        %v2764 = vunpack.c.l.b16 %v2404
        %v2765 = vunpack.c.l.b16 %v2405
        %v2766 = vunpack.c.l.b16 %v2406
        %v2767 = vunpack.c.l.b16 %v2407
        %v2768 = vunpack.c.l.b16 %v2408
        %v2769 = vunpack.c.l.b16 %v2409
        %v2770 = vunpack.c.l.b16 %v2410
        %v2771 = vunpack.c.l.b16 %v2411
        %v2772 = vunpack.c.l.b16 %v2412
        %v2773 = vunpack.c.l.b16 %v2413
        %v2774 = vunpack.c.l.b16 %v2414
        %v2775 = vunpack.c.l.b16 %v2415
        %v2776 = vunpack.c.l.b16 %v2416
        %v2777 = vunpack.c.l.b16 %v2417
        %v2778 = vunpack.c.l.b16 %v2418
        %v2779 = vunpack.c.l.b16 %v2419
        %v2780 = vunpack.c.l.b16 %v2420
        %v2781 = vunpack.c.l.b16 %v2421
        %v2782 = vunpack.c.l.b16 %v2422
        %v2783 = vunpack.c.l.b16 %v2423
        %v2784 = vunpack.c.l.b16 %v2424
        %v2785 = vunpack.c.l.b16 %v2425
        %v2786 = vunpack.c.l.b16 %v2426
        %v2787 = vunpack.c.l.b16 %v2427
        %v2788 = vunpack.c.l.b16 %v2428
        %v2789 = vunpack.c.l.b16 %v2429
        %v2790 = vunpack.c.l.b16 %v2430
        %v2791 = vunpack.c.l.b16 %v2431
        %v2792 = vunpack.c.l.b16 %v2432
        %v2793 = vunpack.c.l.b16 %v2433
        %v2794 = vunpack.c.l.b16 %v2434
        %v2795 = vunpack.c.l.b16 %v2435
        %v2796 = vunpack.c.l.b16 %v2436
        %v2797 = vunpack.c.l.b16 %v2437
        %v2798 = vunpack.c.l.b16 %v2438
        %v2799 = vunpack.c.l.b16 %v2439
        %v2800 = vunpack.c.l.b16 %v2440
        %v2801 = vunpack.c.l.b16 %v2441
        %v2802 = vunpack.c.l.b16 %v2442
        %v2803 = vunpack.c.l.b16 %v2443
        %v2804 = vunpack.c.l.b16 %v2444
        %v2805 = vunpack.c.l.b16 %v2445
        %v2806 = vunpack.c.l.b16 %v2446
        %v2807 = vunpack.c.l.b16 %v2447
        %v2808 = vunpack.c.l.b16 %v2448
        %v2809 = vunpack.c.l.b16 %v2449
        %v2810 = vunpack.c.l.b16 %v2450
        %v2811 = vunpack.c.l.b16 %v2451
        %v2812 = vunpack.c.l.b16 %v2452
        %v2813 = vunpack.c.l.b16 %v2453
        %v2814 = vunpack.c.l.b16 %v2454
        %v2815 = vunpack.c.l.b16 %v2455
        %v2816 = vunpack.c.l.b16 %v2456
        %v2817 = vunpack.c.l.b16 %v2457
        %v2818 = vunpack.c.l.b16 %v2458
        %v2819 = vunpack.c.l.b16 %v2459
        %v2820 = vunpack.c.l.b16 %v2460
        %v2821 = vunpack.c.l.b16 %v2461
        %v2822 = vunpack.c.l.b16 %v2462
        %v2823 = vunpack.c.l.b16 %v2463
        %v2824 = vunpack.c.l.b16 %v2464
        %v2825 = vunpack.c.l.b16 %v2465
        %v2826 = vunpack.c.l.b16 %v2466
        %v2827 = vunpack.c.l.b16 %v2467
        %v2828 = vunpack.c.l.b16 %v2468
        %v2829 = vunpack.c.l.b16 %v2469
        %v2830 = vunpack.c.l.b16 %v2470
        %v2831 = vunpack.c.l.b16 %v2471
        %v2832 = vunpack.c.l.b16 %v2472
        %v2833 = vunpack.c.l.b16 %v2473
        %v2834 = vunpack.c.l.b16 %v2474
        %v2835 = vunpack.c.l.b16 %v2475
        %v2836 = vunpack.c.l.b16 %v2476
        %v2837 = vunpack.c.l.b16 %v2477
        %v2838 = vunpack.c.l.b16 %v2478
        %v2839 = vunpack.c.l.b16 %v2479
        %v2840 = vunpack.c.l.b16 %v2480
        %v2841 = vunpack.c.l.b16 %v2481
        %v2842 = vunpack.c.l.b16 %v2482
        %v2843 = vunpack.c.l.b16 %v2483
        %v2844 = vunpack.c.l.b16 %v2484
        %v2845 = vunpack.c.l.b16 %v2485
        %v2846 = vunpack.c.l.b16 %v2486
        %v2847 = vunpack.c.l.b16 %v2487
        %v2848 = vunpack.c.l.b16 %v2488
        %v2849 = vunpack.c.l.b16 %v2489
        %v2850 = vunpack.c.l.b16 %v2490
        %v2851 = vunpack.c.l.b16 %v2491
        %v2852 = vunpack.c.l.b16 %v2492
        %v2853 = vunpack.c.l.b16 %v2493
        %v2854 = vunpack.c.l.b16 %v2494
        %v2855 = vunpack.c.l.b16 %v2495
        %v2856 = vunpack.c.l.b16 %v2496
        %v2857 = vunpack.c.l.b16 %v2497
        %v2858 = vunpack.c.l.b16 %v2498
        %v2859 = vunpack.c.l.b16 %v2499
        %v2860 = vunpack.c.l.b16 %v2500
        %v2861 = vunpack.c.l.b16 %v2501
        %v2862 = vunpack.c.l.b16 %v2502
        %v2863 = vunpack.c.l.b16 %v2503
        %v2864 = vunpack.c.l.b16 %v2504
        %v2865 = vunpack.c.l.b16 %v2505
        %v2866 = vunpack.c.l.b16 %v2506
        %v2867 = vunpack.c.l.b16 %v2507
        %v2868 = vunpack.c.l.b16 %v2508
        %v2869 = vunpack.c.l.b16 %v2509
        %v2870 = vunpack.c.l.b16 %v2510
        %v2871 = vunpack.c.l.b16 %v2511
        %v2872 = vunpack.c.l.b16 %v2512
        %v2873 = vunpack.c.l.b16 %v2513
        %v2874 = vunpack.c.l.b16 %v2514
        %v2875 = vunpack.c.l.b16 %v2515
        %v2876 = vunpack.c.l.b16 %v2516
        %v2877 = vunpack.c.l.b16 %v2517
        %v2878 = vunpack.c.l.b16 %v2518
        %v2879 = vunpack.c.l.b16 %v2519
        %v2880 = vunpack.c.l.b16 %v2520
        %v2881 = vunpack.c.l.b16 %v2521
        %v2882 = vunpack.c.l.b16 %v2522
        %v2883 = vunpack.c.l.b16 %v2523
        %v2884 = vunpack.c.l.b16 %v2524
        %v2885 = vunpack.c.l.b16 %v2525
        %v2886 = vunpack.c.l.b16 %v2526
        %v2887 = vunpack.c.l.b16 %v2527
        %v2888 = vunpack.c.l.b16 %v2528
        %v2889 = vunpack.c.l.b16 %v2529
        %v2890 = vunpack.c.l.b16 %v2530
        %v2891 = vunpack.c.l.b16 %v2531
        %v2892 = vunpack.c.l.b16 %v2532
        %v2893 = vunpack.c.l.b16 %v2533
        %v2894 = vunpack.c.l.b16 %v2534
        %v2895 = vunpack.c.l.b16 %v2535
        %v2896 = vunpack.c.l.b16 %v2536
        %v2897 = vunpack.c.l.b16 %v2537
        %v2898 = vunpack.c.l.b16 %v2538
        %v2899 = vunpack.c.l.b16 %v2539
        %v2900 = vunpack.c.l.b16 %v2540
        %v2901 = vunpack.c.l.b16 %v2541
        %v2902 = vunpack.c.l.b16 %v2542
        %v2903 = vunpack.c.l.b16 %v2543
        %v2904 = vunpack.c.l.b16 %v2544
        %v2905 = vunpack.c.l.b16 %v2545
        %v2906 = vunpack.c.l.b16 %v2546
        %v2907 = vunpack.c.l.b16 %v2547
        %v2908 = vunpack.c.l.b16 %v2548
        %v2909 = vunpack.c.l.b16 %v2549
        %v2910 = vunpack.c.l.b16 %v2550
        %v2911 = vunpack.c.l.b16 %v2551
        %v2912 = vunpack.c.l.b16 %v2552
        %v2913 = vunpack.c.l.b16 %v2553
        %v2914 = vunpack.c.l.b16 %v2554
        %v2915 = vunpack.c.l.b16 %v2555
        %v2916 = vunpack.c.l.b16 %v2556
        %v2917 = vunpack.c.l.b16 %v2557
        %v2918 = vunpack.c.l.b16 %v2558
        %v2919 = vunpack.c.l.b16 %v2559
        %v2920 = vpack.c.b16 %v2745, %v2744
        %v2921 = vpack.c.b16 %v2747, %v2746
        %v2922 = vpack.c.b16 %v2749, %v2748
        %v2923 = vpack.c.b16 %v2751, %v2750
        %v2924 = vpack.c.b16 %v2753, %v2752
        %v2925 = vpack.c.b16 %v2755, %v2754
        %v2926 = vpack.c.b16 %v2757, %v2756
        %v2927 = vpack.c.b16 %v2759, %v2758
        %v2928 = vpack.c.b16 %v2761, %v2760
        %v2929 = vpack.c.b16 %v2763, %v2762
        %v2930 = vpack.c.b16 %v2765, %v2764
        %v2931 = vpack.c.b16 %v2767, %v2766
        %v2932 = vpack.c.b16 %v2769, %v2768
        %v2933 = vpack.c.b16 %v2771, %v2770
        %v2934 = vpack.c.b16 %v2773, %v2772
        %v2935 = vpack.c.b16 %v2775, %v2774
        %v2936 = vpack.c.b16 %v2777, %v2776
        %v2937 = vpack.c.b16 %v2779, %v2778
        %v2938 = vpack.c.b16 %v2781, %v2780
        %v2939 = vpack.c.b16 %v2783, %v2782
        %v2940 = vpack.c.b16 %v2785, %v2784
        %v2941 = vpack.c.b16 %v2787, %v2786
        %v2942 = vpack.c.b16 %v2789, %v2788
        %v2943 = vpack.c.b16 %v2791, %v2790
        %v2944 = vpack.c.b16 %v2793, %v2792
        %v2945 = vpack.c.b16 %v2795, %v2794
        %v2946 = vpack.c.b16 %v2797, %v2796
        %v2947 = vpack.c.b16 %v2799, %v2798
        %v2948 = vpack.c.b16 %v2801, %v2800
        %v2949 = vpack.c.b16 %v2803, %v2802
        %v2950 = vpack.c.b16 %v2805, %v2804
        %v2951 = vpack.c.b16 %v2807, %v2806
        %v2952 = vpack.c.b16 %v2809, %v2808
        %v2953 = vpack.c.b16 %v2811, %v2810
        %v2954 = vpack.c.b16 %v2813, %v2812
        %v2955 = vpack.c.b16 %v2815, %v2814
        %v2956 = vpack.c.b16 %v2817, %v2816
        %v2957 = vpack.c.b16 %v2819, %v2818
        %v2958 = vpack.c.b16 %v2821, %v2820
        %v2959 = vpack.c.b16 %v2823, %v2822
        %v2960 = vpack.c.b16 %v2825, %v2824
        %v2961 = vpack.c.b16 %v2827, %v2826
        %v2962 = vpack.c.b16 %v2829, %v2828
        %v2963 = vpack.c.b16 %v2831, %v2830
        %v2964 = vpack.c.b16 %v2833, %v2832
        %v2965 = vpack.c.b16 %v2835, %v2834
        %v2966 = vpack.c.b16 %v2837, %v2836
        %v2967 = vpack.c.b16 %v2839, %v2838
        %v2968 = vpack.c.b16 %v2841, %v2840
        %v2969 = vpack.c.b16 %v2843, %v2842
        %v2970 = vpack.c.b16 %v2845, %v2844
        %v2971 = vpack.c.b16 %v2847, %v2846
        %v2972 = vpack.c.b16 %v2849, %v2848
        %v2973 = vpack.c.b16 %v2851, %v2850
        %v2974 = vpack.c.b16 %v2853, %v2852
        %v2975 = vpack.c.b16 %v2855, %v2854
        %v2976 = vpack.c.b16 %v2857, %v2856
        %v2977 = vpack.c.b16 %v2859, %v2858
        %v2978 = vpack.c.b16 %v2861, %v2860
        %v2979 = vpack.c.b16 %v2863, %v2862
        %v2980 = vpack.c.b16 %v2865, %v2864
        %v2981 = vpack.c.b16 %v2867, %v2866
        %v2982 = vpack.c.b16 %v2869, %v2868
        %v2983 = vpack.c.b16 %v2871, %v2870
        %v2984 = vpack.c.b16 %v2873, %v2872
        %v2985 = vpack.c.b16 %v2875, %v2874
        %v2986 = vpack.c.b16 %v2877, %v2876
        %v2987 = vpack.c.b16 %v2879, %v2878
        %v2988 = vpack.c.b16 %v2881, %v2880
        %v2989 = vpack.c.b16 %v2883, %v2882
        %v2990 = vpack.c.b16 %v2885, %v2884
        %v2991 = vpack.c.b16 %v2887, %v2886
        %v2992 = vpack.c.b16 %v2889, %v2888
        %v2993 = vpack.c.b16 %v2891, %v2890
        %v2994 = vpack.c.b16 %v2893, %v2892
        %v2995 = vpack.c.b16 %v2895, %v2894
        %v2996 = vpack.c.b16 %v2897, %v2896
        %v2997 = vpack.c.b16 %v2899, %v2898
        %v2998 = vpack.c.b16 %v2901, %v2900
        %v2999 = vpack.c.b16 %v2903, %v2902
        %v3000 = vpack.c.b16 %v2905, %v2904
        %v3001 = vpack.c.b16 %v2907, %v2906
        %v3002 = vpack.c.b16 %v2909, %v2908
        %v3003 = vpack.c.b16 %v2911, %v2910
        %v3004 = vpack.c.b16 %v2913, %v2912
        %v3005 = vpack.c.b16 %v2915, %v2914
        %v3006 = vpack.c.b16 %v2917, %v2916
        %v3007 = vpack.c.b16 %v2919, %v2918
        %3096 = vmatprep.subr.bf16.mxu0 0
        %3097 = vmatpush1.bf16.msra.mxu0 %v2927
        %3098 = vmatprep.subr.bf16.mxu0 0
        %3099 = vmatpush1.bf16.msra.mxu0 %v2926
        %3100 = vmatprep.subr.bf16.mxu0 0
        %3101 = vmatpush1.bf16.msra.mxu0 %v2925
        %3102 = vmatprep.subr.bf16.mxu0 0
        %3103 = vmatpush1.bf16.msra.mxu0 %v2924
        %3104 = vmatprep.subr.bf16.mxu0 0
        %3105 = vmatpush1.bf16.msra.mxu0 %v2923
        %3106 = vmatprep.subr.bf16.mxu0 0
        %3107 = vmatpush1.bf16.msra.mxu0 %v2922
        %3108 = vmatprep.subr.bf16.mxu0 0
        %3109 = vmatpush1.bf16.msra.mxu0 %v2921
        %3110 = vmatprep.subr.bf16.mxu0 0
        %3111 = vmatpush1.bf16.msra.mxu0 %v2920
        %3112 = vmatprep.subr.bf16.mxu0 0
        %3113 = vmatpush2.bf16.msra.mxu0 %v2935
        %3114 = vmatprep.subr.bf16.mxu0 0
        %3115 = vmatpush2.bf16.msra.mxu0 %v2934
        %3116 = vmatprep.subr.bf16.mxu0 0
        %3117 = vmatpush2.bf16.msra.mxu0 %v2933
        %3118 = vmatprep.subr.bf16.mxu0 0
        %3119 = vmatpush2.bf16.msra.mxu0 %v2932
        %3120 = vmatprep.subr.bf16.mxu0 0
        %3121 = vmatpush2.bf16.msra.mxu0 %v2931
        %3122 = vmatprep.subr.bf16.mxu0 0
        %3123 = vmatpush2.bf16.msra.mxu0 %v2930
        %3124 = vmatprep.subr.bf16.mxu0 0
        %3125 = vmatpush2.bf16.msra.mxu0 %v2929
        %3126 = vmatprep.subr.bf16.mxu0 0
        %3127 = vmatpush2.bf16.msra.mxu0 %v2928
        %3128 = vmatprep.mubr.bf16.mxu0 %v2203
        %3129 = vmatmul.mubr.bf16.gmra.mxu0 %v2183
        %v3130 = vpop.f32.mrf.mxu0
        %v3131 = vadd.f32 %v2566, %v3130
        %v3132 = vpop.f32.mrf.mxu0
        %v3133 = vpop.f32.mrf.mxu0
        %v3134 = vadd.f32 %v2566, %v3133
        %v3135 = vpop.f32.mrf.mxu0
        %3136 = vmatprep.mubr.bf16.mxu0 %v2211
        %3137 = vmatmul.mubr.bf16.gmra.mxu0 %v2184
        %v3138 = vpop.f32.mrf.mxu0
        %v3139 = vadd.f32 %v2566, %v3138
        %v3140 = vpop.f32.mrf.mxu0
        %v3141 = vpop.f32.mrf.mxu0
        %v3142 = vadd.f32 %v2566, %v3141
        %v3143 = vpop.f32.mrf.mxu0
        %3144 = vmatprep.mubr.bf16.mxu0 %v2214
        %3145 = vmatmul.mubr.bf16.gmra.mxu0 %v2185
        %v3146 = vpop.f32.mrf.mxu0
        %v3147 = vadd.f32 %v2566, %v3146
        %v3148 = vpop.f32.mrf.mxu0
        %v3149 = vpop.f32.mrf.mxu0
        %v3150 = vadd.f32 %v2566, %v3149
        %v3151 = vpop.f32.mrf.mxu0
        %3152 = vdwg.mxu0
        %3153 = vmatprep.subr.bf16.mxu0 0
        %3154 = vmatpush1.bf16.msra.mxu0 %v2943
        %3155 = vmatprep.subr.bf16.mxu0 0
        %3156 = vmatpush1.bf16.msra.mxu0 %v2942
        %3157 = vmatprep.subr.bf16.mxu0 0
        %3158 = vmatpush1.bf16.msra.mxu0 %v2941
        %3159 = vmatprep.subr.bf16.mxu0 0
        %3160 = vmatpush1.bf16.msra.mxu0 %v2940
        %3161 = vmatprep.subr.bf16.mxu0 0
        %3162 = vmatpush1.bf16.msra.mxu0 %v2939
        %3163 = vmatprep.subr.bf16.mxu0 0
        %3164 = vmatpush1.bf16.msra.mxu0 %v2938
        %3165 = vmatprep.subr.bf16.mxu0 0
        %3166 = vmatpush1.bf16.msra.mxu0 %v2937
        %3167 = vmatprep.subr.bf16.mxu0 0
        %3168 = vmatpush1.bf16.msra.mxu0 %v2936
        %3169 = vmatprep.subr.bf16.mxu0 0
        %3170 = vmatpush2.bf16.msra.mxu0 %v2951
        %3171 = vmatprep.subr.bf16.mxu0 0
        %3172 = vmatpush2.bf16.msra.mxu0 %v2950
        %3173 = vmatprep.subr.bf16.mxu0 0
        %3174 = vmatpush2.bf16.msra.mxu0 %v2949
        %3175 = vmatprep.subr.bf16.mxu0 0
        %3176 = vmatpush2.bf16.msra.mxu0 %v2948
        %3177 = vmatprep.subr.bf16.mxu0 0
        %3178 = vmatpush2.bf16.msra.mxu0 %v2947
        %3179 = vmatprep.subr.bf16.mxu0 0
        %3180 = vmatpush2.bf16.msra.mxu0 %v2946
        %3181 = vmatprep.subr.bf16.mxu0 0
        %3182 = vmatpush2.bf16.msra.mxu0 %v2945
        %3183 = vmatprep.subr.bf16.mxu0 0
        %3184 = vmatpush2.bf16.msra.mxu0 %v2944
        %3185 = vmatprep.mubr.bf16.mxu0 %v2243
        %3186 = vmatmul.mubr.bf16.gmra.mxu0 %v2223
        %v3187 = vpop.f32.mrf.mxu0
        %v3188 = vadd.f32 %v3131, %v3187
        %v3189 = vpop.f32.mrf.mxu0
        %v3190 = vpop.f32.mrf.mxu0
        %v3191 = vadd.f32 %v3134, %v3190
        %v3192 = vpop.f32.mrf.mxu0
        %3193 = vmatprep.mubr.bf16.mxu0 %v2252
        %3194 = vmatmul.mubr.bf16.gmra.mxu0 %v2225
        %v3195 = vpop.f32.mrf.mxu0
        %v3196 = vadd.f32 %v3139, %v3195
        %v3197 = vpop.f32.mrf.mxu0
        %v3198 = vpop.f32.mrf.mxu0
        %v3199 = vadd.f32 %v3142, %v3198
        %v3200 = vpop.f32.mrf.mxu0
        %3201 = vmatprep.mubr.bf16.mxu0 %v2251
        %3202 = vmatmul.mubr.bf16.gmra.mxu0 %v2224
        %v3203 = vpop.f32.mrf.mxu0
        %v3204 = vadd.f32 %v3147, %v3203
        %v3205 = vpop.f32.mrf.mxu0
        %v3206 = vpop.f32.mrf.mxu0
        %v3207 = vadd.f32 %v3150, %v3206
        %v3208 = vpop.f32.mrf.mxu0
        %3209 = vdwg.mxu0
        %3210 = vmatprep.subr.bf16.mxu0 0
        %3211 = vmatpush1.bf16.msra.mxu0 %v2959
        %3212 = vmatprep.subr.bf16.mxu0 0
        %3213 = vmatpush1.bf16.msra.mxu0 %v2958
        %3214 = vmatprep.subr.bf16.mxu0 0
        %3215 = vmatpush1.bf16.msra.mxu0 %v2957
        %3216 = vmatprep.subr.bf16.mxu0 0
        %3217 = vmatpush1.bf16.msra.mxu0 %v2956
        %3218 = vmatprep.subr.bf16.mxu0 0
        %3219 = vmatpush1.bf16.msra.mxu0 %v2955
        %3220 = vmatprep.subr.bf16.mxu0 0
        %3221 = vmatpush1.bf16.msra.mxu0 %v2954
        %3222 = vmatprep.subr.bf16.mxu0 0
        %3223 = vmatpush1.bf16.msra.mxu0 %v2953
        %3224 = vmatprep.subr.bf16.mxu0 0
        %3225 = vmatpush1.bf16.msra.mxu0 %v2952
        %3226 = vmatprep.subr.bf16.mxu0 0
        %3227 = vmatpush2.bf16.msra.mxu0 %v2967
        %3228 = vmatprep.subr.bf16.mxu0 0
        %3229 = vmatpush2.bf16.msra.mxu0 %v2966
        %3230 = vmatprep.subr.bf16.mxu0 0
        %3231 = vmatpush2.bf16.msra.mxu0 %v2965
        %3232 = vmatprep.subr.bf16.mxu0 0
        %3233 = vmatpush2.bf16.msra.mxu0 %v2964
        %3234 = vmatprep.subr.bf16.mxu0 0
        %3235 = vmatpush2.bf16.msra.mxu0 %v2963
        %3236 = vmatprep.subr.bf16.mxu0 0
        %3237 = vmatpush2.bf16.msra.mxu0 %v2962
        %3238 = vmatprep.subr.bf16.mxu0 0
        %3239 = vmatpush2.bf16.msra.mxu0 %v2961
        %3240 = vmatprep.subr.bf16.mxu0 0
        %3241 = vmatpush2.bf16.msra.mxu0 %v2960
        %3242 = vmatprep.mubr.bf16.mxu0 %v2281
        %3243 = vmatmul.mubr.bf16.gmra.mxu0 %v2261
        %v3244 = vpop.f32.mrf.mxu0
        %v3245 = vadd.f32 %v3188, %v3244
        %v3246 = vpop.f32.mrf.mxu0
        %v3247 = vpop.f32.mrf.mxu0
        %v3248 = vadd.f32 %v3191, %v3247
        %v3249 = vpop.f32.mrf.mxu0
        %3250 = vmatprep.mubr.bf16.mxu0 %v2285
        %3251 = vmatmul.mubr.bf16.gmra.mxu0 %v2263
        %v3252 = vpop.f32.mrf.mxu0
        %v3253 = vadd.f32 %v3196, %v3252
        %v3254 = vpop.f32.mrf.mxu0
        %v3255 = vpop.f32.mrf.mxu0
        %v3256 = vadd.f32 %v3199, %v3255
        %v3257 = vpop.f32.mrf.mxu0
        %3258 = vmatprep.mubr.bf16.mxu0 %v2290
        %3259 = vmatmul.mubr.bf16.gmra.mxu0 %v2262
        %v3260 = vpop.f32.mrf.mxu0
        %v3261 = vadd.f32 %v3204, %v3260
        %v3262 = vpop.f32.mrf.mxu0
        %v3263 = vpop.f32.mrf.mxu0
        %v3264 = vadd.f32 %v3207, %v3263
        %v3265 = vpop.f32.mrf.mxu0
        %3266 = vdwg.mxu0
        %3267 = vmatprep.subr.bf16.mxu0 0
        %3268 = vmatpush1.bf16.msra.mxu0 %v2975
        %3269 = vmatprep.subr.bf16.mxu0 0
        %3270 = vmatpush1.bf16.msra.mxu0 %v2974
        %3271 = vmatprep.subr.bf16.mxu0 0
        %3272 = vmatpush1.bf16.msra.mxu0 %v2973
        %3273 = vmatprep.subr.bf16.mxu0 0
        %3274 = vmatpush1.bf16.msra.mxu0 %v2972
        %3275 = vmatprep.subr.bf16.mxu0 0
        %3276 = vmatpush1.bf16.msra.mxu0 %v2971
        %3277 = vmatprep.subr.bf16.mxu0 0
        %3278 = vmatpush1.bf16.msra.mxu0 %v2970
        %3279 = vmatprep.subr.bf16.mxu0 0
        %3280 = vmatpush1.bf16.msra.mxu0 %v2969
        %3281 = vmatprep.subr.bf16.mxu0 0
        %3282 = vmatpush1.bf16.msra.mxu0 %v2968
        %3283 = vmatprep.subr.bf16.mxu0 0
        %3284 = vmatpush2.bf16.msra.mxu0 %v2983
        %3285 = vmatprep.subr.bf16.mxu0 0
        %3286 = vmatpush2.bf16.msra.mxu0 %v2982
        %3287 = vmatprep.subr.bf16.mxu0 0
        %3288 = vmatpush2.bf16.msra.mxu0 %v2981
        %3289 = vmatprep.subr.bf16.mxu0 0
        %3290 = vmatpush2.bf16.msra.mxu0 %v2980
        %3291 = vmatprep.subr.bf16.mxu0 0
        %3292 = vmatpush2.bf16.msra.mxu0 %v2979
        %3293 = vmatprep.subr.bf16.mxu0 0
        %3294 = vmatpush2.bf16.msra.mxu0 %v2978
        %3295 = vmatprep.subr.bf16.mxu0 0
        %3296 = vmatpush2.bf16.msra.mxu0 %v2977
        %3297 = vmatprep.subr.bf16.mxu0 0
        %3298 = vmatpush2.bf16.msra.mxu0 %v2976
        %3299 = vmatprep.mubr.bf16.mxu0 %v2321
        %3300 = vmatmul.mubr.bf16.gmra.mxu0 %v2299
        %v3301 = vpop.f32.mrf.mxu0
        %v3302 = vadd.f32 %v3245, %v3301
        %v3303 = vpop.f32.mrf.mxu0
        %v3304 = vpop.f32.mrf.mxu0
        %v3305 = vadd.f32 %v3248, %v3304
        %v3306 = vpop.f32.mrf.mxu0
        %3307 = vmatprep.mubr.bf16.mxu0 %v2325
        %3308 = vmatmul.mubr.bf16.gmra.mxu0 %v2301
        %v3309 = vpop.f32.mrf.mxu0
        %v3310 = vadd.f32 %v3253, %v3309
        %v3311 = vpop.f32.mrf.mxu0
        %v3312 = vpop.f32.mrf.mxu0
        %v3313 = vadd.f32 %v3256, %v3312
        %v3314 = vpop.f32.mrf.mxu0
        %3315 = vmatprep.mubr.bf16.mxu0 %v2334
        %3316 = vmatmul.mubr.bf16.gmra.mxu0 %v2303
        %v3317 = vpop.f32.mrf.mxu0
        %v3318 = vadd.f32 %v3261, %v3317
        %v3319 = vpop.f32.mrf.mxu0
        %v3320 = vpop.f32.mrf.mxu0
        %v3321 = vadd.f32 %v3264, %v3320
        %v3322 = vpop.f32.mrf.mxu0
        %3323 = vdwg.mxu0
        %3324 = vmatprep.subr.bf16.mxu0 0
        %3325 = vmatpush1.bf16.msra.mxu0 %v2991
        %3326 = vmatprep.subr.bf16.mxu0 0
        %3327 = vmatpush1.bf16.msra.mxu0 %v2990
        %3328 = vmatprep.subr.bf16.mxu0 0
        %3329 = vmatpush1.bf16.msra.mxu0 %v2989
        %3330 = vmatprep.subr.bf16.mxu0 0
        %3331 = vmatpush1.bf16.msra.mxu0 %v2988
        %3332 = vmatprep.subr.bf16.mxu0 0
        %3333 = vmatpush1.bf16.msra.mxu0 %v2987
        %3334 = vmatprep.subr.bf16.mxu0 0
        %3335 = vmatpush1.bf16.msra.mxu0 %v2986
        %3336 = vmatprep.subr.bf16.mxu0 0
        %3337 = vmatpush1.bf16.msra.mxu0 %v2985
        %3338 = vmatprep.subr.bf16.mxu0 0
        %3339 = vmatpush1.bf16.msra.mxu0 %v2984
        %3340 = vmatprep.subr.bf16.mxu0 0
        %3341 = vmatpush2.bf16.msra.mxu0 %v2999
        %3342 = vmatprep.subr.bf16.mxu0 0
        %3343 = vmatpush2.bf16.msra.mxu0 %v2998
        %3344 = vmatprep.subr.bf16.mxu0 0
        %3345 = vmatpush2.bf16.msra.mxu0 %v2997
        %3346 = vmatprep.subr.bf16.mxu0 0
        %3347 = vmatpush2.bf16.msra.mxu0 %v2996
        %3348 = vmatprep.subr.bf16.mxu0 0
        %3349 = vmatpush2.bf16.msra.mxu0 %v2995
        %3350 = vmatprep.subr.bf16.mxu0 0
        %3351 = vmatpush2.bf16.msra.mxu0 %v2994
        %3352 = vmatprep.subr.bf16.mxu0 0
        %3353 = vmatpush2.bf16.msra.mxu0 %v2993
        %3354 = vmatprep.subr.bf16.mxu0 0
        %3355 = vmatpush2.bf16.msra.mxu0 %v2992
        %3356 = vmatprep.mubr.bf16.mxu0 %v2358
        %3357 = vmatmul.mubr.bf16.gmra.mxu0 %v2338
        %v3358 = vpop.f32.mrf.mxu0
        %v3359 = vadd.f32 %v3302, %v3358
        %v3360 = vpop.f32.mrf.mxu0
        %v3361 = vpop.f32.mrf.mxu0
        %v3362 = vadd.f32 %v3305, %v3361
        %v3363 = vpop.f32.mrf.mxu0
        %3364 = vmatprep.mubr.bf16.mxu0 %v2366
        %3365 = vmatmul.mubr.bf16.gmra.mxu0 %v2339
        %v3366 = vpop.f32.mrf.mxu0
        %v3367 = vadd.f32 %v3310, %v3366
        %v3368 = vpop.f32.mrf.mxu0
        %v3369 = vpop.f32.mrf.mxu0
        %v3370 = vadd.f32 %v3313, %v3369
        %v3371 = vpop.f32.mrf.mxu0
        %3372 = vmatprep.mubr.bf16.mxu0 %v2369
        %3373 = vmatmul.mubr.bf16.gmra.mxu0 %v2340
        %v3374 = vpop.f32.mrf.mxu0
        %v3375 = vadd.f32 %v3318, %v3374
        %v3376 = vpop.f32.mrf.mxu0
        %v3377 = vpop.f32.mrf.mxu0
        %v3378 = vadd.f32 %v3321, %v3377
        %v3379 = vpop.f32.mrf.mxu0
        %3380 = vdwg.mxu0
        %3381 = vmatprep.subr.bf16.mxu0 0
        %3382 = vmatpush1.bf16.msra.mxu0 %v3007
        %3383 = vmatprep.subr.bf16.mxu0 0
        %3384 = vmatpush1.bf16.msra.mxu0 %v3006
        %3385 = vmatprep.subr.bf16.mxu0 0
        %3386 = vmatpush1.bf16.msra.mxu0 %v3005
        %3387 = vmatprep.subr.bf16.mxu0 0
        %3388 = vmatpush1.bf16.msra.mxu0 %v3004
        %3389 = vmatprep.subr.bf16.mxu0 0
        %3390 = vmatpush1.bf16.msra.mxu0 %v3003
        %3391 = vmatprep.subr.bf16.mxu0 0
        %3392 = vmatpush1.bf16.msra.mxu0 %v3002
        %3393 = vmatprep.subr.bf16.mxu0 0
        %3394 = vmatpush1.bf16.msra.mxu0 %v3001
        %3395 = vmatprep.subr.bf16.mxu0 0
        %3396 = vmatpush1.bf16.msra.mxu0 %v3000
        %3397 = vmatprep.subr.bf16.mxu0 0
        %3398 = vmatpush2.bf16.msra.mxu0 0
        %3399 = vmatprep.subr.bf16.mxu0 0
        %3400 = vmatpush2.bf16.msra.mxu0 0
        %3401 = vmatprep.subr.bf16.mxu0 0
        %3402 = vmatpush2.bf16.msra.mxu0 0
        %3403 = vmatprep.subr.bf16.mxu0 0
        %3404 = vmatpush2.bf16.msra.mxu0 0
        %3405 = vmatprep.subr.bf16.mxu0 0
        %3406 = vmatpush2.bf16.msra.mxu0 0
        %3407 = vmatprep.subr.bf16.mxu0 0
        %3408 = vmatpush2.bf16.msra.mxu0 0
        %3409 = vmatprep.subr.bf16.mxu0 0
        %3410 = vmatpush2.bf16.msra.mxu0 0
        %3411 = vmatprep.subr.bf16.mxu0 0
        %3412 = vmatpush2.bf16.msra.mxu0 0
        %3413 = vmatprep.mubr.bf16.mxu0 0
        %3414 = vmatmul.mubr.bf16.gmra.mxu0 %v2378
        %v3415 = vpop.f32.mrf.mxu0
        %v3416 = vadd.f32 %v3359, %v3415
        %v3417 = vpop.f32.mrf.mxu0
        %v3418 = vpop.f32.mrf.mxu0
        %v3419 = vadd.f32 %v3362, %v3418
        %v3420 = vpop.f32.mrf.mxu0
        %3421 = vmatprep.mubr.bf16.mxu0 0
        %3422 = vmatmul.mubr.bf16.gmra.mxu0 %v2380
        %v3423 = vpop.f32.mrf.mxu0
        %v3424 = vadd.f32 %v3367, %v3423
        %v3425 = vpop.f32.mrf.mxu0
        %v3426 = vpop.f32.mrf.mxu0
        %v3427 = vadd.f32 %v3370, %v3426
        %v3428 = vpop.f32.mrf.mxu0
        %3429 = vmatprep.mubr.bf16.mxu0 0
        %3430 = vmatmul.mubr.bf16.gmra.mxu0 %v2379
        %v3431 = vpop.f32.mrf.mxu0
        %v3432 = vadd.f32 %v3375, %v3431
        %v3433 = vpop.f32.mrf.mxu0
        %v3434 = vpop.f32.mrf.mxu0
        %v3435 = vadd.f32 %v3378, %v3434
        %v3436 = vpop.f32.mrf.mxu0
        %3437 = vdwg.mxu0
        %s3438 = sadd.s32 %s196, 4294967290
        %v3439 = vstv %s3438
        %v3440 = vadd.s32 %v2055, %v3439
        %v3441 = vadd.s32 %v2056, %v3439
        %v3442 = vadd.s32 %v2057, %v3439
        %v3443 = vadd.s32 %v2058, %v3439
        %v3444 = vadd.s32 %v2059, %v3439
        %v3445 = vadd.s32 %v2060, %v3439
        %vm3446 = vcmp.ge.s32.totalorder %v3440, 0
        %vm3447 = vcmp.ge.s32.totalorder %v3441, 0
        %vm3448 = vcmp.ge.s32.totalorder %v3442, 0
        %vm3449 = vcmp.ge.s32.totalorder %v3443, 0
        %vm3450 = vcmp.ge.s32.totalorder %v3444, 0
        %vm3451 = vcmp.ge.s32.totalorder %v3445, 0
        %vm3452 = vcmp.lt.s32.totalorder %v3440, 64
        %vm3453 = vcmp.lt.s32.totalorder %v3441, 64
        %vm3454 = vcmp.lt.s32.totalorder %v3442, 64
        %vm3455 = vcmp.lt.s32.totalorder %v3443, 64
        %vm3456 = vcmp.lt.s32.totalorder %v3444, 64
        %vm3457 = vcmp.lt.s32.totalorder %v3445, 64
        %vm3458 = vmand %vm3446, %vm3452
        %vm3459 = vmand %vm3447, %vm3453
        %vm3460 = vmand %vm3448, %vm3454
        %vm3461 = vmand %vm3449, %vm3455
        %vm3462 = vmand %vm3450, %vm3456
        %vm3463 = vmand %vm3451, %vm3457
        %v3464 = vmax.f32 %v3416, 0.0
        %v3465 = vmax.f32 %v3419, 0.0
        %v3466 = vmax.f32 %v3424, 0.0
        %v3467 = vmax.f32 %v3427, 0.0
        %v3468 = vmax.f32 %v3432, 0.0
        %v3469 = vmax.f32 %v3435, 0.0
        %v3470 = vsel %vm3458, 1, 0
        %v3471 = vsel %vm3459, 1, 0
        %v3472 = vsel %vm3460, 1, 0
        %v3473 = vsel %vm3461, 1, 0
        %v3474 = vsel %vm3462, 1, 0
        %v3475 = vsel %vm3463, 1, 0
        %vm3476 = vcmp.eq.s32.totalorder %v3470, 1
        %vm3477 = vcmp.eq.s32.totalorder %v3471, 1
        %vm3478 = vcmp.eq.s32.totalorder %v3472, 1
        %vm3479 = vcmp.eq.s32.totalorder %v3473, 1
        %vm3480 = vcmp.eq.s32.totalorder %v3474, 1
        %vm3481 = vcmp.eq.s32.totalorder %v3475, 1
        %v3482 = vsel %vm3476, %v3464, 0.0
        %v3483 = vsel %vm3477, %v3465, 0.0
        %v3484 = vsel %vm3478, %v3466, 0.0
        %v3485 = vsel %vm3479, %v3467, 0.0
        %v3486 = vsel %vm3480, %v3468, 0.0
        %v3487 = vsel %vm3481, %v3469, 0.0
        %v3488 = vpack.c.bf16 %v3483, %v3482
        %v3489 = vpack.c.bf16 %v3485, %v3484
        %v3490 = vpack.c.bf16 %v3487, %v3486
        %v3494 = vunpack.c.l.b16 %v3488
        %v3495 = vunpack.c.h.b16 %v3488
        %v3496 = vunpack.c.l.b16 %v3489
        %v3497 = vunpack.c.h.b16 %v3489
        %v3498 = vunpack.c.l.b16 %v3490
        %v3499 = vunpack.c.h.b16 %v3490
        %v3500 = vpack.c.b16 %v3494, %v3494
        %v3501 = vpack.c.b16 %v3495, %v3495
        %v3502 = vpack.c.b16 %v3496, %v3496
        %v3503 = vpack.c.b16 %v3497, %v3497
        %v3504 = vpack.c.b16 %v3498, %v3498
        %v3505 = vpack.c.b16 %v3499, %v3499
        %3512 = vst [vmem:[#allocation3] sm:$0xf] %v3500
        %3513 = vst [vmem:[#allocation3 + $0x4] sm:$0xf] %v3501
        %3514 = vst [vmem:[#allocation3 + $0x8] sm:$0xf] %v3502
        %3515 = vst [vmem:[#allocation3 + $0xc] sm:$0xf] %v3503
        %3516 = vst [vmem:[#allocation3 + $0x10] sm:$0xf] %v3504
        %3517 = vst [vmem:[#allocation3 + $0x14] sm:$0x3] %v3505
        %v3518 = vld [vmem:[#allocation3] sm:$0xf]
        %v3519 = vld [vmem:[#allocation3 + $0x4] sm:$0xf]
        %v3520 = vld [vmem:[#allocation3 + $0x8] sm:$0xf]
        %v3521 = vld [vmem:[#allocation3 + $0xc] sm:$0xf]
        %v3522 = vld [vmem:[#allocation3 + $0x10] sm:$0x1]
        %v3523 = vld [vmem:[#allocation3 + $0x10] sm:$0x3]
        %v3524 = vld [vmem:[#allocation3] sm:$0xe]
        %v3525 = vld [vmem:[#allocation3 + $0x10] sm:$0x7]
        %v3526 = vld [vmem:[#allocation3] sm:$0xc]
        %v3527 = vld [vmem:[#allocation3 + $0x10] sm:$0xf]
        %v3528 = vld [vmem:[#allocation3] sm:$0x8]
        %v3529 = vld [vmem:[#allocation3 + $0x14] sm:$0x1]
        %v3530 = vld [vmem:[#allocation3 + $0x14] sm:$0x3]
        %v3531 = vld [vmem:[#allocation3 + $0x4] sm:$0xe]
        %v3537 = vunpack.c.l.b16 %v3518
        %v3538 = vunpack.c.l.b16 %v3519
        %v3539 = vunpack.c.l.b16 %v3520
        %v3540 = vunpack.c.l.b16 %v3521
        %v3541 = vunpack.c.l.b16 %v3522
        %v3542 = vpack.c.b16 %v3538, %v3537
        %v3543 = vpack.c.b16 %v3540, %v3539
        %v3544 = vpack.c.b16 %v3541, %v3541
        %v3549 = vunpack.c.l.b16 %v3523
        %v3550 = vpack.c.b16 %v3549, %v3549
        %v3552 = vshrl.u32 %v3542, 16
        %v3554 = vshll.u32 %v3542, 16
        %v3556 = vrot.slane %v3554, 1
        %v3557 = vor.u32 %v3552, %v3556
        %v3559 = vshll.u32 %v3543, 16
        %v3561 = vrot.slane %v3559, 1
        %v3562 = vsel %vm376, %v3557, %v3561
        %v3563 = vshrl.u32 %v3543, 16
        %v3565 = vor.u32 %v3563, %v3561
        %v3567 = vshll.u32 %v3550, 16
        %v3569 = vrot.slane %v3567, 1
        %v3570 = vsel %vm376, %v3565, %v3569
        %v3571 = vshrl.u32 %v3550, 16
        %v3573 = vor.u32 %v3571, %v3569
        %v3578 = vunpack.c.l.b16 %v3524
        %v3579 = vpack.c.b16 %v3538, %v3578
        %v3580 = vrot.slane %v3579, 1
        %v3581 = vrot.slane %v3543, 1
        %v3582 = vsel %vm412, %v3580, %v3581
        %v3583 = vrot.slane %v3550, 1
        %v3584 = vsel %vm412, %v3581, %v3583
        %v3589 = vunpack.c.l.b16 %v3525
        %v3590 = vpack.c.b16 %v3589, %v3589
        %v3592 = vshrl.u32 %v3579, 16
        %v3594 = vrot.slane %v3592, 1
        %v3595 = vshll.u32 %v3579, 16
        %v3597 = vrot.slane %v3595, 2
        %v3598 = vor.u32 %v3594, %v3597
        %v3599 = vrot.slane %v3563, 1
        %v3600 = vrot.slane %v3559, 2
        %v3601 = vor.u32 %v3599, %v3600
        %v3602 = vsel %vm427, %v3598, %v3601
        %v3604 = vshrl.u32 %v3590, 16
        %v3606 = vrot.slane %v3604, 1
        %v3607 = vshll.u32 %v3590, 16
        %v3609 = vrot.slane %v3607, 2
        %v3610 = vor.u32 %v3606, %v3609
        %v3611 = vsel %vm427, %v3601, %v3610
        %v3616 = vunpack.c.l.b16 %v3526
        %v3617 = vpack.c.b16 %v3538, %v3616
        %v3618 = vrot.slane %v3617, 2
        %v3619 = vrot.slane %v3543, 2
        %v3620 = vsel %vm452, %v3618, %v3619
        %v3621 = vrot.slane %v3590, 2
        %v3622 = vsel %vm452, %v3619, %v3621
        %v3627 = vunpack.c.l.b16 %v3527
        %v3628 = vpack.c.b16 %v3627, %v3627
        %v3630 = vshrl.u32 %v3617, 16
        %v3632 = vrot.slane %v3630, 2
        %v3633 = vshll.u32 %v3617, 16
        %v3635 = vrot.slane %v3633, 3
        %v3636 = vor.u32 %v3632, %v3635
        %v3637 = vrot.slane %v3563, 2
        %v3638 = vrot.slane %v3559, 3
        %v3639 = vor.u32 %v3637, %v3638
        %v3640 = vsel %vm464, %v3636, %v3639
        %v3642 = vshrl.u32 %v3628, 16
        %v3644 = vrot.slane %v3642, 2
        %v3645 = vshll.u32 %v3628, 16
        %v3647 = vrot.slane %v3645, 3
        %v3648 = vor.u32 %v3644, %v3647
        %v3649 = vsel %vm464, %v3639, %v3648
        %v3654 = vunpack.c.l.b16 %v3528
        %v3655 = vpack.c.b16 %v3538, %v3654
        %v3656 = vrot.slane %v3655, 3
        %v3657 = vrot.slane %v3543, 3
        %v3658 = vsel %vm484, %v3656, %v3657
        %v3659 = vrot.slane %v3628, 3
        %v3660 = vsel %vm484, %v3657, %v3659
        %v3665 = vunpack.c.l.b16 %v3529
        %v3666 = vpack.c.b16 %v3665, %v3627
        %v3668 = vshrl.u32 %v3655, 16
        %v3670 = vrot.slane %v3668, 3
        %v3671 = vshll.u32 %v3655, 16
        %v3673 = vrot.slane %v3671, 4
        %v3674 = vor.u32 %v3670, %v3673
        %v3675 = vrot.slane %v3563, 3
        %v3676 = vrot.slane %v3559, 4
        %v3677 = vor.u32 %v3675, %v3676
        %v3678 = vsel %vm496, %v3674, %v3677
        %v3680 = vshrl.u32 %v3666, 16
        %v3682 = vrot.slane %v3680, 3
        %v3683 = vshll.u32 %v3666, 16
        %v3685 = vrot.slane %v3683, 4
        %v3686 = vor.u32 %v3682, %v3685
        %v3687 = vsel %vm496, %v3677, %v3686
        %v3691 = vpack.c.b16 %v3539, %v3538
        %v3692 = vpack.c.b16 %v3627, %v3540
        %v3693 = vpack.c.b16 %v3665, %v3665
        %v3698 = vunpack.c.l.b16 %v3530
        %v3699 = vpack.c.b16 %v3698, %v3698
        %v3701 = vshrl.u32 %v3691, 16
        %v3703 = vshll.u32 %v3691, 16
        %v3705 = vrot.slane %v3703, 1
        %v3706 = vor.u32 %v3701, %v3705
        %v3708 = vshll.u32 %v3692, 16
        %v3710 = vrot.slane %v3708, 1
        %v3711 = vsel %vm376, %v3706, %v3710
        %v3712 = vshrl.u32 %v3692, 16
        %v3714 = vor.u32 %v3712, %v3710
        %v3716 = vshll.u32 %v3699, 16
        %v3718 = vrot.slane %v3716, 1
        %v3719 = vsel %vm376, %v3714, %v3718
        %v3720 = vshrl.u32 %v3699, 16
        %v3722 = vor.u32 %v3720, %v3718
        %v3727 = vunpack.c.l.b16 %v3531
        %v3728 = vpack.c.b16 %v3539, %v3727
        %v3729 = vrot.slane %v3728, 1
        %v3730 = vrot.slane %v3692, 1
        %v3731 = vsel %vm412, %v3729, %v3730
        %v3732 = vrot.slane %v3699, 1
        %v3733 = vsel %vm412, %v3730, %v3732
        %s3737 = scalar_lea.vmem [#allocation8], 704
        %v3738 = vld [vmem:[%s3737] sm:$0xf]
        %v3739 = vld [vmem:[%s3737 + $0x4] sm:$0xf]
        %v3740 = vld [vmem:[%s3737 + $0x8] sm:$0xf]
        %v3741 = vld [vmem:[%s3737 + $0xc] sm:$0xf]
        %v3742 = vld [vmem:[%s3737 + $0x10] sm:$0xf]
        %v3743 = vld [vmem:[%s3737 + $0x14] sm:$0xf]
        %v3744 = vld [vmem:[%s3737 + $0x18] sm:$0xf]
        %v3745 = vld [vmem:[%s3737 + $0x1c] sm:$0xf]
        %v3746 = vld [vmem:[%s3737 + $0x20] sm:$0xf]
        %v3747 = vld [vmem:[%s3737 + $0x24] sm:$0xf]
        %v3748 = vld [vmem:[%s3737 + $0x28] sm:$0xf]
        %v3749 = vld [vmem:[%s3737 + $0x2c] sm:$0xf]
        %v3750 = vld [vmem:[%s3737 + $0x30] sm:$0xf]
        %v3751 = vld [vmem:[%s3737 + $0x34] sm:$0xf]
        %v3752 = vld [vmem:[%s3737 + $0x38] sm:$0xf]
        %v3753 = vld [vmem:[%s3737 + $0x3c] sm:$0xf]
        %v3754 = vld [vmem:[%s3737 + $0x40] sm:$0xf]
        %v3755 = vld [vmem:[%s3737 + $0x44] sm:$0xf]
        %v3756 = vld [vmem:[%s3737 + $0x48] sm:$0xf]
        %v3757 = vld [vmem:[%s3737 + $0x4c] sm:$0xf]
        %v3758 = vld [vmem:[%s3737 + $0x50] sm:$0xf]
        %v3759 = vld [vmem:[%s3737 + $0x54] sm:$0xf]
        %v3760 = vld [vmem:[%s3737 + $0x58] sm:$0xf]
        %v3761 = vld [vmem:[%s3737 + $0x5c] sm:$0xf]
        %v3762 = vld [vmem:[%s3737 + $0x60] sm:$0xf]
        %v3763 = vld [vmem:[%s3737 + $0x64] sm:$0xf]
        %v3764 = vld [vmem:[%s3737 + $0x68] sm:$0xf]
        %v3765 = vld [vmem:[%s3737 + $0x6c] sm:$0xf]
        %v3766 = vld [vmem:[%s3737 + $0x70] sm:$0xf]
        %v3767 = vld [vmem:[%s3737 + $0x74] sm:$0xf]
        %v3768 = vld [vmem:[%s3737 + $0x78] sm:$0xf]
        %v3769 = vld [vmem:[%s3737 + $0x7c] sm:$0xf]
        %v3770 = vld [vmem:[%s3737 + $0x80] sm:$0xf]
        %v3771 = vld [vmem:[%s3737 + $0x84] sm:$0xf]
        %v3772 = vld [vmem:[%s3737 + $0x88] sm:$0xf]
        %v3773 = vld [vmem:[%s3737 + $0x8c] sm:$0xf]
        %v3774 = vld [vmem:[%s3737 + $0x90] sm:$0xf]
        %v3775 = vld [vmem:[%s3737 + $0x94] sm:$0xf]
        %v3776 = vld [vmem:[%s3737 + $0x98] sm:$0xf]
        %v3777 = vld [vmem:[%s3737 + $0x9c] sm:$0xf]
        %v3778 = vld [vmem:[%s3737 + $0xa0] sm:$0xf]
        %v3779 = vld [vmem:[%s3737 + $0xa4] sm:$0xf]
        %v3780 = vld [vmem:[%s3737 + $0xa8] sm:$0xf]
        %v3781 = vld [vmem:[%s3737 + $0xac] sm:$0xf]
        %v3782 = vld [vmem:[%s3737 + $0xb0] sm:$0xf]
        %v3783 = vld [vmem:[%s3737 + $0xb4] sm:$0xf]
        %v3784 = vld [vmem:[%s3737 + $0xb8] sm:$0xf]
        %v3785 = vld [vmem:[%s3737 + $0xbc] sm:$0xf]
        %v3786 = vld [vmem:[%s3737 + $0xc0] sm:$0xf]
        %v3787 = vld [vmem:[%s3737 + $0xc4] sm:$0xf]
        %v3788 = vld [vmem:[%s3737 + $0xc8] sm:$0xf]
        %v3789 = vld [vmem:[%s3737 + $0xcc] sm:$0xf]
        %v3790 = vld [vmem:[%s3737 + $0xd0] sm:$0xf]
        %v3791 = vld [vmem:[%s3737 + $0xd4] sm:$0xf]
        %v3792 = vld [vmem:[%s3737 + $0xd8] sm:$0xf]
        %v3793 = vld [vmem:[%s3737 + $0xdc] sm:$0xf]
        %v3794 = vld [vmem:[%s3737 + $0xe0] sm:$0xf]
        %v3795 = vld [vmem:[%s3737 + $0xe4] sm:$0xf]
        %v3796 = vld [vmem:[%s3737 + $0xe8] sm:$0xf]
        %v3797 = vld [vmem:[%s3737 + $0xec] sm:$0xf]
        %v3798 = vld [vmem:[%s3737 + $0xf0] sm:$0xf]
        %v3799 = vld [vmem:[%s3737 + $0xf4] sm:$0xf]
        %v3800 = vld [vmem:[%s3737 + $0xf8] sm:$0xf]
        %v3801 = vld [vmem:[%s3737 + $0xfc] sm:$0xf]
        %v3802 = vld [vmem:[%s3737 + $0x100] sm:$0xf]
        %v3803 = vld [vmem:[%s3737 + $0x104] sm:$0xf]
        %v3804 = vld [vmem:[%s3737 + $0x108] sm:$0xf]
        %v3805 = vld [vmem:[%s3737 + $0x10c] sm:$0xf]
        %v3806 = vld [vmem:[%s3737 + $0x110] sm:$0xf]
        %v3807 = vld [vmem:[%s3737 + $0x114] sm:$0xf]
        %v3808 = vld [vmem:[%s3737 + $0x118] sm:$0xf]
        %v3809 = vld [vmem:[%s3737 + $0x11c] sm:$0xf]
        %v3810 = vld [vmem:[%s3737 + $0x120] sm:$0xf]
        %v3811 = vld [vmem:[%s3737 + $0x124] sm:$0xf]
        %v3812 = vld [vmem:[%s3737 + $0x128] sm:$0xf]
        %v3813 = vld [vmem:[%s3737 + $0x12c] sm:$0xf]
        %v3814 = vld [vmem:[%s3737 + $0x130] sm:$0xf]
        %v3815 = vld [vmem:[%s3737 + $0x134] sm:$0xf]
        %v3816 = vld [vmem:[%s3737 + $0x138] sm:$0xf]
        %v3817 = vld [vmem:[%s3737 + $0x13c] sm:$0xf]
        %v3818 = vld [vmem:[%s3737 + $0x140] sm:$0xf]
        %v3819 = vld [vmem:[%s3737 + $0x144] sm:$0xf]
        %v3820 = vld [vmem:[%s3737 + $0x148] sm:$0xf]
        %v3821 = vld [vmem:[%s3737 + $0x14c] sm:$0xf]
        %v3822 = vld [vmem:[%s3737 + $0x150] sm:$0xf]
        %v3823 = vld [vmem:[%s3737 + $0x154] sm:$0xf]
        %v3824 = vld [vmem:[%s3737 + $0x158] sm:$0xf]
        %v3825 = vld [vmem:[%s3737 + $0x15c] sm:$0xf]
        %v3826 = vld [vmem:[%s3737 + $0x160] sm:$0xf]
        %v3827 = vld [vmem:[%s3737 + $0x164] sm:$0xf]
        %v3828 = vld [vmem:[%s3737 + $0x168] sm:$0xf]
        %v3829 = vld [vmem:[%s3737 + $0x16c] sm:$0xf]
        %v3830 = vld [vmem:[%s3737 + $0x170] sm:$0xf]
        %v3831 = vld [vmem:[%s3737 + $0x174] sm:$0xf]
        %v3832 = vld [vmem:[%s3737 + $0x178] sm:$0xf]
        %v3833 = vld [vmem:[%s3737 + $0x17c] sm:$0xf]
        %v3834 = vld [vmem:[%s3737 + $0x180] sm:$0xf]
        %v3835 = vld [vmem:[%s3737 + $0x184] sm:$0xf]
        %v3836 = vld [vmem:[%s3737 + $0x188] sm:$0xf]
        %v3837 = vld [vmem:[%s3737 + $0x18c] sm:$0xf]
        %v3838 = vld [vmem:[%s3737 + $0x190] sm:$0xf]
        %v3839 = vld [vmem:[%s3737 + $0x194] sm:$0xf]
        %v3840 = vld [vmem:[%s3737 + $0x198] sm:$0xf]
        %v3841 = vld [vmem:[%s3737 + $0x19c] sm:$0xf]
        %v3842 = vld [vmem:[%s3737 + $0x1a0] sm:$0xf]
        %v3843 = vld [vmem:[%s3737 + $0x1a4] sm:$0xf]
        %v3844 = vld [vmem:[%s3737 + $0x1a8] sm:$0xf]
        %v3845 = vld [vmem:[%s3737 + $0x1ac] sm:$0xf]
        %v3846 = vld [vmem:[%s3737 + $0x1b0] sm:$0xf]
        %v3847 = vld [vmem:[%s3737 + $0x1b4] sm:$0xf]
        %v3848 = vld [vmem:[%s3737 + $0x1b8] sm:$0xf]
        %v3849 = vld [vmem:[%s3737 + $0x1bc] sm:$0xf]
        %v3850 = vld [vmem:[%s3737 + $0x1c0] sm:$0xf]
        %v3851 = vld [vmem:[%s3737 + $0x1c4] sm:$0xf]
        %v3852 = vld [vmem:[%s3737 + $0x1c8] sm:$0xf]
        %v3853 = vld [vmem:[%s3737 + $0x1cc] sm:$0xf]
        %v3854 = vld [vmem:[%s3737 + $0x1d0] sm:$0xf]
        %v3855 = vld [vmem:[%s3737 + $0x1d4] sm:$0xf]
        %v3856 = vld [vmem:[%s3737 + $0x1d8] sm:$0xf]
        %v3857 = vld [vmem:[%s3737 + $0x1dc] sm:$0xf]
        %v3858 = vld [vmem:[%s3737 + $0x1e0] sm:$0xf]
        %v3859 = vld [vmem:[%s3737 + $0x1e4] sm:$0xf]
        %v3860 = vld [vmem:[%s3737 + $0x1e8] sm:$0xf]
        %v3861 = vld [vmem:[%s3737 + $0x1ec] sm:$0xf]
        %v3862 = vld [vmem:[%s3737 + $0x1f0] sm:$0xf]
        %v3863 = vld [vmem:[%s3737 + $0x1f4] sm:$0xf]
        %v3864 = vld [vmem:[%s3737 + $0x1f8] sm:$0xf]
        %v3865 = vld [vmem:[%s3737 + $0x1fc] sm:$0xf]
        %v3866 = vld [vmem:[%s3737 + $0x200] sm:$0xf]
        %v3867 = vld [vmem:[%s3737 + $0x204] sm:$0xf]
        %v3868 = vld [vmem:[%s3737 + $0x208] sm:$0xf]
        %v3869 = vld [vmem:[%s3737 + $0x20c] sm:$0xf]
        %v3870 = vld [vmem:[%s3737 + $0x210] sm:$0xf]
        %v3871 = vld [vmem:[%s3737 + $0x214] sm:$0xf]
        %v3872 = vld [vmem:[%s3737 + $0x218] sm:$0xf]
        %v3873 = vld [vmem:[%s3737 + $0x21c] sm:$0xf]
        %v3874 = vld [vmem:[%s3737 + $0x220] sm:$0xf]
        %v3875 = vld [vmem:[%s3737 + $0x224] sm:$0xf]
        %v3876 = vld [vmem:[%s3737 + $0x228] sm:$0xf]
        %v3877 = vld [vmem:[%s3737 + $0x22c] sm:$0xf]
        %v3878 = vld [vmem:[%s3737 + $0x230] sm:$0xf]
        %v3879 = vld [vmem:[%s3737 + $0x234] sm:$0xf]
        %v3880 = vld [vmem:[%s3737 + $0x238] sm:$0xf]
        %v3881 = vld [vmem:[%s3737 + $0x23c] sm:$0xf]
        %v3882 = vld [vmem:[%s3737 + $0x240] sm:$0xf]
        %v3883 = vld [vmem:[%s3737 + $0x244] sm:$0xf]
        %v3884 = vld [vmem:[%s3737 + $0x248] sm:$0xf]
        %v3885 = vld [vmem:[%s3737 + $0x24c] sm:$0xf]
        %v3886 = vld [vmem:[%s3737 + $0x250] sm:$0xf]
        %v3887 = vld [vmem:[%s3737 + $0x254] sm:$0xf]
        %v3888 = vld [vmem:[%s3737 + $0x258] sm:$0xf]
        %v3889 = vld [vmem:[%s3737 + $0x25c] sm:$0xf]
        %v3890 = vld [vmem:[%s3737 + $0x260] sm:$0xf]
        %v3891 = vld [vmem:[%s3737 + $0x264] sm:$0xf]
        %v3892 = vld [vmem:[%s3737 + $0x268] sm:$0xf]
        %v3893 = vld [vmem:[%s3737 + $0x26c] sm:$0xf]
        %v3894 = vld [vmem:[%s3737 + $0x270] sm:$0xf]
        %v3895 = vld [vmem:[%s3737 + $0x274] sm:$0xf]
        %v3896 = vld [vmem:[%s3737 + $0x278] sm:$0xf]
        %v3897 = vld [vmem:[%s3737 + $0x27c] sm:$0xf]
        %v3898 = vld [vmem:[%s3737 + $0x280] sm:$0xf]
        %v3899 = vld [vmem:[%s3737 + $0x284] sm:$0xf]
        %v3900 = vld [vmem:[%s3737 + $0x288] sm:$0xf]
        %v3901 = vld [vmem:[%s3737 + $0x28c] sm:$0xf]
        %v3902 = vld [vmem:[%s3737 + $0x290] sm:$0xf]
        %v3903 = vld [vmem:[%s3737 + $0x294] sm:$0xf]
        %v3904 = vld [vmem:[%s3737 + $0x298] sm:$0xf]
        %v3905 = vld [vmem:[%s3737 + $0x29c] sm:$0xf]
        %v3906 = vld [vmem:[%s3737 + $0x2a0] sm:$0xf]
        %v3907 = vld [vmem:[%s3737 + $0x2a4] sm:$0xf]
        %v3908 = vld [vmem:[%s3737 + $0x2a8] sm:$0xf]
        %v3909 = vld [vmem:[%s3737 + $0x2ac] sm:$0xf]
        %v3910 = vld [vmem:[%s3737 + $0x2b0] sm:$0xf]
        %v3911 = vld [vmem:[%s3737 + $0x2b4] sm:$0xf]
        %v3912 = vld [vmem:[%s3737 + $0x2b8] sm:$0xf]
        %v3913 = vld [vmem:[%s3737 + $0x2bc] sm:$0xf]
        %s3914 = scalar_lea.vmem %s3, 2
        %v3915 = vld [vmem:[%s3914] sm:$0x1]
        %v3917 = vlaneseq
        %v3918 = vshrl.u32 %v3917, 7
        %v3919 = vsub.s32 0, %v3918
        %v3920 = vrot.slane %v3915, %v3919
        %v4098 = vunpack.c.l.b16 %v3738
        %v4099 = vunpack.c.l.b16 %v3739
        %v4100 = vunpack.c.l.b16 %v3740
        %v4101 = vunpack.c.l.b16 %v3741
        %v4102 = vunpack.c.l.b16 %v3742
        %v4103 = vunpack.c.l.b16 %v3743
        %v4104 = vunpack.c.l.b16 %v3744
        %v4105 = vunpack.c.l.b16 %v3745
        %v4106 = vunpack.c.l.b16 %v3746
        %v4107 = vunpack.c.l.b16 %v3747
        %v4108 = vunpack.c.l.b16 %v3748
        %v4109 = vunpack.c.l.b16 %v3749
        %v4110 = vunpack.c.l.b16 %v3750
        %v4111 = vunpack.c.l.b16 %v3751
        %v4112 = vunpack.c.l.b16 %v3752
        %v4113 = vunpack.c.l.b16 %v3753
        %v4114 = vunpack.c.l.b16 %v3754
        %v4115 = vunpack.c.l.b16 %v3755
        %v4116 = vunpack.c.l.b16 %v3756
        %v4117 = vunpack.c.l.b16 %v3757
        %v4118 = vunpack.c.l.b16 %v3758
        %v4119 = vunpack.c.l.b16 %v3759
        %v4120 = vunpack.c.l.b16 %v3760
        %v4121 = vunpack.c.l.b16 %v3761
        %v4122 = vunpack.c.l.b16 %v3762
        %v4123 = vunpack.c.l.b16 %v3763
        %v4124 = vunpack.c.l.b16 %v3764
        %v4125 = vunpack.c.l.b16 %v3765
        %v4126 = vunpack.c.l.b16 %v3766
        %v4127 = vunpack.c.l.b16 %v3767
        %v4128 = vunpack.c.l.b16 %v3768
        %v4129 = vunpack.c.l.b16 %v3769
        %v4130 = vunpack.c.l.b16 %v3770
        %v4131 = vunpack.c.l.b16 %v3771
        %v4132 = vunpack.c.l.b16 %v3772
        %v4133 = vunpack.c.l.b16 %v3773
        %v4134 = vunpack.c.l.b16 %v3774
        %v4135 = vunpack.c.l.b16 %v3775
        %v4136 = vunpack.c.l.b16 %v3776
        %v4137 = vunpack.c.l.b16 %v3777
        %v4138 = vunpack.c.l.b16 %v3778
        %v4139 = vunpack.c.l.b16 %v3779
        %v4140 = vunpack.c.l.b16 %v3780
        %v4141 = vunpack.c.l.b16 %v3781
        %v4142 = vunpack.c.l.b16 %v3782
        %v4143 = vunpack.c.l.b16 %v3783
        %v4144 = vunpack.c.l.b16 %v3784
        %v4145 = vunpack.c.l.b16 %v3785
        %v4146 = vunpack.c.l.b16 %v3786
        %v4147 = vunpack.c.l.b16 %v3787
        %v4148 = vunpack.c.l.b16 %v3788
        %v4149 = vunpack.c.l.b16 %v3789
        %v4150 = vunpack.c.l.b16 %v3790
        %v4151 = vunpack.c.l.b16 %v3791
        %v4152 = vunpack.c.l.b16 %v3792
        %v4153 = vunpack.c.l.b16 %v3793
        %v4154 = vunpack.c.l.b16 %v3794
        %v4155 = vunpack.c.l.b16 %v3795
        %v4156 = vunpack.c.l.b16 %v3796
        %v4157 = vunpack.c.l.b16 %v3797
        %v4158 = vunpack.c.l.b16 %v3798
        %v4159 = vunpack.c.l.b16 %v3799
        %v4160 = vunpack.c.l.b16 %v3800
        %v4161 = vunpack.c.l.b16 %v3801
        %v4162 = vunpack.c.l.b16 %v3802
        %v4163 = vunpack.c.l.b16 %v3803
        %v4164 = vunpack.c.l.b16 %v3804
        %v4165 = vunpack.c.l.b16 %v3805
        %v4166 = vunpack.c.l.b16 %v3806
        %v4167 = vunpack.c.l.b16 %v3807
        %v4168 = vunpack.c.l.b16 %v3808
        %v4169 = vunpack.c.l.b16 %v3809
        %v4170 = vunpack.c.l.b16 %v3810
        %v4171 = vunpack.c.l.b16 %v3811
        %v4172 = vunpack.c.l.b16 %v3812
        %v4173 = vunpack.c.l.b16 %v3813
        %v4174 = vunpack.c.l.b16 %v3814
        %v4175 = vunpack.c.l.b16 %v3815
        %v4176 = vunpack.c.l.b16 %v3816
        %v4177 = vunpack.c.l.b16 %v3817
        %v4178 = vunpack.c.l.b16 %v3818
        %v4179 = vunpack.c.l.b16 %v3819
        %v4180 = vunpack.c.l.b16 %v3820
        %v4181 = vunpack.c.l.b16 %v3821
        %v4182 = vunpack.c.l.b16 %v3822
        %v4183 = vunpack.c.l.b16 %v3823
        %v4184 = vunpack.c.l.b16 %v3824
        %v4185 = vunpack.c.l.b16 %v3825
        %v4186 = vunpack.c.l.b16 %v3826
        %v4187 = vunpack.c.l.b16 %v3827
        %v4188 = vunpack.c.l.b16 %v3828
        %v4189 = vunpack.c.l.b16 %v3829
        %v4190 = vunpack.c.l.b16 %v3830
        %v4191 = vunpack.c.l.b16 %v3831
        %v4192 = vunpack.c.l.b16 %v3832
        %v4193 = vunpack.c.l.b16 %v3833
        %v4194 = vunpack.c.l.b16 %v3834
        %v4195 = vunpack.c.l.b16 %v3835
        %v4196 = vunpack.c.l.b16 %v3836
        %v4197 = vunpack.c.l.b16 %v3837
        %v4198 = vunpack.c.l.b16 %v3838
        %v4199 = vunpack.c.l.b16 %v3839
        %v4200 = vunpack.c.l.b16 %v3840
        %v4201 = vunpack.c.l.b16 %v3841
        %v4202 = vunpack.c.l.b16 %v3842
        %v4203 = vunpack.c.l.b16 %v3843
        %v4204 = vunpack.c.l.b16 %v3844
        %v4205 = vunpack.c.l.b16 %v3845
        %v4206 = vunpack.c.l.b16 %v3846
        %v4207 = vunpack.c.l.b16 %v3847
        %v4208 = vunpack.c.l.b16 %v3848
        %v4209 = vunpack.c.l.b16 %v3849
        %v4210 = vunpack.c.l.b16 %v3850
        %v4211 = vunpack.c.l.b16 %v3851
        %v4212 = vunpack.c.l.b16 %v3852
        %v4213 = vunpack.c.l.b16 %v3853
        %v4214 = vunpack.c.l.b16 %v3854
        %v4215 = vunpack.c.l.b16 %v3855
        %v4216 = vunpack.c.l.b16 %v3856
        %v4217 = vunpack.c.l.b16 %v3857
        %v4218 = vunpack.c.l.b16 %v3858
        %v4219 = vunpack.c.l.b16 %v3859
        %v4220 = vunpack.c.l.b16 %v3860
        %v4221 = vunpack.c.l.b16 %v3861
        %v4222 = vunpack.c.l.b16 %v3862
        %v4223 = vunpack.c.l.b16 %v3863
        %v4224 = vunpack.c.l.b16 %v3864
        %v4225 = vunpack.c.l.b16 %v3865
        %v4226 = vunpack.c.l.b16 %v3866
        %v4227 = vunpack.c.l.b16 %v3867
        %v4228 = vunpack.c.l.b16 %v3868
        %v4229 = vunpack.c.l.b16 %v3869
        %v4230 = vunpack.c.l.b16 %v3870
        %v4231 = vunpack.c.l.b16 %v3871
        %v4232 = vunpack.c.l.b16 %v3872
        %v4233 = vunpack.c.l.b16 %v3873
        %v4234 = vunpack.c.l.b16 %v3874
        %v4235 = vunpack.c.l.b16 %v3875
        %v4236 = vunpack.c.l.b16 %v3876
        %v4237 = vunpack.c.l.b16 %v3877
        %v4238 = vunpack.c.l.b16 %v3878
        %v4239 = vunpack.c.l.b16 %v3879
        %v4240 = vunpack.c.l.b16 %v3880
        %v4241 = vunpack.c.l.b16 %v3881
        %v4242 = vunpack.c.l.b16 %v3882
        %v4243 = vunpack.c.l.b16 %v3883
        %v4244 = vunpack.c.l.b16 %v3884
        %v4245 = vunpack.c.l.b16 %v3885
        %v4246 = vunpack.c.l.b16 %v3886
        %v4247 = vunpack.c.l.b16 %v3887
        %v4248 = vunpack.c.l.b16 %v3888
        %v4249 = vunpack.c.l.b16 %v3889
        %v4250 = vunpack.c.l.b16 %v3890
        %v4251 = vunpack.c.l.b16 %v3891
        %v4252 = vunpack.c.l.b16 %v3892
        %v4253 = vunpack.c.l.b16 %v3893
        %v4254 = vunpack.c.l.b16 %v3894
        %v4255 = vunpack.c.l.b16 %v3895
        %v4256 = vunpack.c.l.b16 %v3896
        %v4257 = vunpack.c.l.b16 %v3897
        %v4258 = vunpack.c.l.b16 %v3898
        %v4259 = vunpack.c.l.b16 %v3899
        %v4260 = vunpack.c.l.b16 %v3900
        %v4261 = vunpack.c.l.b16 %v3901
        %v4262 = vunpack.c.l.b16 %v3902
        %v4263 = vunpack.c.l.b16 %v3903
        %v4264 = vunpack.c.l.b16 %v3904
        %v4265 = vunpack.c.l.b16 %v3905
        %v4266 = vunpack.c.l.b16 %v3906
        %v4267 = vunpack.c.l.b16 %v3907
        %v4268 = vunpack.c.l.b16 %v3908
        %v4269 = vunpack.c.l.b16 %v3909
        %v4270 = vunpack.c.l.b16 %v3910
        %v4271 = vunpack.c.l.b16 %v3911
        %v4272 = vunpack.c.l.b16 %v3912
        %v4273 = vunpack.c.l.b16 %v3913
        %v4274 = vpack.c.b16 %v4099, %v4098
        %v4275 = vpack.c.b16 %v4101, %v4100
        %v4276 = vpack.c.b16 %v4103, %v4102
        %v4277 = vpack.c.b16 %v4105, %v4104
        %v4278 = vpack.c.b16 %v4107, %v4106
        %v4279 = vpack.c.b16 %v4109, %v4108
        %v4280 = vpack.c.b16 %v4111, %v4110
        %v4281 = vpack.c.b16 %v4113, %v4112
        %v4282 = vpack.c.b16 %v4115, %v4114
        %v4283 = vpack.c.b16 %v4117, %v4116
        %v4284 = vpack.c.b16 %v4119, %v4118
        %v4285 = vpack.c.b16 %v4121, %v4120
        %v4286 = vpack.c.b16 %v4123, %v4122
        %v4287 = vpack.c.b16 %v4125, %v4124
        %v4288 = vpack.c.b16 %v4127, %v4126
        %v4289 = vpack.c.b16 %v4129, %v4128
        %v4290 = vpack.c.b16 %v4131, %v4130
        %v4291 = vpack.c.b16 %v4133, %v4132
        %v4292 = vpack.c.b16 %v4135, %v4134
        %v4293 = vpack.c.b16 %v4137, %v4136
        %v4294 = vpack.c.b16 %v4139, %v4138
        %v4295 = vpack.c.b16 %v4141, %v4140
        %v4296 = vpack.c.b16 %v4143, %v4142
        %v4297 = vpack.c.b16 %v4145, %v4144
        %v4298 = vpack.c.b16 %v4147, %v4146
        %v4299 = vpack.c.b16 %v4149, %v4148
        %v4300 = vpack.c.b16 %v4151, %v4150
        %v4301 = vpack.c.b16 %v4153, %v4152
        %v4302 = vpack.c.b16 %v4155, %v4154
        %v4303 = vpack.c.b16 %v4157, %v4156
        %v4304 = vpack.c.b16 %v4159, %v4158
        %v4305 = vpack.c.b16 %v4161, %v4160
        %v4306 = vpack.c.b16 %v4163, %v4162
        %v4307 = vpack.c.b16 %v4165, %v4164
        %v4308 = vpack.c.b16 %v4167, %v4166
        %v4309 = vpack.c.b16 %v4169, %v4168
        %v4310 = vpack.c.b16 %v4171, %v4170
        %v4311 = vpack.c.b16 %v4173, %v4172
        %v4312 = vpack.c.b16 %v4175, %v4174
        %v4313 = vpack.c.b16 %v4177, %v4176
        %v4314 = vpack.c.b16 %v4179, %v4178
        %v4315 = vpack.c.b16 %v4181, %v4180
        %v4316 = vpack.c.b16 %v4183, %v4182
        %v4317 = vpack.c.b16 %v4185, %v4184
        %v4318 = vpack.c.b16 %v4187, %v4186
        %v4319 = vpack.c.b16 %v4189, %v4188
        %v4320 = vpack.c.b16 %v4191, %v4190
        %v4321 = vpack.c.b16 %v4193, %v4192
        %v4322 = vpack.c.b16 %v4195, %v4194
        %v4323 = vpack.c.b16 %v4197, %v4196
        %v4324 = vpack.c.b16 %v4199, %v4198
        %v4325 = vpack.c.b16 %v4201, %v4200
        %v4326 = vpack.c.b16 %v4203, %v4202
        %v4327 = vpack.c.b16 %v4205, %v4204
        %v4328 = vpack.c.b16 %v4207, %v4206
        %v4329 = vpack.c.b16 %v4209, %v4208
        %v4330 = vpack.c.b16 %v4211, %v4210
        %v4331 = vpack.c.b16 %v4213, %v4212
        %v4332 = vpack.c.b16 %v4215, %v4214
        %v4333 = vpack.c.b16 %v4217, %v4216
        %v4334 = vpack.c.b16 %v4219, %v4218
        %v4335 = vpack.c.b16 %v4221, %v4220
        %v4336 = vpack.c.b16 %v4223, %v4222
        %v4337 = vpack.c.b16 %v4225, %v4224
        %v4338 = vpack.c.b16 %v4227, %v4226
        %v4339 = vpack.c.b16 %v4229, %v4228
        %v4340 = vpack.c.b16 %v4231, %v4230
        %v4341 = vpack.c.b16 %v4233, %v4232
        %v4342 = vpack.c.b16 %v4235, %v4234
        %v4343 = vpack.c.b16 %v4237, %v4236
        %v4344 = vpack.c.b16 %v4239, %v4238
        %v4345 = vpack.c.b16 %v4241, %v4240
        %v4346 = vpack.c.b16 %v4243, %v4242
        %v4347 = vpack.c.b16 %v4245, %v4244
        %v4348 = vpack.c.b16 %v4247, %v4246
        %v4349 = vpack.c.b16 %v4249, %v4248
        %v4350 = vpack.c.b16 %v4251, %v4250
        %v4351 = vpack.c.b16 %v4253, %v4252
        %v4352 = vpack.c.b16 %v4255, %v4254
        %v4353 = vpack.c.b16 %v4257, %v4256
        %v4354 = vpack.c.b16 %v4259, %v4258
        %v4355 = vpack.c.b16 %v4261, %v4260
        %v4356 = vpack.c.b16 %v4263, %v4262
        %v4357 = vpack.c.b16 %v4265, %v4264
        %v4358 = vpack.c.b16 %v4267, %v4266
        %v4359 = vpack.c.b16 %v4269, %v4268
        %v4360 = vpack.c.b16 %v4271, %v4270
        %v4361 = vpack.c.b16 %v4273, %v4272
        %4450 = vmatprep.subr.bf16.mxu0 0
        %4451 = vmatpush1.bf16.msra.mxu0 %v4281
        %4452 = vmatprep.subr.bf16.mxu0 0
        %4453 = vmatpush1.bf16.msra.mxu0 %v4280
        %4454 = vmatprep.subr.bf16.mxu0 0
        %4455 = vmatpush1.bf16.msra.mxu0 %v4279
        %4456 = vmatprep.subr.bf16.mxu0 0
        %4457 = vmatpush1.bf16.msra.mxu0 %v4278
        %4458 = vmatprep.subr.bf16.mxu0 0
        %4459 = vmatpush1.bf16.msra.mxu0 %v4277
        %4460 = vmatprep.subr.bf16.mxu0 0
        %4461 = vmatpush1.bf16.msra.mxu0 %v4276
        %4462 = vmatprep.subr.bf16.mxu0 0
        %4463 = vmatpush1.bf16.msra.mxu0 %v4275
        %4464 = vmatprep.subr.bf16.mxu0 0
        %4465 = vmatpush1.bf16.msra.mxu0 %v4274
        %4466 = vmatprep.subr.bf16.mxu0 0
        %4467 = vmatpush2.bf16.msra.mxu0 %v4289
        %4468 = vmatprep.subr.bf16.mxu0 0
        %4469 = vmatpush2.bf16.msra.mxu0 %v4288
        %4470 = vmatprep.subr.bf16.mxu0 0
        %4471 = vmatpush2.bf16.msra.mxu0 %v4287
        %4472 = vmatprep.subr.bf16.mxu0 0
        %4473 = vmatpush2.bf16.msra.mxu0 %v4286
        %4474 = vmatprep.subr.bf16.mxu0 0
        %4475 = vmatpush2.bf16.msra.mxu0 %v4285
        %4476 = vmatprep.subr.bf16.mxu0 0
        %4477 = vmatpush2.bf16.msra.mxu0 %v4284
        %4478 = vmatprep.subr.bf16.mxu0 0
        %4479 = vmatpush2.bf16.msra.mxu0 %v4283
        %4480 = vmatprep.subr.bf16.mxu0 0
        %4481 = vmatpush2.bf16.msra.mxu0 %v4282
        %4482 = vmatprep.mubr.bf16.mxu0 %v3562
        %4483 = vmatmul.mubr.bf16.gmra.mxu0 %v3542
        %v4484 = vpop.f32.mrf.mxu0
        %v4485 = vadd.f32 %v3920, %v4484
        %v4486 = vpop.f32.mrf.mxu0
        %v4487 = vpop.f32.mrf.mxu0
        %v4488 = vadd.f32 %v3920, %v4487
        %v4489 = vpop.f32.mrf.mxu0
        %4490 = vmatprep.mubr.bf16.mxu0 %v3570
        %4491 = vmatmul.mubr.bf16.gmra.mxu0 %v3543
        %v4492 = vpop.f32.mrf.mxu0
        %v4493 = vadd.f32 %v3920, %v4492
        %v4494 = vpop.f32.mrf.mxu0
        %v4495 = vpop.f32.mrf.mxu0
        %v4496 = vadd.f32 %v3920, %v4495
        %v4497 = vpop.f32.mrf.mxu0
        %4498 = vmatprep.mubr.bf16.mxu0 %v3573
        %4499 = vmatmul.mubr.bf16.gmra.mxu0 %v3544
        %v4500 = vpop.f32.mrf.mxu0
        %v4501 = vadd.f32 %v3920, %v4500
        %v4502 = vpop.f32.mrf.mxu0
        %v4503 = vpop.f32.mrf.mxu0
        %v4504 = vpop.f32.mrf.mxu0
        %4505 = vdwg.mxu0
        %4506 = vmatprep.subr.bf16.mxu0 0
        %4507 = vmatpush1.bf16.msra.mxu0 %v4297
        %4508 = vmatprep.subr.bf16.mxu0 0
        %4509 = vmatpush1.bf16.msra.mxu0 %v4296
        %4510 = vmatprep.subr.bf16.mxu0 0
        %4511 = vmatpush1.bf16.msra.mxu0 %v4295
        %4512 = vmatprep.subr.bf16.mxu0 0
        %4513 = vmatpush1.bf16.msra.mxu0 %v4294
        %4514 = vmatprep.subr.bf16.mxu0 0
        %4515 = vmatpush1.bf16.msra.mxu0 %v4293
        %4516 = vmatprep.subr.bf16.mxu0 0
        %4517 = vmatpush1.bf16.msra.mxu0 %v4292
        %4518 = vmatprep.subr.bf16.mxu0 0
        %4519 = vmatpush1.bf16.msra.mxu0 %v4291
        %4520 = vmatprep.subr.bf16.mxu0 0
        %4521 = vmatpush1.bf16.msra.mxu0 %v4290
        %4522 = vmatprep.subr.bf16.mxu0 0
        %4523 = vmatpush2.bf16.msra.mxu0 %v4305
        %4524 = vmatprep.subr.bf16.mxu0 0
        %4525 = vmatpush2.bf16.msra.mxu0 %v4304
        %4526 = vmatprep.subr.bf16.mxu0 0
        %4527 = vmatpush2.bf16.msra.mxu0 %v4303
        %4528 = vmatprep.subr.bf16.mxu0 0
        %4529 = vmatpush2.bf16.msra.mxu0 %v4302
        %4530 = vmatprep.subr.bf16.mxu0 0
        %4531 = vmatpush2.bf16.msra.mxu0 %v4301
        %4532 = vmatprep.subr.bf16.mxu0 0
        %4533 = vmatpush2.bf16.msra.mxu0 %v4300
        %4534 = vmatprep.subr.bf16.mxu0 0
        %4535 = vmatpush2.bf16.msra.mxu0 %v4299
        %4536 = vmatprep.subr.bf16.mxu0 0
        %4537 = vmatpush2.bf16.msra.mxu0 %v4298
        %4538 = vmatprep.mubr.bf16.mxu0 %v3602
        %4539 = vmatmul.mubr.bf16.gmra.mxu0 %v3582
        %v4540 = vpop.f32.mrf.mxu0
        %v4541 = vadd.f32 %v4485, %v4540
        %v4542 = vpop.f32.mrf.mxu0
        %v4543 = vpop.f32.mrf.mxu0
        %v4544 = vadd.f32 %v4488, %v4543
        %v4545 = vpop.f32.mrf.mxu0
        %4546 = vmatprep.mubr.bf16.mxu0 %v3611
        %4547 = vmatmul.mubr.bf16.gmra.mxu0 %v3584
        %v4548 = vpop.f32.mrf.mxu0
        %v4549 = vadd.f32 %v4493, %v4548
        %v4550 = vpop.f32.mrf.mxu0
        %v4551 = vpop.f32.mrf.mxu0
        %v4552 = vadd.f32 %v4496, %v4551
        %v4553 = vpop.f32.mrf.mxu0
        %4554 = vmatprep.mubr.bf16.mxu0 %v3610
        %4555 = vmatmul.mubr.bf16.gmra.mxu0 %v3583
        %v4556 = vpop.f32.mrf.mxu0
        %v4557 = vadd.f32 %v4501, %v4556
        %v4558 = vpop.f32.mrf.mxu0
        %v4559 = vpop.f32.mrf.mxu0
        %v4560 = vpop.f32.mrf.mxu0
        %4561 = vdwg.mxu0
        %4562 = vmatprep.subr.bf16.mxu0 0
        %4563 = vmatpush1.bf16.msra.mxu0 %v4313
        %4564 = vmatprep.subr.bf16.mxu0 0
        %4565 = vmatpush1.bf16.msra.mxu0 %v4312
        %4566 = vmatprep.subr.bf16.mxu0 0
        %4567 = vmatpush1.bf16.msra.mxu0 %v4311
        %4568 = vmatprep.subr.bf16.mxu0 0
        %4569 = vmatpush1.bf16.msra.mxu0 %v4310
        %4570 = vmatprep.subr.bf16.mxu0 0
        %4571 = vmatpush1.bf16.msra.mxu0 %v4309
        %4572 = vmatprep.subr.bf16.mxu0 0
        %4573 = vmatpush1.bf16.msra.mxu0 %v4308
        %4574 = vmatprep.subr.bf16.mxu0 0
        %4575 = vmatpush1.bf16.msra.mxu0 %v4307
        %4576 = vmatprep.subr.bf16.mxu0 0
        %4577 = vmatpush1.bf16.msra.mxu0 %v4306
        %4578 = vmatprep.subr.bf16.mxu0 0
        %4579 = vmatpush2.bf16.msra.mxu0 %v4321
        %4580 = vmatprep.subr.bf16.mxu0 0
        %4581 = vmatpush2.bf16.msra.mxu0 %v4320
        %4582 = vmatprep.subr.bf16.mxu0 0
        %4583 = vmatpush2.bf16.msra.mxu0 %v4319
        %4584 = vmatprep.subr.bf16.mxu0 0
        %4585 = vmatpush2.bf16.msra.mxu0 %v4318
        %4586 = vmatprep.subr.bf16.mxu0 0
        %4587 = vmatpush2.bf16.msra.mxu0 %v4317
        %4588 = vmatprep.subr.bf16.mxu0 0
        %4589 = vmatpush2.bf16.msra.mxu0 %v4316
        %4590 = vmatprep.subr.bf16.mxu0 0
        %4591 = vmatpush2.bf16.msra.mxu0 %v4315
        %4592 = vmatprep.subr.bf16.mxu0 0
        %4593 = vmatpush2.bf16.msra.mxu0 %v4314
        %4594 = vmatprep.mubr.bf16.mxu0 %v3640
        %4595 = vmatmul.mubr.bf16.gmra.mxu0 %v3620
        %v4596 = vpop.f32.mrf.mxu0
        %v4597 = vadd.f32 %v4541, %v4596
        %v4598 = vpop.f32.mrf.mxu0
        %v4599 = vpop.f32.mrf.mxu0
        %v4600 = vadd.f32 %v4544, %v4599
        %v4601 = vpop.f32.mrf.mxu0
        %4602 = vmatprep.mubr.bf16.mxu0 %v3649
        %4603 = vmatmul.mubr.bf16.gmra.mxu0 %v3622
        %v4604 = vpop.f32.mrf.mxu0
        %v4605 = vadd.f32 %v4549, %v4604
        %v4606 = vpop.f32.mrf.mxu0
        %v4607 = vpop.f32.mrf.mxu0
        %v4608 = vadd.f32 %v4552, %v4607
        %v4609 = vpop.f32.mrf.mxu0
        %4610 = vmatprep.mubr.bf16.mxu0 %v3648
        %4611 = vmatmul.mubr.bf16.gmra.mxu0 %v3621
        %v4612 = vpop.f32.mrf.mxu0
        %v4613 = vadd.f32 %v4557, %v4612
        %v4614 = vpop.f32.mrf.mxu0
        %v4615 = vpop.f32.mrf.mxu0
        %v4616 = vpop.f32.mrf.mxu0
        %4617 = vdwg.mxu0
        %4618 = vmatprep.subr.bf16.mxu0 0
        %4619 = vmatpush1.bf16.msra.mxu0 %v4329
        %4620 = vmatprep.subr.bf16.mxu0 0
        %4621 = vmatpush1.bf16.msra.mxu0 %v4328
        %4622 = vmatprep.subr.bf16.mxu0 0
        %4623 = vmatpush1.bf16.msra.mxu0 %v4327
        %4624 = vmatprep.subr.bf16.mxu0 0
        %4625 = vmatpush1.bf16.msra.mxu0 %v4326
        %4626 = vmatprep.subr.bf16.mxu0 0
        %4627 = vmatpush1.bf16.msra.mxu0 %v4325
        %4628 = vmatprep.subr.bf16.mxu0 0
        %4629 = vmatpush1.bf16.msra.mxu0 %v4324
        %4630 = vmatprep.subr.bf16.mxu0 0
        %4631 = vmatpush1.bf16.msra.mxu0 %v4323
        %4632 = vmatprep.subr.bf16.mxu0 0
        %4633 = vmatpush1.bf16.msra.mxu0 %v4322
        %4634 = vmatprep.subr.bf16.mxu0 0
        %4635 = vmatpush2.bf16.msra.mxu0 %v4337
        %4636 = vmatprep.subr.bf16.mxu0 0
        %4637 = vmatpush2.bf16.msra.mxu0 %v4336
        %4638 = vmatprep.subr.bf16.mxu0 0
        %4639 = vmatpush2.bf16.msra.mxu0 %v4335
        %4640 = vmatprep.subr.bf16.mxu0 0
        %4641 = vmatpush2.bf16.msra.mxu0 %v4334
        %4642 = vmatprep.subr.bf16.mxu0 0
        %4643 = vmatpush2.bf16.msra.mxu0 %v4333
        %4644 = vmatprep.subr.bf16.mxu0 0
        %4645 = vmatpush2.bf16.msra.mxu0 %v4332
        %4646 = vmatprep.subr.bf16.mxu0 0
        %4647 = vmatpush2.bf16.msra.mxu0 %v4331
        %4648 = vmatprep.subr.bf16.mxu0 0
        %4649 = vmatpush2.bf16.msra.mxu0 %v4330
        %4650 = vmatprep.mubr.bf16.mxu0 %v3678
        %4651 = vmatmul.mubr.bf16.gmra.mxu0 %v3658
        %v4652 = vpop.f32.mrf.mxu0
        %v4653 = vadd.f32 %v4597, %v4652
        %v4654 = vpop.f32.mrf.mxu0
        %v4655 = vpop.f32.mrf.mxu0
        %v4656 = vadd.f32 %v4600, %v4655
        %v4657 = vpop.f32.mrf.mxu0
        %4658 = vmatprep.mubr.bf16.mxu0 %v3687
        %4659 = vmatmul.mubr.bf16.gmra.mxu0 %v3660
        %v4660 = vpop.f32.mrf.mxu0
        %v4661 = vadd.f32 %v4605, %v4660
        %v4662 = vpop.f32.mrf.mxu0
        %v4663 = vpop.f32.mrf.mxu0
        %v4664 = vadd.f32 %v4608, %v4663
        %v4665 = vpop.f32.mrf.mxu0
        %4666 = vmatprep.mubr.bf16.mxu0 %v3686
        %4667 = vmatmul.mubr.bf16.gmra.mxu0 %v3659
        %v4668 = vpop.f32.mrf.mxu0
        %v4669 = vadd.f32 %v4613, %v4668
        %v4670 = vpop.f32.mrf.mxu0
        %v4671 = vpop.f32.mrf.mxu0
        %v4672 = vpop.f32.mrf.mxu0
        %4673 = vdwg.mxu0
        %4674 = vmatprep.subr.bf16.mxu0 0
        %4675 = vmatpush1.bf16.msra.mxu0 %v4345
        %4676 = vmatprep.subr.bf16.mxu0 0
        %4677 = vmatpush1.bf16.msra.mxu0 %v4344
        %4678 = vmatprep.subr.bf16.mxu0 0
        %4679 = vmatpush1.bf16.msra.mxu0 %v4343
        %4680 = vmatprep.subr.bf16.mxu0 0
        %4681 = vmatpush1.bf16.msra.mxu0 %v4342
        %4682 = vmatprep.subr.bf16.mxu0 0
        %4683 = vmatpush1.bf16.msra.mxu0 %v4341
        %4684 = vmatprep.subr.bf16.mxu0 0
        %4685 = vmatpush1.bf16.msra.mxu0 %v4340
        %4686 = vmatprep.subr.bf16.mxu0 0
        %4687 = vmatpush1.bf16.msra.mxu0 %v4339
        %4688 = vmatprep.subr.bf16.mxu0 0
        %4689 = vmatpush1.bf16.msra.mxu0 %v4338
        %4690 = vmatprep.subr.bf16.mxu0 0
        %4691 = vmatpush2.bf16.msra.mxu0 %v4353
        %4692 = vmatprep.subr.bf16.mxu0 0
        %4693 = vmatpush2.bf16.msra.mxu0 %v4352
        %4694 = vmatprep.subr.bf16.mxu0 0
        %4695 = vmatpush2.bf16.msra.mxu0 %v4351
        %4696 = vmatprep.subr.bf16.mxu0 0
        %4697 = vmatpush2.bf16.msra.mxu0 %v4350
        %4698 = vmatprep.subr.bf16.mxu0 0
        %4699 = vmatpush2.bf16.msra.mxu0 %v4349
        %4700 = vmatprep.subr.bf16.mxu0 0
        %4701 = vmatpush2.bf16.msra.mxu0 %v4348
        %4702 = vmatprep.subr.bf16.mxu0 0
        %4703 = vmatpush2.bf16.msra.mxu0 %v4347
        %4704 = vmatprep.subr.bf16.mxu0 0
        %4705 = vmatpush2.bf16.msra.mxu0 %v4346
        %4706 = vmatprep.mubr.bf16.mxu0 %v3711
        %4707 = vmatmul.mubr.bf16.gmra.mxu0 %v3691
        %v4708 = vpop.f32.mrf.mxu0
        %v4709 = vadd.f32 %v4653, %v4708
        %v4710 = vpop.f32.mrf.mxu0
        %v4711 = vpop.f32.mrf.mxu0
        %v4712 = vadd.f32 %v4656, %v4711
        %v4713 = vpop.f32.mrf.mxu0
        %4714 = vmatprep.mubr.bf16.mxu0 %v3719
        %4715 = vmatmul.mubr.bf16.gmra.mxu0 %v3692
        %v4716 = vpop.f32.mrf.mxu0
        %v4717 = vadd.f32 %v4661, %v4716
        %v4718 = vpop.f32.mrf.mxu0
        %v4719 = vpop.f32.mrf.mxu0
        %v4720 = vadd.f32 %v4664, %v4719
        %v4721 = vpop.f32.mrf.mxu0
        %4722 = vmatprep.mubr.bf16.mxu0 %v3722
        %4723 = vmatmul.mubr.bf16.gmra.mxu0 %v3693
        %v4724 = vpop.f32.mrf.mxu0
        %v4725 = vadd.f32 %v4669, %v4724
        %v4726 = vpop.f32.mrf.mxu0
        %v4727 = vpop.f32.mrf.mxu0
        %v4728 = vpop.f32.mrf.mxu0
        %4729 = vdwg.mxu0
        %4730 = vmatprep.subr.bf16.mxu0 0
        %4731 = vmatpush1.bf16.msra.mxu0 %v4361
        %4732 = vmatprep.subr.bf16.mxu0 0
        %4733 = vmatpush1.bf16.msra.mxu0 %v4360
        %4734 = vmatprep.subr.bf16.mxu0 0
        %4735 = vmatpush1.bf16.msra.mxu0 %v4359
        %4736 = vmatprep.subr.bf16.mxu0 0
        %4737 = vmatpush1.bf16.msra.mxu0 %v4358
        %4738 = vmatprep.subr.bf16.mxu0 0
        %4739 = vmatpush1.bf16.msra.mxu0 %v4357
        %4740 = vmatprep.subr.bf16.mxu0 0
        %4741 = vmatpush1.bf16.msra.mxu0 %v4356
        %4742 = vmatprep.subr.bf16.mxu0 0
        %4743 = vmatpush1.bf16.msra.mxu0 %v4355
        %4744 = vmatprep.subr.bf16.mxu0 0
        %4745 = vmatpush1.bf16.msra.mxu0 %v4354
        %4746 = vmatprep.subr.bf16.mxu0 0
        %4747 = vmatpush2.bf16.msra.mxu0 0
        %4748 = vmatprep.subr.bf16.mxu0 0
        %4749 = vmatpush2.bf16.msra.mxu0 0
        %4750 = vmatprep.subr.bf16.mxu0 0
        %4751 = vmatpush2.bf16.msra.mxu0 0
        %4752 = vmatprep.subr.bf16.mxu0 0
        %4753 = vmatpush2.bf16.msra.mxu0 0
        %4754 = vmatprep.subr.bf16.mxu0 0
        %4755 = vmatpush2.bf16.msra.mxu0 0
        %4756 = vmatprep.subr.bf16.mxu0 0
        %4757 = vmatpush2.bf16.msra.mxu0 0
        %4758 = vmatprep.subr.bf16.mxu0 0
        %4759 = vmatpush2.bf16.msra.mxu0 0
        %4760 = vmatprep.subr.bf16.mxu0 0
        %4761 = vmatpush2.bf16.msra.mxu0 0
        %4762 = vmatprep.mubr.bf16.mxu0 0
        %4763 = vmatmul.mubr.bf16.gmra.mxu0 %v3731
        %v4764 = vpop.f32.mrf.mxu0
        %v4765 = vadd.f32 %v4709, %v4764
        %v4766 = vpop.f32.mrf.mxu0
        %v4767 = vpop.f32.mrf.mxu0
        %v4768 = vadd.f32 %v4712, %v4767
        %v4769 = vpop.f32.mrf.mxu0
        %4770 = vmatprep.mubr.bf16.mxu0 0
        %4771 = vmatmul.mubr.bf16.gmra.mxu0 %v3733
        %v4772 = vpop.f32.mrf.mxu0
        %v4773 = vadd.f32 %v4717, %v4772
        %v4774 = vpop.f32.mrf.mxu0
        %v4775 = vpop.f32.mrf.mxu0
        %v4776 = vadd.f32 %v4720, %v4775
        %v4777 = vpop.f32.mrf.mxu0
        %4778 = vmatprep.mubr.bf16.mxu0 0
        %4779 = vmatmul.mubr.bf16.gmra.mxu0 %v3732
        %v4780 = vpop.f32.mrf.mxu0
        %v4781 = vadd.f32 %v4725, %v4780
        %v4782 = vpop.f32.mrf.mxu0
        %v4783 = vpop.f32.mrf.mxu0
        %v4784 = vpop.f32.mrf.mxu0
        %4785 = vdwg.mxu0
        %vm4791 = vcmask 1045504
        %v4792 = vrot.slane %v2011, 2
        %v4793 = vrot.slane %v2017, 2
        %v4794 = vsel %vm4791, %v4792, %v4793
        %v4795 = vrot.slane %v2021, 2
        %v4796 = vsel %vm4791, %v4793, %v4795
        %v4797 = vrot.slane %v2027, 2
        %v4798 = vsel %vm4791, %v4795, %v4797
        %v4799 = vrot.slane %v2031, 2
        %v4800 = vsel %vm4791, %v4797, %v4799
        %v4806 = vadd.f32 %v4765, %v4794
        %v4807 = vadd.f32 %v4768, %v4796
        %v4808 = vadd.f32 %v4773, %v4798
        %v4809 = vadd.f32 %v4776, %v4800
        %v4810 = vadd.f32 %v4781, %v4799
        %v4811 = vmax.f32 %v4806, 0.0
        %v4812 = vmax.f32 %v4807, 0.0
        %v4813 = vmax.f32 %v4808, 0.0
        %v4814 = vmax.f32 %v4809, 0.0
        %v4815 = vmax.f32 %v4810, 0.0
        %4816 = vst [vmem:[%s193 - $0x1] sm:$0xfe] %v4811
        %4817 = vst [vmem:[%s193 + $0x7] sm:$0xff] %v4812
        %4818 = vst [vmem:[%s193 + $0xf] sm:$0xff] %v4813
        %4819 = vst [vmem:[%s193 + $0x17] sm:$0xff] %v4814
        %4820 = vst [vmem:[%s193 + $0x1f] sm:$0x1] %v4815
        %s4821 = sand.u32 %s105, 1
        %s4822 = scalar_lea.sflag [#allocation7], %s4821
        %s4823 = sand.u32 %s105, 1
        %s4824 = smul.addr %s4823, 32
        %s4825 = scalar_lea.vmem [#allocation10], %s4824
        // Predicated region
        $region117: #{quartznet_block_forward.1} parent=31 // pred_check
          %p4826 = pneg %p115
        $region118: #{quartznet_block_forward.1} parent=31 // pred_check_branch
          %4828 = sbr.rel (%p4826) target = $region120
        $region119: #{quartznet_block_forward.1} parent=31 // pred_region
          %s4829 = smul.u32 4, %s25
          %s4831 = ssub.s32 512, 512
          %4832 = vsyncadd %s4822, %s4831
          %s4833 = smul.addr %s24, 8
          %s4834 = sadd.s32 %s4829, %s4833
          %s4835 = smul.addr %s4834, 128
          %s4836 = scalar_lea.hbm %s4, %s4835
          %s4837 = sshll.u32 %s4825, 4
          %s4838 = int_to_ptr.vmem [resolvable:$true] %s4837
          %4843 = dma.vmem_to_hbm [thread:$0]  %s4838, 512, %s4836, %s4822, 128, 128, 8
        $region120: #{quartznet_block_forward.1} parent=31 // pred_fallthru
          _
      $region32: #{quartznet_block_forward.1} parent=5 // pred_fallthru
        _
      %p4844 = scmp.le.s32.totalorder 2, %s15
      // Predicated region
      $region121: #{quartznet_block_forward.1} parent=5 // pred_check
        %p4845 = pneg %p4844
      $region122: #{quartznet_block_forward.1} parent=5 // pred_check_branch
        %4847 = sbr.rel (%p4845) target = $region124
      $region123: #{quartznet_block_forward.1} parent=5 // pred_region
        %s4848 = ssub.s32 %s15, 2
        // Predicated region
        $region125: #{quartznet_block_forward.1} parent=123 // pred_check
          %p4849 = pneg %p121
        $region126: #{quartznet_block_forward.1} parent=123 // pred_check_branch
          %4851 = sbr.rel (%p4849) target = $region128
        $region127: #{quartznet_block_forward.1} parent=123 // pred_region
          %s4852 = sand.u32 %s106, 1
          %s4853 = scalar_lea.sflag [#allocation7], %s4852
          %s4854 = sand.u32 %s106, 1
          %s4855 = smul.addr %s4854, 32
          %s4856 = scalar_lea.vmem [#allocation10], %s4855
          %4857 = dma.done %s4853, 512
        $region128: #{quartznet_block_forward.1} parent=123 // pred_fallthru
          _
      $region124: #{quartznet_block_forward.1} parent=5 // pred_fallthru
        _
    $region6: #{quartznet_block_forward.1} parent=1 // loop_footer
      %s19 = sadd.s32 1, %s15
    $region7: #{quartznet_block_forward.1} parent=1 // loop_footer_branch
      %14 = sbr.rel target = $region3
    $region8: #{quartznet_block_forward.1} parent=1 // loop_exit
      _
    %4858 = vsyncpa [#allocation6], 1
    %s4859 = scalar_lea.sflag [#allocation6], 1
    %4860 = vsyncpa %s4859, 1
    %4861 = vsyncpa [#allocation9], 1
    %4862 = vsyncpa [#allocation7], 1
    %s4863 = scalar_lea.sflag [#allocation7], 1
    %4864 = vsyncpa %s4863, 1
  %4865 = vsyncmov [#allocation4]
  %s4866 = vpop.sfrf %4865
  %p4867 = scmp.eq.s32.totalorder %s4866, 0
  %p4868 = pneg %p4867
  %4870 = shalt.err (%p4868)
  %s4871 = scalar_lea.sflag [#allocation4], 1
  %4872 = vsyncmov %s4871
  %s4873 = vpop.sfrf %4872
  %p4874 = scmp.eq.s32.totalorder %s4873, 0
  %p4875 = pneg %p4874
  %4877 = shalt.err (%p4875)

</llo_original>
